<compile_context>
chip_gen: v6e
topology: v6e:2x2x1
jax: 0.10.0
libtpu: 0.0.40
codegen_flags: <defaults>
</compile_context>

<pallas_src>
import functools

import jax
import jax.numpy as jnp
from jax.experimental import pallas as pl
from jax.experimental.pallas import tpu as pltpu

EMBED_DIM = 512       # ViT-B/32 visual.output_dim
FUSE1 = 1024
FUSE2 = 512
NUM_CLASSES = 2
CPAD = 128            # lane-dense padded class dimension (holds all 3 heads)
LN_EPS = 1e-5
COMPUTE_DTYPE = jnp.bfloat16   # matmul operand dtype (f32 accumulation)


def _round_up(x, m):
    return ((x + m - 1) // m) * m


def _layernorm(x, gamma, beta):
    mu = jnp.mean(x, axis=-1, keepdims=True)
    var = jnp.mean((x - mu) * (x - mu), axis=-1, keepdims=True)
    return (x - mu) * jax.lax.rsqrt(var + LN_EPS) * gamma + beta


def _head_kernel(
    # activations (batch-tiled)
    img_ref, txt_ref,
    # weights / biases (VMEM-resident, single-buffered, constant index_map)
    img_g_ref, img_b_ref, txt_g_ref, txt_b_ref,
    w1a_ref, w1b_ref, b1_ref, ln1_g_ref, ln1_b_ref,
    w2_ref, b2_ref, ln2_g_ref, ln2_b_ref,
    wblk_ref, bblk_ref,
    # outputs (batch-tiled)
    image_feat_ref, text_feat_ref, logits_ref,
):
    img = img_ref[...]
    txt = txt_ref[...]

    # f = f / f.norm(dim=1, keepdim=True)  (eps-free, matches torch; rsqrt -> EUP)
    img = img * jax.lax.rsqrt(jnp.sum(img * img, axis=-1, keepdims=True))
    txt = txt * jax.lax.rsqrt(jnp.sum(txt * txt, axis=-1, keepdims=True))

    # image_norm / text_norm LayerNorms (f32 statistics)
    img_ln = _layernorm(img, img_g_ref[...], img_b_ref[...])
    txt_ln = _layernorm(txt, txt_g_ref[...], txt_b_ref[...])

    image_feat_ref[...] = img_ln.astype(image_feat_ref.dtype)
    text_feat_ref[...] = txt_ln.astype(text_feat_ref.dtype)

    # bf16 matmul operands, f32 accumulation.
    cd = w1a_ref.dtype
    img_c = img_ln.astype(cd)
    txt_c = txt_ln.astype(cd)

    # fusion: cat([img_ln, txt_ln], 1) @ W1 == img_ln @ W1[:D] + txt_ln @ W1[D:]
    h1 = (
        jnp.dot(img_c, w1a_ref[...], preferred_element_type=jnp.float32)
        + jnp.dot(txt_c, w1b_ref[...], preferred_element_type=jnp.float32)
        + b1_ref[...]
    )
    h1 = jnp.maximum(_layernorm(h1, ln1_g_ref[...], ln1_b_ref[...]), 0.0)  # Dropout(0.3)=id

    h2 = (
        jnp.dot(h1.astype(cd), w2_ref[...], preferred_element_type=jnp.float32)
        + b2_ref[...]
    )
    h2 = jnp.maximum(_layernorm(h2, ln2_g_ref[...], ln2_b_ref[...]), 0.0)  # Dropout(0.2)=id

    # Single block-diagonal classifier matmul:
    #   [h2 | img | txt] (TB, 1536) @ W_blk (1536, 128) -> (TB, 128)
    # cols [0,C)   = classifier(h2)        (fused_logits)
    # cols [C,2C)  = image_classifier(img) (image_logits)
    # cols [2C,3C) = text_classifier(txt)  (text_logits)
    x_cat = jnp.concatenate([h2.astype(cd), img_c, txt_c], axis=-1)
    logits_ref[...] = (
        jnp.dot(x_cat, wblk_ref[...], preferred_element_type=jnp.float32)
        + bblk_ref[...]
    )


def _weight_spec(shape):
    """Whole-array block, constant index_map; single-buffered when supported."""
    idx_map = lambda i: (0,) * len(shape)
    buffered = getattr(pl, "Buffered", None)
    if buffered is not None:
        try:
            return pl.BlockSpec(shape, idx_map, pipeline_mode=buffered(1))
        except TypeError:
            pass
    return pl.BlockSpec(shape, idx_map)


@functools.partial(jax.jit, static_argnames=("batch_tile", "feature_dtype"))
def clip_finetuner_head(image_features, text_features, params,
                        batch_tile=256, feature_dtype=jnp.float32):
    B, D = image_features.shape
    C = params["wc"].shape[1]
    F1 = params["w2"].shape[0]
    F2 = params["wc"].shape[0]
    assert 3 * C <= CPAD, "block-diagonal classifier needs 3 * num_classes <= 128"
    cd = COMPUTE_DTYPE

    # Batch tiling: sublane-multiple tile; whenever B >= 16 force at least two
    # grid steps so the "parallel" batch axis feeds both TensorCores on v7x.
    TB = min(batch_tile, _round_up(B, 8))
    if B >= 16:
        TB = min(TB, _round_up(-(-B // 2), 8))
    Bp = _round_up(B, TB)
    if Bp != B:
        pad_rows = ((0, Bp - B), (0, 0))
        # pad with 1.0 so padded rows stay finite (they are sliced off anyway)
        image_features = jnp.pad(image_features, pad_rows, constant_values=1.0)
        text_features = jnp.pad(text_features, pad_rows, constant_values=1.0)

    # Block-diagonal classifier weight/bias (extra columns/rows stay zero).
    k_blk = F2 + 2 * D
    w_blk = jnp.zeros((k_blk, CPAD), jnp.float32)
    w_blk = w_blk.at[:F2, 0:C].set(params["wc"])
    w_blk = w_blk.at[F2:F2 + D, C:2 * C].set(params["wi"])
    w_blk = w_blk.at[F2 + D:, 2 * C:3 * C].set(params["wt"])
    w_blk = w_blk.astype(cd)
    b_blk = jnp.zeros((1, CPAD), jnp.float32)
    b_blk = b_blk.at[:, 0:C].set(params["bc"])
    b_blk = b_blk.at[:, C:2 * C].set(params["bi"])
    b_blk = b_blk.at[:, 2 * C:3 * C].set(params["bt"])

    weights = (
        params["img_g"], params["img_b"], params["txt_g"], params["txt_b"],
        params["w1a"].astype(cd), params["w1b"].astype(cd), params["b1"],
        params["ln1_g"], params["ln1_b"],
        params["w2"].astype(cd), params["b2"], params["ln2_g"], params["ln2_b"],
        w_blk, b_blk,
    )

    def act_spec(cols):
        return pl.BlockSpec((TB, cols), lambda i: (i, 0))

    in_specs = [act_spec(D), act_spec(D)] + [_weight_spec(w.shape) for w in weights]

    out_shape = (
        jax.ShapeDtypeStruct((Bp, D), feature_dtype),    # image_features (post-LN)
        jax.ShapeDtypeStruct((Bp, D), feature_dtype),    # text_features  (post-LN)
        jax.ShapeDtypeStruct((Bp, CPAD), jnp.float32),   # packed logits (3 heads)
    )
    out_specs = (act_spec(D), act_spec(D), act_spec(CPAD))

    feats_i, feats_t, logits = pl.pallas_call(
        _head_kernel,
        out_shape=out_shape,
        grid=(Bp // TB,),
        in_specs=in_specs,
        out_specs=out_specs,
        compiler_params=pltpu.CompilerParams(
            dimension_semantics=("parallel",),
            vmem_limit_bytes=48 << 20,
        ),
    )(image_features, text_features, *weights)

    return {
        "fused_logits": logits[:B, 0:C],
        "image_logits": logits[:B, C:2 * C],
        "text_logits": logits[:B, 2 * C:3 * C],
        "image_features": feats_i[:B],
        "text_features": feats_t[:B],
    }


def init_params(key, embed_dim=EMBED_DIM, num_classes=NUM_CLASSES):
    """Deterministic synthetic init for all head parameters (eval-mode head, f32)."""
    ks = jax.random.split(key, 8)
    std = 0.02
    f32 = jnp.float32
    return {
        # image_norm / text_norm LayerNorms
        "img_g": jnp.ones((1, embed_dim), f32),
        "img_b": jnp.zeros((1, embed_dim), f32),
        "txt_g": jnp.ones((1, embed_dim), f32),
        "txt_b": jnp.zeros((1, embed_dim), f32),
        # fusion Linear(2D, 1024) split into the two D-sized input halves
        "w1a": std * jax.random.normal(ks[0], (embed_dim, FUSE1), f32),
        "w1b": std * jax.random.normal(ks[1], (embed_dim, FUSE1), f32),
        "b1": jnp.zeros((1, FUSE1), f32),
        "ln1_g": jnp.ones((1, FUSE1), f32),
        "ln1_b": jnp.zeros((1, FUSE1), f32),
        # fusion Linear(1024, 512)
        "w2": std * jax.random.normal(ks[2], (FUSE1, FUSE2), f32),
        "b2": jnp.zeros((1, FUSE2), f32),
        "ln2_g": jnp.ones((1, FUSE2), f32),
        "ln2_b": jnp.zeros((1, FUSE2), f32),
        # classifier Linear(512, num_classes)
        "wc": std * jax.random.normal(ks[3], (FUSE2, num_classes), f32),
        "bc": jnp.zeros((1, num_classes), f32),
        # image_classifier / text_classifier Linear(D, num_classes)
        "wi": std * jax.random.normal(ks[4], (embed_dim, num_classes), f32),
        "bi": jnp.zeros((1, num_classes), f32),
        "wt": std * jax.random.normal(ks[5], (embed_dim, num_classes), f32),
        "bt": jnp.zeros((1, num_classes), f32),
    }


def reference_head(image_features, text_features, params, compute_dtype=COMPUTE_DTYPE):
    """Pure-JAX reference of the same forward pass.

    compute_dtype=bf16 mirrors the kernel's mixed-precision matmul operands;
    compute_dtype=f32 gives the full-precision torch-equivalent forward.
    """
    def mm(x, w):
        return jnp.dot(x.astype(compute_dtype), w.astype(compute_dtype),
                       preferred_element_type=jnp.float32)

    img = image_features * jax.lax.rsqrt(
        jnp.sum(image_features * image_features, axis=1, keepdims=True))
    txt = text_features * jax.lax.rsqrt(
        jnp.sum(text_features * text_features, axis=1, keepdims=True))
    img_ln = _layernorm(img, params["img_g"], params["img_b"])
    txt_ln = _layernorm(txt, params["txt_g"], params["txt_b"])
    image_logits = mm(img_ln, params["wi"]) + params["bi"]
    text_logits = mm(txt_ln, params["wt"]) + params["bt"]
    h1 = mm(img_ln, params["w1a"]) + mm(txt_ln, params["w1b"]) + params["b1"]
    h1 = jnp.maximum(_layernorm(h1, params["ln1_g"], params["ln1_b"]), 0.0)
    h2 = mm(h1, params["w2"]) + params["b2"]
    h2 = jnp.maximum(_layernorm(h2, params["ln2_g"], params["ln2_b"]), 0.0)
    fused_logits = mm(h2, params["wc"]) + params["bc"]
    return {
        "fused_logits": fused_logits,
        "image_logits": image_logits,
        "text_logits": text_logits,
        "image_features": img_ln,
        "text_features": txt_ln,
    }


def _assert_close(tag, got, want, atol, rtol):
    got = jnp.asarray(got, jnp.float32)
    want = jnp.asarray(want, jnp.float32)
    err = float(jnp.max(jnp.abs(got - want)))
    tol = atol + rtol * float(jnp.max(jnp.abs(want)))
    assert err <= tol, (tag, err, tol)


if __name__ == "__main__":
    key = jax.random.PRNGKey(0)
    k_data, k_par = jax.random.split(key)
    params = init_params(k_par)

    names = ("fused_logits", "image_logits", "text_logits",
             "image_features", "text_features")

    # Small demo batch (padded to one sublane inside the wrapper) and a
    # multi-tile batch exercising the pipelined grid with resident weights.
    for batch in (2, 512):
        kb = jax.random.fold_in(k_data, batch)
        k_img, k_txt = jax.random.split(kb)
        image_features = jax.random.normal(k_img, (batch, EMBED_DIM), jnp.float32)
        text_features = jax.random.normal(k_txt, (batch, EMBED_DIM), jnp.float32)

        out = clip_finetuner_head(image_features, text_features, params,
                                  batch_tile=256)
        jax.block_until_ready(out)

        # Matched-precision reference (bf16 matmul operands, f32 accumulation).
        ref = reference_head(image_features, text_features, params)
        # Full-f32 reference: loose sanity check on mixed-precision error.
        ref_f32 = reference_head(image_features, text_features, params,
                                 compute_dtype=jnp.float32)

        for name in names:
            assert out[name].shape == ref[name].shape, (batch, name)
            # bf16 rounding-boundary divergence between the MXU and the XLA
            # reference propagates through two LayerNorms -> O(1e-3) logit
            # differences are expected; 1e-2 scale-aware tolerance covers it.
            _assert_close((batch, name, "bf16_ref"), out[name], ref[name],
                          atol=1e-2, rtol=1e-2)
            _assert_close((batch, name, "f32_ref"), out[name], ref_f32[name],
                          atol=1e-1, rtol=1e-1)

    print("KERNEL_OK")
</pallas_src>

<mosaic_0001>
module attributes {stable_mosaic.version = 11 : i64} {
  func.func @_head_kernel(%arg0: i32, %arg1: memref<8x512xf32, #tpu.memory_space<vmem>>, %arg2: memref<8x512xf32, #tpu.memory_space<vmem>>, %arg3: memref<1x512xf32, #tpu.memory_space<vmem>>, %arg4: memref<1x512xf32, #tpu.memory_space<vmem>>, %arg5: memref<1x512xf32, #tpu.memory_space<vmem>>, %arg6: memref<1x512xf32, #tpu.memory_space<vmem>>, %arg7: memref<512x1024xbf16, #tpu.memory_space<vmem>>, %arg8: memref<512x1024xbf16, #tpu.memory_space<vmem>>, %arg9: memref<1x1024xf32, #tpu.memory_space<vmem>>, %arg10: memref<1x1024xf32, #tpu.memory_space<vmem>>, %arg11: memref<1x1024xf32, #tpu.memory_space<vmem>>, %arg12: memref<1024x512xbf16, #tpu.memory_space<vmem>>, %arg13: memref<1x512xf32, #tpu.memory_space<vmem>>, %arg14: memref<1x512xf32, #tpu.memory_space<vmem>>, %arg15: memref<1x512xf32, #tpu.memory_space<vmem>>, %arg16: memref<1536x128xbf16, #tpu.memory_space<vmem>>, %arg17: memref<1x128xf32, #tpu.memory_space<vmem>>, %arg18: memref<8x512xf32, #tpu.memory_space<vmem>>, %arg19: memref<8x512xf32, #tpu.memory_space<vmem>>, %arg20: memref<8x128xf32, #tpu.memory_space<vmem>>) attributes {dimension_semantics = [#tpu.dimension_semantics<parallel>], iteration_bounds = array<i64: 1>, scalar_prefetch = 0 : i64, scratch_operands = 0 : i64, tpu.core_type = #tpu.core_type<tc>, window_params = [{transform_indices = @transform_0, window_bounds = array<i64: 8, 512>}, {transform_indices = @transform_1, window_bounds = array<i64: 8, 512>}, {pipeline_mode = #tpu.pipeline_mode<synchronous>, transform_indices = @transform_2, window_bounds = array<i64: 1, 512>}, {pipeline_mode = #tpu.pipeline_mode<synchronous>, transform_indices = @transform_3, window_bounds = array<i64: 1, 512>}, {pipeline_mode = #tpu.pipeline_mode<synchronous>, transform_indices = @transform_4, window_bounds = array<i64: 1, 512>}, {pipeline_mode = #tpu.pipeline_mode<synchronous>, transform_indices = @transform_5, window_bounds = array<i64: 1, 512>}, {pipeline_mode = #tpu.pipeline_mode<synchronous>, transform_indices = @transform_6, window_bounds = array<i64: 512, 1024>}, {pipeline_mode = #tpu.pipeline_mode<synchronous>, transform_indices = @transform_7, window_bounds = array<i64: 512, 1024>}, {pipeline_mode = #tpu.pipeline_mode<synchronous>, transform_indices = @transform_8, window_bounds = array<i64: 1, 1024>}, {pipeline_mode = #tpu.pipeline_mode<synchronous>, transform_indices = @transform_9, window_bounds = array<i64: 1, 1024>}, {pipeline_mode = #tpu.pipeline_mode<synchronous>, transform_indices = @transform_10, window_bounds = array<i64: 1, 1024>}, {pipeline_mode = #tpu.pipeline_mode<synchronous>, transform_indices = @transform_11, window_bounds = array<i64: 1024, 512>}, {pipeline_mode = #tpu.pipeline_mode<synchronous>, transform_indices = @transform_12, window_bounds = array<i64: 1, 512>}, {pipeline_mode = #tpu.pipeline_mode<synchronous>, transform_indices = @transform_13, window_bounds = array<i64: 1, 512>}, {pipeline_mode = #tpu.pipeline_mode<synchronous>, transform_indices = @transform_14, window_bounds = array<i64: 1, 512>}, {pipeline_mode = #tpu.pipeline_mode<synchronous>, transform_indices = @transform_15, window_bounds = array<i64: 1536, 128>}, {pipeline_mode = #tpu.pipeline_mode<synchronous>, transform_indices = @transform_16, window_bounds = array<i64: 1, 128>}, {transform_indices = @transform_17, window_bounds = array<i64: 8, 512>}, {transform_indices = @transform_18, window_bounds = array<i64: 8, 512>}, {transform_indices = @transform_19, window_bounds = array<i64: 8, 128>}]} {
    %c0 = arith.constant 0 : index
    %c0_0 = arith.constant 0 : index
    %0 = vector.load %arg1[%c0, %c0_0] : memref<8x512xf32, #tpu.memory_space<vmem>>, vector<8x512xf32>
    %c0_1 = arith.constant 0 : index
    %c0_2 = arith.constant 0 : index
    %1 = vector.load %arg2[%c0_1, %c0_2] : memref<8x512xf32, #tpu.memory_space<vmem>>, vector<8x512xf32>
    %2 = arith.mulf %0, %0 : vector<8x512xf32>
    %cst = arith.constant dense<0.000000e+00> : vector<8xf32>
    %3 = vector.multi_reduction <add>, %2, %cst [1] : vector<8x512xf32> to vector<8xf32>
    %4 = vector.shape_cast %3 : vector<8xf32> to vector<8x1xf32>
    %5 = math.rsqrt %4 : vector<8x1xf32>
    %6 = vector.broadcast %5 : vector<8x1xf32> to vector<8x512xf32>
    %7 = arith.mulf %0, %6 : vector<8x512xf32>
    %8 = arith.mulf %1, %1 : vector<8x512xf32>
    %cst_3 = arith.constant dense<0.000000e+00> : vector<8xf32>
    %9 = vector.multi_reduction <add>, %8, %cst_3 [1] : vector<8x512xf32> to vector<8xf32>
    %10 = vector.shape_cast %9 : vector<8xf32> to vector<8x1xf32>
    %11 = math.rsqrt %10 : vector<8x1xf32>
    %12 = vector.broadcast %11 : vector<8x1xf32> to vector<8x512xf32>
    %13 = arith.mulf %1, %12 : vector<8x512xf32>
    %c0_4 = arith.constant 0 : index
    %c0_5 = arith.constant 0 : index
    %14 = vector.load %arg3[%c0_4, %c0_5] : memref<1x512xf32, #tpu.memory_space<vmem>>, vector<1x512xf32>
    %c0_6 = arith.constant 0 : index
    %c0_7 = arith.constant 0 : index
    %15 = vector.load %arg4[%c0_6, %c0_7] : memref<1x512xf32, #tpu.memory_space<vmem>>, vector<1x512xf32>
    %cst_8 = arith.constant dense<0.000000e+00> : vector<8xf32>
    %16 = vector.multi_reduction <add>, %7, %cst_8 [1] : vector<8x512xf32> to vector<8xf32>
    %17 = vector.shape_cast %16 : vector<8xf32> to vector<8x1xf32>
    %cst_9 = arith.constant 5.120000e+02 : f32
    %18 = vector.broadcast %cst_9 : f32 to vector<8x1xf32>
    %19 = arith.divf %17, %18 : vector<8x1xf32>
    %20 = vector.broadcast %19 : vector<8x1xf32> to vector<8x512xf32>
    %21 = arith.subf %7, %20 : vector<8x512xf32>
    %22 = vector.broadcast %19 : vector<8x1xf32> to vector<8x512xf32>
    %23 = arith.subf %7, %22 : vector<8x512xf32>
    %24 = arith.mulf %21, %23 : vector<8x512xf32>
    %cst_10 = arith.constant dense<0.000000e+00> : vector<8xf32>
    %25 = vector.multi_reduction <add>, %24, %cst_10 [1] : vector<8x512xf32> to vector<8xf32>
    %26 = vector.shape_cast %25 : vector<8xf32> to vector<8x1xf32>
    %cst_11 = arith.constant 5.120000e+02 : f32
    %27 = vector.broadcast %cst_11 : f32 to vector<8x1xf32>
    %28 = arith.divf %26, %27 : vector<8x1xf32>
    %29 = vector.broadcast %19 : vector<8x1xf32> to vector<8x512xf32>
    %30 = arith.subf %7, %29 : vector<8x512xf32>
    %cst_12 = arith.constant 9.99999974E-6 : f32
    %31 = vector.broadcast %cst_12 : f32 to vector<8x1xf32>
    %32 = arith.addf %28, %31 : vector<8x1xf32>
    %33 = math.rsqrt %32 : vector<8x1xf32>
    %34 = vector.broadcast %33 : vector<8x1xf32> to vector<8x512xf32>
    %35 = arith.mulf %30, %34 : vector<8x512xf32>
    %36 = vector.broadcast %14 : vector<1x512xf32> to vector<8x512xf32>
    %37 = arith.mulf %35, %36 : vector<8x512xf32>
    %38 = vector.broadcast %15 : vector<1x512xf32> to vector<8x512xf32>
    %39 = arith.addf %37, %38 : vector<8x512xf32>
    %c0_13 = arith.constant 0 : index
    %c0_14 = arith.constant 0 : index
    %40 = vector.load %arg5[%c0_13, %c0_14] : memref<1x512xf32, #tpu.memory_space<vmem>>, vector<1x512xf32>
    %c0_15 = arith.constant 0 : index
    %c0_16 = arith.constant 0 : index
    %41 = vector.load %arg6[%c0_15, %c0_16] : memref<1x512xf32, #tpu.memory_space<vmem>>, vector<1x512xf32>
    %cst_17 = arith.constant dense<0.000000e+00> : vector<8xf32>
    %42 = vector.multi_reduction <add>, %13, %cst_17 [1] : vector<8x512xf32> to vector<8xf32>
    %43 = vector.shape_cast %42 : vector<8xf32> to vector<8x1xf32>
    %cst_18 = arith.constant 5.120000e+02 : f32
    %44 = vector.broadcast %cst_18 : f32 to vector<8x1xf32>
    %45 = arith.divf %43, %44 : vector<8x1xf32>
    %46 = vector.broadcast %45 : vector<8x1xf32> to vector<8x512xf32>
    %47 = arith.subf %13, %46 : vector<8x512xf32>
    %48 = vector.broadcast %45 : vector<8x1xf32> to vector<8x512xf32>
    %49 = arith.subf %13, %48 : vector<8x512xf32>
    %50 = arith.mulf %47, %49 : vector<8x512xf32>
    %cst_19 = arith.constant dense<0.000000e+00> : vector<8xf32>
    %51 = vector.multi_reduction <add>, %50, %cst_19 [1] : vector<8x512xf32> to vector<8xf32>
    %52 = vector.shape_cast %51 : vector<8xf32> to vector<8x1xf32>
    %cst_20 = arith.constant 5.120000e+02 : f32
    %53 = vector.broadcast %cst_20 : f32 to vector<8x1xf32>
    %54 = arith.divf %52, %53 : vector<8x1xf32>
    %55 = vector.broadcast %45 : vector<8x1xf32> to vector<8x512xf32>
    %56 = arith.subf %13, %55 : vector<8x512xf32>
    %cst_21 = arith.constant 9.99999974E-6 : f32
    %57 = vector.broadcast %cst_21 : f32 to vector<8x1xf32>
    %58 = arith.addf %54, %57 : vector<8x1xf32>
    %59 = math.rsqrt %58 : vector<8x1xf32>
    %60 = vector.broadcast %59 : vector<8x1xf32> to vector<8x512xf32>
    %61 = arith.mulf %56, %60 : vector<8x512xf32>
    %62 = vector.broadcast %40 : vector<1x512xf32> to vector<8x512xf32>
    %63 = arith.mulf %61, %62 : vector<8x512xf32>
    %64 = vector.broadcast %41 : vector<1x512xf32> to vector<8x512xf32>
    %65 = arith.addf %63, %64 : vector<8x512xf32>
    %c0_22 = arith.constant 0 : index
    %c0_23 = arith.constant 0 : index
    %66 = vector.load %arg18[%c0_22, %c0_23] : memref<8x512xf32, #tpu.memory_space<vmem>>, vector<8x512xf32>
    tpu.vector_store %arg18[%c0_22, %c0_23], %39 {strides = array<i32>} : memref<8x512xf32, #tpu.memory_space<vmem>>, vector<8x512xf32>,
    %c0_24 = arith.constant 0 : index
    %c0_25 = arith.constant 0 : index
    %67 = vector.load %arg19[%c0_24, %c0_25] : memref<8x512xf32, #tpu.memory_space<vmem>>, vector<8x512xf32>
    tpu.vector_store %arg19[%c0_24, %c0_25], %65 {strides = array<i32>} : memref<8x512xf32, #tpu.memory_space<vmem>>, vector<8x512xf32>,
    %68 = arith.truncf %39 : vector<8x512xf32> to vector<8x512xbf16>
    %69 = arith.truncf %65 : vector<8x512xf32> to vector<8x512xbf16>
    %c0_26 = arith.constant 0 : index
    %c0_27 = arith.constant 0 : index
    %70 = vector.load %arg7[%c0_26, %c0_27] : memref<512x1024xbf16, #tpu.memory_space<vmem>>, vector<512x1024xbf16>
    %cst_28 = arith.constant dense<0.000000e+00> : vector<8x1024xf32>
    %71 = tpu.matmul %68, %70, %cst_28 {dimension_numbers = #tpu.dot_dimension_numbers<[1], [0], [0], [1], [0, 0, 1, 1], [], []>} : vector<8x512xbf16>, vector<512x1024xbf16>, vector<8x1024xf32> -> vector<8x1024xf32>
    %c0_29 = arith.constant 0 : index
    %c0_30 = arith.constant 0 : index
    %72 = vector.load %arg8[%c0_29, %c0_30] : memref<512x1024xbf16, #tpu.memory_space<vmem>>, vector<512x1024xbf16>
    %cst_31 = arith.constant dense<0.000000e+00> : vector<8x1024xf32>
    %73 = tpu.matmul %69, %72, %cst_31 {dimension_numbers = #tpu.dot_dimension_numbers<[1], [0], [0], [1], [0, 0, 1, 1], [], []>} : vector<8x512xbf16>, vector<512x1024xbf16>, vector<8x1024xf32> -> vector<8x1024xf32>
    %74 = arith.addf %71, %73 : vector<8x1024xf32>
    %c0_32 = arith.constant 0 : index
    %c0_33 = arith.constant 0 : index
    %75 = vector.load %arg9[%c0_32, %c0_33] : memref<1x1024xf32, #tpu.memory_space<vmem>>, vector<1x1024xf32>
    %76 = vector.broadcast %75 : vector<1x1024xf32> to vector<8x1024xf32>
    %77 = arith.addf %74, %76 : vector<8x1024xf32>
    %c0_34 = arith.constant 0 : index
    %c0_35 = arith.constant 0 : index
    %78 = vector.load %arg10[%c0_34, %c0_35] : memref<1x1024xf32, #tpu.memory_space<vmem>>, vector<1x1024xf32>
    %c0_36 = arith.constant 0 : index
    %c0_37 = arith.constant 0 : index
    %79 = vector.load %arg11[%c0_36, %c0_37] : memref<1x1024xf32, #tpu.memory_space<vmem>>, vector<1x1024xf32>
    %cst_38 = arith.constant dense<0.000000e+00> : vector<8xf32>
    %80 = vector.multi_reduction <add>, %77, %cst_38 [1] : vector<8x1024xf32> to vector<8xf32>
    %81 = vector.shape_cast %80 : vector<8xf32> to vector<8x1xf32>
    %cst_39 = arith.constant 1.024000e+03 : f32
    %82 = vector.broadcast %cst_39 : f32 to vector<8x1xf32>
    %83 = arith.divf %81, %82 : vector<8x1xf32>
    %84 = vector.broadcast %83 : vector<8x1xf32> to vector<8x1024xf32>
    %85 = arith.subf %77, %84 : vector<8x1024xf32>
    %86 = vector.broadcast %83 : vector<8x1xf32> to vector<8x1024xf32>
    %87 = arith.subf %77, %86 : vector<8x1024xf32>
    %88 = arith.mulf %85, %87 : vector<8x1024xf32>
    %cst_40 = arith.constant dense<0.000000e+00> : vector<8xf32>
    %89 = vector.multi_reduction <add>, %88, %cst_40 [1] : vector<8x1024xf32> to vector<8xf32>
    %90 = vector.shape_cast %89 : vector<8xf32> to vector<8x1xf32>
    %cst_41 = arith.constant 1.024000e+03 : f32
    %91 = vector.broadcast %cst_41 : f32 to vector<8x1xf32>
    %92 = arith.divf %90, %91 : vector<8x1xf32>
    %93 = vector.broadcast %83 : vector<8x1xf32> to vector<8x1024xf32>
    %94 = arith.subf %77, %93 : vector<8x1024xf32>
    %cst_42 = arith.constant 9.99999974E-6 : f32
    %95 = vector.broadcast %cst_42 : f32 to vector<8x1xf32>
    %96 = arith.addf %92, %95 : vector<8x1xf32>
    %97 = math.rsqrt %96 : vector<8x1xf32>
    %98 = vector.broadcast %97 : vector<8x1xf32> to vector<8x1024xf32>
    %99 = arith.mulf %94, %98 : vector<8x1024xf32>
    %100 = vector.broadcast %78 : vector<1x1024xf32> to vector<8x1024xf32>
    %101 = arith.mulf %99, %100 : vector<8x1024xf32>
    %102 = vector.broadcast %79 : vector<1x1024xf32> to vector<8x1024xf32>
    %103 = arith.addf %101, %102 : vector<8x1024xf32>
    %cst_43 = arith.constant 0.000000e+00 : f32
    %104 = vector.broadcast %cst_43 : f32 to vector<8x1024xf32>
    %105 = arith.maximumf %103, %104 : vector<8x1024xf32>
    %106 = arith.truncf %105 : vector<8x1024xf32> to vector<8x1024xbf16>
    %c0_44 = arith.constant 0 : index
    %c0_45 = arith.constant 0 : index
    %107 = vector.load %arg12[%c0_44, %c0_45] : memref<1024x512xbf16, #tpu.memory_space<vmem>>, vector<1024x512xbf16>
    %cst_46 = arith.constant dense<0.000000e+00> : vector<8x512xf32>
    %108 = tpu.matmul %106, %107, %cst_46 {dimension_numbers = #tpu.dot_dimension_numbers<[1], [0], [0], [1], [0, 0, 1, 1], [], []>} : vector<8x1024xbf16>, vector<1024x512xbf16>, vector<8x512xf32> -> vector<8x512xf32>
    %c0_47 = arith.constant 0 : index
    %c0_48 = arith.constant 0 : index
    %109 = vector.load %arg13[%c0_47, %c0_48] : memref<1x512xf32, #tpu.memory_space<vmem>>, vector<1x512xf32>
    %110 = vector.broadcast %109 : vector<1x512xf32> to vector<8x512xf32>
    %111 = arith.addf %108, %110 : vector<8x512xf32>
    %c0_49 = arith.constant 0 : index
    %c0_50 = arith.constant 0 : index
    %112 = vector.load %arg14[%c0_49, %c0_50] : memref<1x512xf32, #tpu.memory_space<vmem>>, vector<1x512xf32>
    %c0_51 = arith.constant 0 : index
    %c0_52 = arith.constant 0 : index
    %113 = vector.load %arg15[%c0_51, %c0_52] : memref<1x512xf32, #tpu.memory_space<vmem>>, vector<1x512xf32>
    %cst_53 = arith.constant dense<0.000000e+00> : vector<8xf32>
    %114 = vector.multi_reduction <add>, %111, %cst_53 [1] : vector<8x512xf32> to vector<8xf32>
    %115 = vector.shape_cast %114 : vector<8xf32> to vector<8x1xf32>
    %cst_54 = arith.constant 5.120000e+02 : f32
    %116 = vector.broadcast %cst_54 : f32 to vector<8x1xf32>
    %117 = arith.divf %115, %116 : vector<8x1xf32>
    %118 = vector.broadcast %117 : vector<8x1xf32> to vector<8x512xf32>
    %119 = arith.subf %111, %118 : vector<8x512xf32>
    %120 = vector.broadcast %117 : vector<8x1xf32> to vector<8x512xf32>
    %121 = arith.subf %111, %120 : vector<8x512xf32>
    %122 = arith.mulf %119, %121 : vector<8x512xf32>
    %cst_55 = arith.constant dense<0.000000e+00> : vector<8xf32>
    %123 = vector.multi_reduction <add>, %122, %cst_55 [1] : vector<8x512xf32> to vector<8xf32>
    %124 = vector.shape_cast %123 : vector<8xf32> to vector<8x1xf32>
    %cst_56 = arith.constant 5.120000e+02 : f32
    %125 = vector.broadcast %cst_56 : f32 to vector<8x1xf32>
    %126 = arith.divf %124, %125 : vector<8x1xf32>
    %127 = vector.broadcast %117 : vector<8x1xf32> to vector<8x512xf32>
    %128 = arith.subf %111, %127 : vector<8x512xf32>
    %cst_57 = arith.constant 9.99999974E-6 : f32
    %129 = vector.broadcast %cst_57 : f32 to vector<8x1xf32>
    %130 = arith.addf %126, %129 : vector<8x1xf32>
    %131 = math.rsqrt %130 : vector<8x1xf32>
    %132 = vector.broadcast %131 : vector<8x1xf32> to vector<8x512xf32>
    %133 = arith.mulf %128, %132 : vector<8x512xf32>
    %134 = vector.broadcast %112 : vector<1x512xf32> to vector<8x512xf32>
    %135 = arith.mulf %133, %134 : vector<8x512xf32>
    %136 = vector.broadcast %113 : vector<1x512xf32> to vector<8x512xf32>
    %137 = arith.addf %135, %136 : vector<8x512xf32>
    %cst_58 = arith.constant 0.000000e+00 : f32
    %138 = vector.broadcast %cst_58 : f32 to vector<8x512xf32>
    %139 = arith.maximumf %137, %138 : vector<8x512xf32>
    %140 = arith.truncf %139 : vector<8x512xf32> to vector<8x512xbf16>
    %141 = tpu.concatenate %140, %68, %69 in 1 : vector<8x512xbf16>, vector<8x512xbf16>, vector<8x512xbf16> -> vector<8x1536xbf16>
    %c0_59 = arith.constant 0 : index
    %c0_60 = arith.constant 0 : index
    %142 = vector.load %arg16[%c0_59, %c0_60] : memref<1536x128xbf16, #tpu.memory_space<vmem>>, vector<1536x128xbf16>
    %cst_61 = arith.constant dense<0.000000e+00> : vector<8x128xf32>
    %143 = tpu.matmul %141, %142, %cst_61 {dimension_numbers = #tpu.dot_dimension_numbers<[1], [0], [0], [1], [0, 0, 1, 1], [], []>} : vector<8x1536xbf16>, vector<1536x128xbf16>, vector<8x128xf32> -> vector<8x128xf32>
    %c0_62 = arith.constant 0 : index
    %c0_63 = arith.constant 0 : index
    %144 = vector.load %arg17[%c0_62, %c0_63] : memref<1x128xf32, #tpu.memory_space<vmem>>, vector<1x128xf32>
    %145 = vector.broadcast %144 : vector<1x128xf32> to vector<8x128xf32>
    %146 = arith.addf %143, %145 : vector<8x128xf32>
    %c0_64 = arith.constant 0 : index
    %c0_65 = arith.constant 0 : index
    %147 = vector.load %arg20[%c0_64, %c0_65] : memref<8x128xf32, #tpu.memory_space<vmem>>, vector<8x128xf32>
    tpu.vector_store %arg20[%c0_64, %c0_65], %146 {strides = array<i32>} : memref<8x128xf32, #tpu.memory_space<vmem>>, vector<8x128xf32>,
    return
  }
  func.func @transform_0(%arg0: i32) -> (i32, i32) {
    %c0_i32 = arith.constant 0 : i32
    %c0_i32_0 = arith.constant 0 : i32
    return %arg0, %c0_i32 : i32, i32
  }
  func.func @transform_1(%arg0: i32) -> (i32, i32) {
    %c0_i32 = arith.constant 0 : i32
    %c0_i32_0 = arith.constant 0 : i32
    return %arg0, %c0_i32 : i32, i32
  }
  func.func @transform_2(%arg0: i32) -> (i32, i32) {
    %c0_i32 = arith.constant 0 : i32
    %c0_i32_0 = arith.constant 0 : i32
    %c0_i32_1 = arith.constant 0 : i32
    return %c0_i32, %c0_i32_0 : i32, i32
  }
  func.func @transform_3(%arg0: i32) -> (i32, i32) {
    %c0_i32 = arith.constant 0 : i32
    %c0_i32_0 = arith.constant 0 : i32
    %c0_i32_1 = arith.constant 0 : i32
    return %c0_i32, %c0_i32_0 : i32, i32
  }
  func.func @transform_4(%arg0: i32) -> (i32, i32) {
    %c0_i32 = arith.constant 0 : i32
    %c0_i32_0 = arith.constant 0 : i32
    %c0_i32_1 = arith.constant 0 : i32
    return %c0_i32, %c0_i32_0 : i32, i32
  }
  func.func @transform_5(%arg0: i32) -> (i32, i32) {
    %c0_i32 = arith.constant 0 : i32
    %c0_i32_0 = arith.constant 0 : i32
    %c0_i32_1 = arith.constant 0 : i32
    return %c0_i32, %c0_i32_0 : i32, i32
  }
  func.func @transform_6(%arg0: i32) -> (i32, i32) {
    %c0_i32 = arith.constant 0 : i32
    %c0_i32_0 = arith.constant 0 : i32
    %c0_i32_1 = arith.constant 0 : i32
    return %c0_i32, %c0_i32_0 : i32, i32
  }
  func.func @transform_7(%arg0: i32) -> (i32, i32) {
    %c0_i32 = arith.constant 0 : i32
    %c0_i32_0 = arith.constant 0 : i32
    %c0_i32_1 = arith.constant 0 : i32
    return %c0_i32, %c0_i32_0 : i32, i32
  }
  func.func @transform_8(%arg0: i32) -> (i32, i32) {
    %c0_i32 = arith.constant 0 : i32
    %c0_i32_0 = arith.constant 0 : i32
    %c0_i32_1 = arith.constant 0 : i32
    return %c0_i32, %c0_i32_0 : i32, i32
  }
  func.func @transform_9(%arg0: i32) -> (i32, i32) {
    %c0_i32 = arith.constant 0 : i32
    %c0_i32_0 = arith.constant 0 : i32
    %c0_i32_1 = arith.constant 0 : i32
    return %c0_i32, %c0_i32_0 : i32, i32
  }
  func.func @transform_10(%arg0: i32) -> (i32, i32) {
    %c0_i32 = arith.constant 0 : i32
    %c0_i32_0 = arith.constant 0 : i32
    %c0_i32_1 = arith.constant 0 : i32
    return %c0_i32, %c0_i32_0 : i32, i32
  }
  func.func @transform_11(%arg0: i32) -> (i32, i32) {
    %c0_i32 = arith.constant 0 : i32
    %c0_i32_0 = arith.constant 0 : i32
    %c0_i32_1 = arith.constant 0 : i32
    return %c0_i32, %c0_i32_0 : i32, i32
  }
  func.func @transform_12(%arg0: i32) -> (i32, i32) {
    %c0_i32 = arith.constant 0 : i32
    %c0_i32_0 = arith.constant 0 : i32
    %c0_i32_1 = arith.constant 0 : i32
    return %c0_i32, %c0_i32_0 : i32, i32
  }
  func.func @transform_13(%arg0: i32) -> (i32, i32) {
    %c0_i32 = arith.constant 0 : i32
    %c0_i32_0 = arith.constant 0 : i32
    %c0_i32_1 = arith.constant 0 : i32
    return %c0_i32, %c0_i32_0 : i32, i32
  }
  func.func @transform_14(%arg0: i32) -> (i32, i32) {
    %c0_i32 = arith.constant 0 : i32
    %c0_i32_0 = arith.constant 0 : i32
    %c0_i32_1 = arith.constant 0 : i32
    return %c0_i32, %c0_i32_0 : i32, i32
  }
  func.func @transform_15(%arg0: i32) -> (i32, i32) {
    %c0_i32 = arith.constant 0 : i32
    %c0_i32_0 = arith.constant 0 : i32
    %c0_i32_1 = arith.constant 0 : i32
    return %c0_i32, %c0_i32_0 : i32, i32
  }
  func.func @transform_16(%arg0: i32) -> (i32, i32) {
    %c0_i32 = arith.constant 0 : i32
    %c0_i32_0 = arith.constant 0 : i32
    %c0_i32_1 = arith.constant 0 : i32
    return %c0_i32, %c0_i32_0 : i32, i32
  }
  func.func @transform_17(%arg0: i32) -> (i32, i32) {
    %c0_i32 = arith.constant 0 : i32
    %c0_i32_0 = arith.constant 0 : i32
    return %arg0, %c0_i32 : i32, i32
  }
  func.func @transform_18(%arg0: i32) -> (i32, i32) {
    %c0_i32 = arith.constant 0 : i32
    %c0_i32_0 = arith.constant 0 : i32
    return %arg0, %c0_i32 : i32, i32
  }
  func.func @transform_19(%arg0: i32) -> (i32, i32) {
    %c0_i32 = arith.constant 0 : i32
    %c0_i32_0 = arith.constant 0 : i32
    return %arg0, %c0_i32 : i32, i32
  }
}

</mosaic_0001>

<llo_original>
// kernel: clip_finetuner_head.1
$region0: #{clip_finetuner_head.1}
  #allocation0 [shape = 'u32[]', space=smem, size = 0x4, offset = 0x4, fixed_abs, tag = 'smem constant byte address 0x4 - core index']
  #allocation1 [shape = 'u32[144,128]{1,0:T(1,128)}', space=vmem, size = 0x12000, scoped, tag = 'internal scratch']
  %s0 = inlined_call_operand.vmem [shape: f32[8,512], index: 0, kind: input, shape index: {}]
  %s1 = inlined_call_operand.vmem [shape: f32[8,512], index: 1, kind: input, shape index: {}]
  %s2 = inlined_call_operand.vmem [shape: f32[1,512], index: 2, kind: input, shape index: {}]
  %s3 = inlined_call_operand.vmem [shape: f32[1,512], index: 3, kind: input, shape index: {}]
  %s4 = inlined_call_operand.vmem [shape: f32[1,512], index: 4, kind: input, shape index: {}]
  %s5 = inlined_call_operand.vmem [shape: f32[1,512], index: 5, kind: input, shape index: {}]
  %s6 = inlined_call_operand.vmem [shape: bf16[512,1024], index: 6, kind: input, shape index: {}]
  %s7 = inlined_call_operand.vmem [shape: bf16[512,1024], index: 7, kind: input, shape index: {}]
  %s8 = inlined_call_operand.vmem [shape: f32[1,1024], index: 8, kind: input, shape index: {}]
  %s9 = inlined_call_operand.vmem [shape: f32[1,1024], index: 9, kind: input, shape index: {}]
  %s10 = inlined_call_operand.vmem [shape: f32[1,1024], index: 10, kind: input, shape index: {}]
  %s11 = inlined_call_operand.vmem [shape: bf16[1024,512], index: 11, kind: input, shape index: {}]
  %s12 = inlined_call_operand.vmem [shape: f32[1,512], index: 12, kind: input, shape index: {}]
  %s13 = inlined_call_operand.vmem [shape: f32[1,512], index: 13, kind: input, shape index: {}]
  %s14 = inlined_call_operand.vmem [shape: f32[1,512], index: 14, kind: input, shape index: {}]
  %s15 = inlined_call_operand.vmem [shape: bf16[1536,128], index: 15, kind: input, shape index: {}]
  %s16 = inlined_call_operand.vmem [shape: f32[1,128], index: 16, kind: input, shape index: {}]
  %s17 = inlined_call_operand.vmem [shape: f32[8,512], index: 17, kind: output, shape index: {0}]
  %s18 = inlined_call_operand.vmem [shape: f32[8,512], index: 18, kind: output, shape index: {1}]
  %s19 = inlined_call_operand.vmem [shape: f32[8,128], index: 19, kind: output, shape index: {2}]
  %20 = xla_tuple %s17, %s18, %s19
  %s21 = sld [smem:[#allocation0]]
  $region94: #{clip_finetuner_head.1} parent=0
    _
  %s23 = ssub.s32 1, %s21
  %s24 = scalar_select 0, %s23, %s21
  // Predicated region
  $region2: #{clip_finetuner_head.1} parent=0 // pred_check
    _
  $region3: #{clip_finetuner_head.1} parent=0 // pred_check_branch
    %26 = sbr.rel (0) target = $region5
  $region4: #{clip_finetuner_head.1} parent=0 // pred_region
    _
  $region5: #{clip_finetuner_head.1} parent=0 // pred_fallthru
    _
  // Predicated region
  $region6: #{clip_finetuner_head.1} parent=0 // pred_check
    _
  $region7: #{clip_finetuner_head.1} parent=0 // pred_check_branch
    %28 = sbr.rel (0) target = $region9
  $region8: #{clip_finetuner_head.1} parent=0 // pred_region
    _
  $region9: #{clip_finetuner_head.1} parent=0 // pred_fallthru
    _
  // Predicated region
  $region10: #{clip_finetuner_head.1} parent=0 // pred_check
    _
  $region11: #{clip_finetuner_head.1} parent=0 // pred_check_branch
    %30 = sbr.rel (0) target = $region13
  $region12: #{clip_finetuner_head.1} parent=0 // pred_region
    _
  $region13: #{clip_finetuner_head.1} parent=0 // pred_fallthru
    _
  // Predicated region
  $region14: #{clip_finetuner_head.1} parent=0 // pred_check
    _
  $region15: #{clip_finetuner_head.1} parent=0 // pred_check_branch
    %32 = sbr.rel (0) target = $region17
  $region16: #{clip_finetuner_head.1} parent=0 // pred_region
    _
  $region17: #{clip_finetuner_head.1} parent=0 // pred_fallthru
    _
  // Predicated region
  $region18: #{clip_finetuner_head.1} parent=0 // pred_check
    _
  $region19: #{clip_finetuner_head.1} parent=0 // pred_check_branch
    %34 = sbr.rel (0) target = $region21
  $region20: #{clip_finetuner_head.1} parent=0 // pred_region
    _
  $region21: #{clip_finetuner_head.1} parent=0 // pred_fallthru
    _
  // Predicated region
  $region22: #{clip_finetuner_head.1} parent=0 // pred_check
    _
  $region23: #{clip_finetuner_head.1} parent=0 // pred_check_branch
    %36 = sbr.rel (0) target = $region25
  $region24: #{clip_finetuner_head.1} parent=0 // pred_region
    _
  $region25: #{clip_finetuner_head.1} parent=0 // pred_fallthru
    _
  // Predicated region
  $region26: #{clip_finetuner_head.1} parent=0 // pred_check
    _
  $region27: #{clip_finetuner_head.1} parent=0 // pred_check_branch
    %38 = sbr.rel (0) target = $region29
  $region28: #{clip_finetuner_head.1} parent=0 // pred_region
    _
  $region29: #{clip_finetuner_head.1} parent=0 // pred_fallthru
    _
  // Predicated region
  $region30: #{clip_finetuner_head.1} parent=0 // pred_check
    _
  $region31: #{clip_finetuner_head.1} parent=0 // pred_check_branch
    %40 = sbr.rel (0) target = $region33
  $region32: #{clip_finetuner_head.1} parent=0 // pred_region
    _
  $region33: #{clip_finetuner_head.1} parent=0 // pred_fallthru
    _
  // Predicated region
  $region34: #{clip_finetuner_head.1} parent=0 // pred_check
    _
  $region35: #{clip_finetuner_head.1} parent=0 // pred_check_branch
    %42 = sbr.rel (0) target = $region37
  $region36: #{clip_finetuner_head.1} parent=0 // pred_region
    _
  $region37: #{clip_finetuner_head.1} parent=0 // pred_fallthru
    _
  // Predicated region
  $region38: #{clip_finetuner_head.1} parent=0 // pred_check
    _
  $region39: #{clip_finetuner_head.1} parent=0 // pred_check_branch
    %44 = sbr.rel (0) target = $region41
  $region40: #{clip_finetuner_head.1} parent=0 // pred_region
    _
  $region41: #{clip_finetuner_head.1} parent=0 // pred_fallthru
    _
  // Predicated region
  $region42: #{clip_finetuner_head.1} parent=0 // pred_check
    _
  $region43: #{clip_finetuner_head.1} parent=0 // pred_check_branch
    %46 = sbr.rel (0) target = $region45
  $region44: #{clip_finetuner_head.1} parent=0 // pred_region
    _
  $region45: #{clip_finetuner_head.1} parent=0 // pred_fallthru
    _
  // Predicated region
  $region46: #{clip_finetuner_head.1} parent=0 // pred_check
    _
  $region47: #{clip_finetuner_head.1} parent=0 // pred_check_branch
    %48 = sbr.rel (0) target = $region49
  $region48: #{clip_finetuner_head.1} parent=0 // pred_region
    _
  $region49: #{clip_finetuner_head.1} parent=0 // pred_fallthru
    _
  // Predicated region
  $region50: #{clip_finetuner_head.1} parent=0 // pred_check
    _
  $region51: #{clip_finetuner_head.1} parent=0 // pred_check_branch
    %50 = sbr.rel (0) target = $region53
  $region52: #{clip_finetuner_head.1} parent=0 // pred_region
    _
  $region53: #{clip_finetuner_head.1} parent=0 // pred_fallthru
    _
  // Predicated region
  $region54: #{clip_finetuner_head.1} parent=0 // pred_check
    _
  $region55: #{clip_finetuner_head.1} parent=0 // pred_check_branch
    %52 = sbr.rel (0) target = $region57
  $region56: #{clip_finetuner_head.1} parent=0 // pred_region
    _
  $region57: #{clip_finetuner_head.1} parent=0 // pred_fallthru
    _
  // Predicated region
  $region58: #{clip_finetuner_head.1} parent=0 // pred_check
    _
  $region59: #{clip_finetuner_head.1} parent=0 // pred_check_branch
    %54 = sbr.rel (0) target = $region61
  $region60: #{clip_finetuner_head.1} parent=0 // pred_region
    _
  $region61: #{clip_finetuner_head.1} parent=0 // pred_fallthru
    _
  // Predicated region
  $region62: #{clip_finetuner_head.1} parent=0 // pred_check
    _
  $region63: #{clip_finetuner_head.1} parent=0 // pred_check_branch
    %56 = sbr.rel (0) target = $region65
  $region64: #{clip_finetuner_head.1} parent=0 // pred_region
    _
  $region65: #{clip_finetuner_head.1} parent=0 // pred_fallthru
    _
  // Predicated region
  $region66: #{clip_finetuner_head.1} parent=0 // pred_check
    _
  $region67: #{clip_finetuner_head.1} parent=0 // pred_check_branch
    %58 = sbr.rel (0) target = $region69
  $region68: #{clip_finetuner_head.1} parent=0 // pred_region
    _
  $region69: #{clip_finetuner_head.1} parent=0 // pred_fallthru
    _
  %v60 = vld [vmem:[%s0] sm:$0xff]
  %v61 = vld [vmem:[%s0 + $0x8] sm:$0xff]
  %v62 = vld [vmem:[%s0 + $0x10] sm:$0xff]
  %v63 = vld [vmem:[%s0 + $0x18] sm:$0xff]
  %v64 = vld [vmem:[%s1] sm:$0xff]
  %v65 = vld [vmem:[%s1 + $0x8] sm:$0xff]
  %v66 = vld [vmem:[%s1 + $0x10] sm:$0xff]
  %v67 = vld [vmem:[%s1 + $0x18] sm:$0xff]
  %v68 = vmul.f32 %v60, %v60
  %v69 = vmul.f32 %v61, %v61
  %v70 = vmul.f32 %v62, %v62
  %v71 = vmul.f32 %v63, %v63
  %v72 = vadd.f32 %v68, %v69
  %v73 = vadd.f32 %v72, %v70
  %v74 = vadd.f32 %v73, %v71
  %75 = vadd.xlane.f32.xlu0 %v74
  %v76 = vpop.xlane.xlu0 %75
  %v77 = vrsqrt.pop %v76
  %v78 = vmul.f32 %v60, %v77
  %v79 = vmul.f32 %v61, %v77
  %v80 = vmul.f32 %v62, %v77
  %v81 = vmul.f32 %v63, %v77
  %v82 = vmul.f32 %v64, %v64
  %v83 = vmul.f32 %v65, %v65
  %v84 = vmul.f32 %v66, %v66
  %v85 = vmul.f32 %v67, %v67
  %v86 = vadd.f32 %v82, %v83
  %v87 = vadd.f32 %v86, %v84
  %v88 = vadd.f32 %v87, %v85
  %89 = vadd.xlane.f32.xlu0 %v88
  %v90 = vpop.xlane.xlu0 %89
  %v91 = vrsqrt.pop %v90
  %v92 = vmul.f32 %v64, %v91
  %v93 = vmul.f32 %v65, %v91
  %v94 = vmul.f32 %v66, %v91
  %v95 = vmul.f32 %v67, %v91
  %v96 = vld [vmem:[%s2] sm:$0xf]
  %v97 = vld [vmem:[%s3] sm:$0xf]
  %v98 = vadd.f32 %v78, %v79
  %v99 = vadd.f32 %v98, %v80
  %v100 = vadd.f32 %v99, %v81
  %101 = vadd.xlane.f32.xlu0 %v100
  %v102 = vpop.xlane.xlu0 %101
  %v103 = vrcp.pop 512.0
  %v104 = vmul.f32 %v102, %v103
  %v105 = vsub.f32 %v78, %v104
  %v106 = vsub.f32 %v79, %v104
  %v107 = vsub.f32 %v80, %v104
  %v108 = vsub.f32 %v81, %v104
  %v109 = vmul.f32 %v105, %v105
  %v110 = vmul.f32 %v106, %v106
  %v111 = vmul.f32 %v107, %v107
  %v112 = vmul.f32 %v108, %v108
  %v113 = vadd.f32 %v109, %v110
  %v114 = vadd.f32 %v113, %v111
  %v115 = vadd.f32 %v114, %v112
  %116 = vadd.xlane.f32.xlu0 %v115
  %v117 = vpop.xlane.xlu0 %116
  %v118 = vmul.f32 %v117, %v103
  %v119 = vadd.f32 %v118, 1e-05
  %v120 = vrsqrt.pop %v119
  %v121 = vmul.f32 %v105, %v120
  %v122 = vmul.f32 %v106, %v120
  %v123 = vmul.f32 %v107, %v120
  %v124 = vmul.f32 %v108, %v120
  %v126 = vlaneseq
  %v127 = vshrl.u32 %v126, 7
  %v128 = vsub.s32 0, %v127
  %v129 = vrot.slane %v96, %v128
  %v130 = vlaneseq
  %v131 = vshrl.u32 %v130, 7
  %v132 = vsub.s32 1, %v131
  %v133 = vrot.slane %v96, %v132
  %v134 = vlaneseq
  %v135 = vshrl.u32 %v134, 7
  %v136 = vsub.s32 2, %v135
  %v137 = vrot.slane %v96, %v136
  %v138 = vlaneseq
  %v139 = vshrl.u32 %v138, 7
  %v140 = vsub.s32 3, %v139
  %v141 = vrot.slane %v96, %v140
  %v146 = vmul.f32 %v121, %v129
  %v147 = vmul.f32 %v122, %v133
  %v148 = vmul.f32 %v123, %v137
  %v149 = vmul.f32 %v124, %v141
  %v151 = vlaneseq
  %v152 = vshrl.u32 %v151, 7
  %v153 = vsub.s32 0, %v152
  %v154 = vrot.slane %v97, %v153
  %v155 = vlaneseq
  %v156 = vshrl.u32 %v155, 7
  %v157 = vsub.s32 1, %v156
  %v158 = vrot.slane %v97, %v157
  %v159 = vlaneseq
  %v160 = vshrl.u32 %v159, 7
  %v161 = vsub.s32 2, %v160
  %v162 = vrot.slane %v97, %v161
  %v163 = vlaneseq
  %v164 = vshrl.u32 %v163, 7
  %v165 = vsub.s32 3, %v164
  %v166 = vrot.slane %v97, %v165
  %v171 = vadd.f32 %v146, %v154
  %v172 = vadd.f32 %v147, %v158
  %v173 = vadd.f32 %v148, %v162
  %v174 = vadd.f32 %v149, %v166
  %v175 = vld [vmem:[%s4] sm:$0xf]
  %v176 = vld [vmem:[%s5] sm:$0xf]
  %v177 = vadd.f32 %v92, %v93
  %v178 = vadd.f32 %v177, %v94
  %v179 = vadd.f32 %v178, %v95
  %180 = vadd.xlane.f32.xlu0 %v179
  %v181 = vpop.xlane.xlu0 %180
  %v182 = vmul.f32 %v181, %v103
  %v183 = vsub.f32 %v92, %v182
  %v184 = vsub.f32 %v93, %v182
  %v185 = vsub.f32 %v94, %v182
  %v186 = vsub.f32 %v95, %v182
  %v187 = vmul.f32 %v183, %v183
  %v188 = vmul.f32 %v184, %v184
  %v189 = vmul.f32 %v185, %v185
  %v190 = vmul.f32 %v186, %v186
  %v191 = vadd.f32 %v187, %v188
  %v192 = vadd.f32 %v191, %v189
  %v193 = vadd.f32 %v192, %v190
  %194 = vadd.xlane.f32.xlu0 %v193
  %v195 = vpop.xlane.xlu0 %194
  %v196 = vmul.f32 %v195, %v103
  %v197 = vadd.f32 %v196, 1e-05
  %v198 = vrsqrt.pop %v197
  %v199 = vmul.f32 %v183, %v198
  %v200 = vmul.f32 %v184, %v198
  %v201 = vmul.f32 %v185, %v198
  %v202 = vmul.f32 %v186, %v198
  %v204 = vlaneseq
  %v205 = vshrl.u32 %v204, 7
  %v206 = vsub.s32 0, %v205
  %v207 = vrot.slane %v175, %v206
  %v208 = vlaneseq
  %v209 = vshrl.u32 %v208, 7
  %v210 = vsub.s32 1, %v209
  %v211 = vrot.slane %v175, %v210
  %v212 = vlaneseq
  %v213 = vshrl.u32 %v212, 7
  %v214 = vsub.s32 2, %v213
  %v215 = vrot.slane %v175, %v214
  %v216 = vlaneseq
  %v217 = vshrl.u32 %v216, 7
  %v218 = vsub.s32 3, %v217
  %v219 = vrot.slane %v175, %v218
  %v224 = vmul.f32 %v199, %v207
  %v225 = vmul.f32 %v200, %v211
  %v226 = vmul.f32 %v201, %v215
  %v227 = vmul.f32 %v202, %v219
  %v229 = vlaneseq
  %v230 = vshrl.u32 %v229, 7
  %v231 = vsub.s32 0, %v230
  %v232 = vrot.slane %v176, %v231
  %v233 = vlaneseq
  %v234 = vshrl.u32 %v233, 7
  %v235 = vsub.s32 1, %v234
  %v236 = vrot.slane %v176, %v235
  %v237 = vlaneseq
  %v238 = vshrl.u32 %v237, 7
  %v239 = vsub.s32 2, %v238
  %v240 = vrot.slane %v176, %v239
  %v241 = vlaneseq
  %v242 = vshrl.u32 %v241, 7
  %v243 = vsub.s32 3, %v242
  %v244 = vrot.slane %v176, %v243
  %v249 = vadd.f32 %v224, %v232
  %v250 = vadd.f32 %v225, %v236
  %v251 = vadd.f32 %v226, %v240
  %v252 = vadd.f32 %v227, %v244
  %253 = vst [vmem:[%s17] sm:$0xff] %v171
  %254 = vst [vmem:[%s17 + $0x8] sm:$0xff] %v172
  %255 = vst [vmem:[%s17 + $0x10] sm:$0xff] %v173
  %256 = vst [vmem:[%s17 + $0x18] sm:$0xff] %v174
  %257 = vst [vmem:[%s18] sm:$0xff] %v249
  %258 = vst [vmem:[%s18 + $0x8] sm:$0xff] %v250
  %259 = vst [vmem:[%s18 + $0x10] sm:$0xff] %v251
  %260 = vst [vmem:[%s18 + $0x18] sm:$0xff] %v252
  %v261 = vpack.c.bf16 %v171, %v171
  %v262 = vpack.c.bf16 %v172, %v172
  %v263 = vpack.c.bf16 %v173, %v173
  %v264 = vpack.c.bf16 %v174, %v174
  %v265 = vpack.c.bf16 %v249, %v249
  %v266 = vpack.c.bf16 %v250, %v250
  %v267 = vpack.c.bf16 %v251, %v251
  %v268 = vpack.c.bf16 %v252, %v252
  %v269 = vld [vmem:[%s6] sm:$0xff]
  %v270 = vld [vmem:[%s6 + $0x8] sm:$0xff]
  %v271 = vld [vmem:[%s6 + $0x10] sm:$0xff]
  %v272 = vld [vmem:[%s6 + $0x18] sm:$0xff]
  %v273 = vld [vmem:[%s6 + $0x20] sm:$0xff]
  %v274 = vld [vmem:[%s6 + $0x28] sm:$0xff]
  %v275 = vld [vmem:[%s6 + $0x30] sm:$0xff]
  %v276 = vld [vmem:[%s6 + $0x38] sm:$0xff]
  %v277 = vld [vmem:[%s6 + $0x40] sm:$0xff]
  %v278 = vld [vmem:[%s6 + $0x48] sm:$0xff]
  %v279 = vld [vmem:[%s6 + $0x50] sm:$0xff]
  %v280 = vld [vmem:[%s6 + $0x58] sm:$0xff]
  %v281 = vld [vmem:[%s6 + $0x60] sm:$0xff]
  %v282 = vld [vmem:[%s6 + $0x68] sm:$0xff]
  %v283 = vld [vmem:[%s6 + $0x70] sm:$0xff]
  %v284 = vld [vmem:[%s6 + $0x78] sm:$0xff]
  %v285 = vld [vmem:[%s6 + $0x80] sm:$0xff]
  %v286 = vld [vmem:[%s6 + $0x88] sm:$0xff]
  %v287 = vld [vmem:[%s6 + $0x90] sm:$0xff]
  %v288 = vld [vmem:[%s6 + $0x98] sm:$0xff]
  %v289 = vld [vmem:[%s6 + $0xa0] sm:$0xff]
  %v290 = vld [vmem:[%s6 + $0xa8] sm:$0xff]
  %v291 = vld [vmem:[%s6 + $0xb0] sm:$0xff]
  %v292 = vld [vmem:[%s6 + $0xb8] sm:$0xff]
  %v293 = vld [vmem:[%s6 + $0xc0] sm:$0xff]
  %v294 = vld [vmem:[%s6 + $0xc8] sm:$0xff]
  %v295 = vld [vmem:[%s6 + $0xd0] sm:$0xff]
  %v296 = vld [vmem:[%s6 + $0xd8] sm:$0xff]
  %v297 = vld [vmem:[%s6 + $0xe0] sm:$0xff]
  %v298 = vld [vmem:[%s6 + $0xe8] sm:$0xff]
  %v299 = vld [vmem:[%s6 + $0xf0] sm:$0xff]
  %v300 = vld [vmem:[%s6 + $0xf8] sm:$0xff]
  %v301 = vld [vmem:[%s6 + $0x100] sm:$0xff]
  %v302 = vld [vmem:[%s6 + $0x108] sm:$0xff]
  %v303 = vld [vmem:[%s6 + $0x110] sm:$0xff]
  %v304 = vld [vmem:[%s6 + $0x118] sm:$0xff]
  %v305 = vld [vmem:[%s6 + $0x120] sm:$0xff]
  %v306 = vld [vmem:[%s6 + $0x128] sm:$0xff]
  %v307 = vld [vmem:[%s6 + $0x130] sm:$0xff]
  %v308 = vld [vmem:[%s6 + $0x138] sm:$0xff]
  %v309 = vld [vmem:[%s6 + $0x140] sm:$0xff]
  %v310 = vld [vmem:[%s6 + $0x148] sm:$0xff]
  %v311 = vld [vmem:[%s6 + $0x150] sm:$0xff]
  %v312 = vld [vmem:[%s6 + $0x158] sm:$0xff]
  %v313 = vld [vmem:[%s6 + $0x160] sm:$0xff]
  %v314 = vld [vmem:[%s6 + $0x168] sm:$0xff]
  %v315 = vld [vmem:[%s6 + $0x170] sm:$0xff]
  %v316 = vld [vmem:[%s6 + $0x178] sm:$0xff]
  %v317 = vld [vmem:[%s6 + $0x180] sm:$0xff]
  %v318 = vld [vmem:[%s6 + $0x188] sm:$0xff]
  %v319 = vld [vmem:[%s6 + $0x190] sm:$0xff]
  %v320 = vld [vmem:[%s6 + $0x198] sm:$0xff]
  %v321 = vld [vmem:[%s6 + $0x1a0] sm:$0xff]
  %v322 = vld [vmem:[%s6 + $0x1a8] sm:$0xff]
  %v323 = vld [vmem:[%s6 + $0x1b0] sm:$0xff]
  %v324 = vld [vmem:[%s6 + $0x1b8] sm:$0xff]
  %v325 = vld [vmem:[%s6 + $0x1c0] sm:$0xff]
  %v326 = vld [vmem:[%s6 + $0x1c8] sm:$0xff]
  %v327 = vld [vmem:[%s6 + $0x1d0] sm:$0xff]
  %v328 = vld [vmem:[%s6 + $0x1d8] sm:$0xff]
  %v329 = vld [vmem:[%s6 + $0x1e0] sm:$0xff]
  %v330 = vld [vmem:[%s6 + $0x1e8] sm:$0xff]
  %v331 = vld [vmem:[%s6 + $0x1f0] sm:$0xff]
  %v332 = vld [vmem:[%s6 + $0x1f8] sm:$0xff]
  %v333 = vld [vmem:[%s6 + $0x200] sm:$0xff]
  %v334 = vld [vmem:[%s6 + $0x208] sm:$0xff]
  %v335 = vld [vmem:[%s6 + $0x210] sm:$0xff]
  %v336 = vld [vmem:[%s6 + $0x218] sm:$0xff]
  %v337 = vld [vmem:[%s6 + $0x220] sm:$0xff]
  %v338 = vld [vmem:[%s6 + $0x228] sm:$0xff]
  %v339 = vld [vmem:[%s6 + $0x230] sm:$0xff]
  %v340 = vld [vmem:[%s6 + $0x238] sm:$0xff]
  %v341 = vld [vmem:[%s6 + $0x240] sm:$0xff]
  %v342 = vld [vmem:[%s6 + $0x248] sm:$0xff]
  %v343 = vld [vmem:[%s6 + $0x250] sm:$0xff]
  %v344 = vld [vmem:[%s6 + $0x258] sm:$0xff]
  %v345 = vld [vmem:[%s6 + $0x260] sm:$0xff]
  %v346 = vld [vmem:[%s6 + $0x268] sm:$0xff]
  %v347 = vld [vmem:[%s6 + $0x270] sm:$0xff]
  %v348 = vld [vmem:[%s6 + $0x278] sm:$0xff]
  %v349 = vld [vmem:[%s6 + $0x280] sm:$0xff]
  %v350 = vld [vmem:[%s6 + $0x288] sm:$0xff]
  %v351 = vld [vmem:[%s6 + $0x290] sm:$0xff]
  %v352 = vld [vmem:[%s6 + $0x298] sm:$0xff]
  %v353 = vld [vmem:[%s6 + $0x2a0] sm:$0xff]
  %v354 = vld [vmem:[%s6 + $0x2a8] sm:$0xff]
  %v355 = vld [vmem:[%s6 + $0x2b0] sm:$0xff]
  %v356 = vld [vmem:[%s6 + $0x2b8] sm:$0xff]
  %v357 = vld [vmem:[%s6 + $0x2c0] sm:$0xff]
  %v358 = vld [vmem:[%s6 + $0x2c8] sm:$0xff]
  %v359 = vld [vmem:[%s6 + $0x2d0] sm:$0xff]
  %v360 = vld [vmem:[%s6 + $0x2d8] sm:$0xff]
  %v361 = vld [vmem:[%s6 + $0x2e0] sm:$0xff]
  %v362 = vld [vmem:[%s6 + $0x2e8] sm:$0xff]
  %v363 = vld [vmem:[%s6 + $0x2f0] sm:$0xff]
  %v364 = vld [vmem:[%s6 + $0x2f8] sm:$0xff]
  %v365 = vld [vmem:[%s6 + $0x300] sm:$0xff]
  %v366 = vld [vmem:[%s6 + $0x308] sm:$0xff]
  %v367 = vld [vmem:[%s6 + $0x310] sm:$0xff]
  %v368 = vld [vmem:[%s6 + $0x318] sm:$0xff]
  %v369 = vld [vmem:[%s6 + $0x320] sm:$0xff]
  %v370 = vld [vmem:[%s6 + $0x328] sm:$0xff]
  %v371 = vld [vmem:[%s6 + $0x330] sm:$0xff]
  %v372 = vld [vmem:[%s6 + $0x338] sm:$0xff]
  %v373 = vld [vmem:[%s6 + $0x340] sm:$0xff]
  %v374 = vld [vmem:[%s6 + $0x348] sm:$0xff]
  %v375 = vld [vmem:[%s6 + $0x350] sm:$0xff]
  %v376 = vld [vmem:[%s6 + $0x358] sm:$0xff]
  %v377 = vld [vmem:[%s6 + $0x360] sm:$0xff]
  %v378 = vld [vmem:[%s6 + $0x368] sm:$0xff]
  %v379 = vld [vmem:[%s6 + $0x370] sm:$0xff]
  %v380 = vld [vmem:[%s6 + $0x378] sm:$0xff]
  %v381 = vld [vmem:[%s6 + $0x380] sm:$0xff]
  %v382 = vld [vmem:[%s6 + $0x388] sm:$0xff]
  %v383 = vld [vmem:[%s6 + $0x390] sm:$0xff]
  %v384 = vld [vmem:[%s6 + $0x398] sm:$0xff]
  %v385 = vld [vmem:[%s6 + $0x3a0] sm:$0xff]
  %v386 = vld [vmem:[%s6 + $0x3a8] sm:$0xff]
  %v387 = vld [vmem:[%s6 + $0x3b0] sm:$0xff]
  %v388 = vld [vmem:[%s6 + $0x3b8] sm:$0xff]
  %v389 = vld [vmem:[%s6 + $0x3c0] sm:$0xff]
  %v390 = vld [vmem:[%s6 + $0x3c8] sm:$0xff]
  %v391 = vld [vmem:[%s6 + $0x3d0] sm:$0xff]
  %v392 = vld [vmem:[%s6 + $0x3d8] sm:$0xff]
  %v393 = vld [vmem:[%s6 + $0x3e0] sm:$0xff]
  %v394 = vld [vmem:[%s6 + $0x3e8] sm:$0xff]
  %v395 = vld [vmem:[%s6 + $0x3f0] sm:$0xff]
  %v396 = vld [vmem:[%s6 + $0x3f8] sm:$0xff]
  %v397 = vld [vmem:[%s6 + $0x400] sm:$0xff]
  %v398 = vld [vmem:[%s6 + $0x408] sm:$0xff]
  %v399 = vld [vmem:[%s6 + $0x410] sm:$0xff]
  %v400 = vld [vmem:[%s6 + $0x418] sm:$0xff]
  %v401 = vld [vmem:[%s6 + $0x420] sm:$0xff]
  %v402 = vld [vmem:[%s6 + $0x428] sm:$0xff]
  %v403 = vld [vmem:[%s6 + $0x430] sm:$0xff]
  %v404 = vld [vmem:[%s6 + $0x438] sm:$0xff]
  %v405 = vld [vmem:[%s6 + $0x440] sm:$0xff]
  %v406 = vld [vmem:[%s6 + $0x448] sm:$0xff]
  %v407 = vld [vmem:[%s6 + $0x450] sm:$0xff]
  %v408 = vld [vmem:[%s6 + $0x458] sm:$0xff]
  %v409 = vld [vmem:[%s6 + $0x460] sm:$0xff]
  %v410 = vld [vmem:[%s6 + $0x468] sm:$0xff]
  %v411 = vld [vmem:[%s6 + $0x470] sm:$0xff]
  %v412 = vld [vmem:[%s6 + $0x478] sm:$0xff]
  %v413 = vld [vmem:[%s6 + $0x480] sm:$0xff]
  %v414 = vld [vmem:[%s6 + $0x488] sm:$0xff]
  %v415 = vld [vmem:[%s6 + $0x490] sm:$0xff]
  %v416 = vld [vmem:[%s6 + $0x498] sm:$0xff]
  %v417 = vld [vmem:[%s6 + $0x4a0] sm:$0xff]
  %v418 = vld [vmem:[%s6 + $0x4a8] sm:$0xff]
  %v419 = vld [vmem:[%s6 + $0x4b0] sm:$0xff]
  %v420 = vld [vmem:[%s6 + $0x4b8] sm:$0xff]
  %v421 = vld [vmem:[%s6 + $0x4c0] sm:$0xff]
  %v422 = vld [vmem:[%s6 + $0x4c8] sm:$0xff]
  %v423 = vld [vmem:[%s6 + $0x4d0] sm:$0xff]
  %v424 = vld [vmem:[%s6 + $0x4d8] sm:$0xff]
  %v425 = vld [vmem:[%s6 + $0x4e0] sm:$0xff]
  %v426 = vld [vmem:[%s6 + $0x4e8] sm:$0xff]
  %v427 = vld [vmem:[%s6 + $0x4f0] sm:$0xff]
  %v428 = vld [vmem:[%s6 + $0x4f8] sm:$0xff]
  %v429 = vld [vmem:[%s6 + $0x500] sm:$0xff]
  %v430 = vld [vmem:[%s6 + $0x508] sm:$0xff]
  %v431 = vld [vmem:[%s6 + $0x510] sm:$0xff]
  %v432 = vld [vmem:[%s6 + $0x518] sm:$0xff]
  %v433 = vld [vmem:[%s6 + $0x520] sm:$0xff]
  %v434 = vld [vmem:[%s6 + $0x528] sm:$0xff]
  %v435 = vld [vmem:[%s6 + $0x530] sm:$0xff]
  %v436 = vld [vmem:[%s6 + $0x538] sm:$0xff]
  %v437 = vld [vmem:[%s6 + $0x540] sm:$0xff]
  %v438 = vld [vmem:[%s6 + $0x548] sm:$0xff]
  %v439 = vld [vmem:[%s6 + $0x550] sm:$0xff]
  %v440 = vld [vmem:[%s6 + $0x558] sm:$0xff]
  %v441 = vld [vmem:[%s6 + $0x560] sm:$0xff]
  %v442 = vld [vmem:[%s6 + $0x568] sm:$0xff]
  %v443 = vld [vmem:[%s6 + $0x570] sm:$0xff]
  %v444 = vld [vmem:[%s6 + $0x578] sm:$0xff]
  %v445 = vld [vmem:[%s6 + $0x580] sm:$0xff]
  %v446 = vld [vmem:[%s6 + $0x588] sm:$0xff]
  %v447 = vld [vmem:[%s6 + $0x590] sm:$0xff]
  %v448 = vld [vmem:[%s6 + $0x598] sm:$0xff]
  %v449 = vld [vmem:[%s6 + $0x5a0] sm:$0xff]
  %v450 = vld [vmem:[%s6 + $0x5a8] sm:$0xff]
  %v451 = vld [vmem:[%s6 + $0x5b0] sm:$0xff]
  %v452 = vld [vmem:[%s6 + $0x5b8] sm:$0xff]
  %v453 = vld [vmem:[%s6 + $0x5c0] sm:$0xff]
  %v454 = vld [vmem:[%s6 + $0x5c8] sm:$0xff]
  %v455 = vld [vmem:[%s6 + $0x5d0] sm:$0xff]
  %v456 = vld [vmem:[%s6 + $0x5d8] sm:$0xff]
  %v457 = vld [vmem:[%s6 + $0x5e0] sm:$0xff]
  %v458 = vld [vmem:[%s6 + $0x5e8] sm:$0xff]
  %v459 = vld [vmem:[%s6 + $0x5f0] sm:$0xff]
  %v460 = vld [vmem:[%s6 + $0x5f8] sm:$0xff]
  %v461 = vld [vmem:[%s6 + $0x600] sm:$0xff]
  %v462 = vld [vmem:[%s6 + $0x608] sm:$0xff]
  %v463 = vld [vmem:[%s6 + $0x610] sm:$0xff]
  %v464 = vld [vmem:[%s6 + $0x618] sm:$0xff]
  %v465 = vld [vmem:[%s6 + $0x620] sm:$0xff]
  %v466 = vld [vmem:[%s6 + $0x628] sm:$0xff]
  %v467 = vld [vmem:[%s6 + $0x630] sm:$0xff]
  %v468 = vld [vmem:[%s6 + $0x638] sm:$0xff]
  %v469 = vld [vmem:[%s6 + $0x640] sm:$0xff]
  %v470 = vld [vmem:[%s6 + $0x648] sm:$0xff]
  %v471 = vld [vmem:[%s6 + $0x650] sm:$0xff]
  %v472 = vld [vmem:[%s6 + $0x658] sm:$0xff]
  %v473 = vld [vmem:[%s6 + $0x660] sm:$0xff]
  %v474 = vld [vmem:[%s6 + $0x668] sm:$0xff]
  %v475 = vld [vmem:[%s6 + $0x670] sm:$0xff]
  %v476 = vld [vmem:[%s6 + $0x678] sm:$0xff]
  %v477 = vld [vmem:[%s6 + $0x680] sm:$0xff]
  %v478 = vld [vmem:[%s6 + $0x688] sm:$0xff]
  %v479 = vld [vmem:[%s6 + $0x690] sm:$0xff]
  %v480 = vld [vmem:[%s6 + $0x698] sm:$0xff]
  %v481 = vld [vmem:[%s6 + $0x6a0] sm:$0xff]
  %v482 = vld [vmem:[%s6 + $0x6a8] sm:$0xff]
  %v483 = vld [vmem:[%s6 + $0x6b0] sm:$0xff]
  %v484 = vld [vmem:[%s6 + $0x6b8] sm:$0xff]
  %v485 = vld [vmem:[%s6 + $0x6c0] sm:$0xff]
  %v486 = vld [vmem:[%s6 + $0x6c8] sm:$0xff]
  %v487 = vld [vmem:[%s6 + $0x6d0] sm:$0xff]
  %v488 = vld [vmem:[%s6 + $0x6d8] sm:$0xff]
  %v489 = vld [vmem:[%s6 + $0x6e0] sm:$0xff]
  %v490 = vld [vmem:[%s6 + $0x6e8] sm:$0xff]
  %v491 = vld [vmem:[%s6 + $0x6f0] sm:$0xff]
  %v492 = vld [vmem:[%s6 + $0x6f8] sm:$0xff]
  %v493 = vld [vmem:[%s6 + $0x700] sm:$0xff]
  %v494 = vld [vmem:[%s6 + $0x708] sm:$0xff]
  %v495 = vld [vmem:[%s6 + $0x710] sm:$0xff]
  %v496 = vld [vmem:[%s6 + $0x718] sm:$0xff]
  %v497 = vld [vmem:[%s6 + $0x720] sm:$0xff]
  %v498 = vld [vmem:[%s6 + $0x728] sm:$0xff]
  %v499 = vld [vmem:[%s6 + $0x730] sm:$0xff]
  %v500 = vld [vmem:[%s6 + $0x738] sm:$0xff]
  %v501 = vld [vmem:[%s6 + $0x740] sm:$0xff]
  %v502 = vld [vmem:[%s6 + $0x748] sm:$0xff]
  %v503 = vld [vmem:[%s6 + $0x750] sm:$0xff]
  %v504 = vld [vmem:[%s6 + $0x758] sm:$0xff]
  %v505 = vld [vmem:[%s6 + $0x760] sm:$0xff]
  %v506 = vld [vmem:[%s6 + $0x768] sm:$0xff]
  %v507 = vld [vmem:[%s6 + $0x770] sm:$0xff]
  %v508 = vld [vmem:[%s6 + $0x778] sm:$0xff]
  %v509 = vld [vmem:[%s6 + $0x780] sm:$0xff]
  %v510 = vld [vmem:[%s6 + $0x788] sm:$0xff]
  %v511 = vld [vmem:[%s6 + $0x790] sm:$0xff]
  %v512 = vld [vmem:[%s6 + $0x798] sm:$0xff]
  %v513 = vld [vmem:[%s6 + $0x7a0] sm:$0xff]
  %v514 = vld [vmem:[%s6 + $0x7a8] sm:$0xff]
  %v515 = vld [vmem:[%s6 + $0x7b0] sm:$0xff]
  %v516 = vld [vmem:[%s6 + $0x7b8] sm:$0xff]
  %v517 = vld [vmem:[%s6 + $0x7c0] sm:$0xff]
  %v518 = vld [vmem:[%s6 + $0x7c8] sm:$0xff]
  %v519 = vld [vmem:[%s6 + $0x7d0] sm:$0xff]
  %v520 = vld [vmem:[%s6 + $0x7d8] sm:$0xff]
  %v521 = vld [vmem:[%s6 + $0x7e0] sm:$0xff]
  %v522 = vld [vmem:[%s6 + $0x7e8] sm:$0xff]
  %v523 = vld [vmem:[%s6 + $0x7f0] sm:$0xff]
  %v524 = vld [vmem:[%s6 + $0x7f8] sm:$0xff]
  %v525 = vld [vmem:[%s7] sm:$0xff]
  %v526 = vld [vmem:[%s7 + $0x8] sm:$0xff]
  %v527 = vld [vmem:[%s7 + $0x10] sm:$0xff]
  %v528 = vld [vmem:[%s7 + $0x18] sm:$0xff]
  %v529 = vld [vmem:[%s7 + $0x20] sm:$0xff]
  %v530 = vld [vmem:[%s7 + $0x28] sm:$0xff]
  %v531 = vld [vmem:[%s7 + $0x30] sm:$0xff]
  %v532 = vld [vmem:[%s7 + $0x38] sm:$0xff]
  %v533 = vld [vmem:[%s7 + $0x40] sm:$0xff]
  %v534 = vld [vmem:[%s7 + $0x48] sm:$0xff]
  %v535 = vld [vmem:[%s7 + $0x50] sm:$0xff]
  %v536 = vld [vmem:[%s7 + $0x58] sm:$0xff]
  %v537 = vld [vmem:[%s7 + $0x60] sm:$0xff]
  %v538 = vld [vmem:[%s7 + $0x68] sm:$0xff]
  %v539 = vld [vmem:[%s7 + $0x70] sm:$0xff]
  %v540 = vld [vmem:[%s7 + $0x78] sm:$0xff]
  %v541 = vld [vmem:[%s7 + $0x80] sm:$0xff]
  %v542 = vld [vmem:[%s7 + $0x88] sm:$0xff]
  %v543 = vld [vmem:[%s7 + $0x90] sm:$0xff]
  %v544 = vld [vmem:[%s7 + $0x98] sm:$0xff]
  %v545 = vld [vmem:[%s7 + $0xa0] sm:$0xff]
  %v546 = vld [vmem:[%s7 + $0xa8] sm:$0xff]
  %v547 = vld [vmem:[%s7 + $0xb0] sm:$0xff]
  %v548 = vld [vmem:[%s7 + $0xb8] sm:$0xff]
  %v549 = vld [vmem:[%s7 + $0xc0] sm:$0xff]
  %v550 = vld [vmem:[%s7 + $0xc8] sm:$0xff]
  %v551 = vld [vmem:[%s7 + $0xd0] sm:$0xff]
  %v552 = vld [vmem:[%s7 + $0xd8] sm:$0xff]
  %v553 = vld [vmem:[%s7 + $0xe0] sm:$0xff]
  %v554 = vld [vmem:[%s7 + $0xe8] sm:$0xff]
  %v555 = vld [vmem:[%s7 + $0xf0] sm:$0xff]
  %v556 = vld [vmem:[%s7 + $0xf8] sm:$0xff]
  %v557 = vld [vmem:[%s7 + $0x100] sm:$0xff]
  %v558 = vld [vmem:[%s7 + $0x108] sm:$0xff]
  %v559 = vld [vmem:[%s7 + $0x110] sm:$0xff]
  %v560 = vld [vmem:[%s7 + $0x118] sm:$0xff]
  %v561 = vld [vmem:[%s7 + $0x120] sm:$0xff]
  %v562 = vld [vmem:[%s7 + $0x128] sm:$0xff]
  %v563 = vld [vmem:[%s7 + $0x130] sm:$0xff]
  %v564 = vld [vmem:[%s7 + $0x138] sm:$0xff]
  %v565 = vld [vmem:[%s7 + $0x140] sm:$0xff]
  %v566 = vld [vmem:[%s7 + $0x148] sm:$0xff]
  %v567 = vld [vmem:[%s7 + $0x150] sm:$0xff]
  %v568 = vld [vmem:[%s7 + $0x158] sm:$0xff]
  %v569 = vld [vmem:[%s7 + $0x160] sm:$0xff]
  %v570 = vld [vmem:[%s7 + $0x168] sm:$0xff]
  %v571 = vld [vmem:[%s7 + $0x170] sm:$0xff]
  %v572 = vld [vmem:[%s7 + $0x178] sm:$0xff]
  %v573 = vld [vmem:[%s7 + $0x180] sm:$0xff]
  %v574 = vld [vmem:[%s7 + $0x188] sm:$0xff]
  %v575 = vld [vmem:[%s7 + $0x190] sm:$0xff]
  %v576 = vld [vmem:[%s7 + $0x198] sm:$0xff]
  %v577 = vld [vmem:[%s7 + $0x1a0] sm:$0xff]
  %v578 = vld [vmem:[%s7 + $0x1a8] sm:$0xff]
  %v579 = vld [vmem:[%s7 + $0x1b0] sm:$0xff]
  %v580 = vld [vmem:[%s7 + $0x1b8] sm:$0xff]
  %v581 = vld [vmem:[%s7 + $0x1c0] sm:$0xff]
  %v582 = vld [vmem:[%s7 + $0x1c8] sm:$0xff]
  %v583 = vld [vmem:[%s7 + $0x1d0] sm:$0xff]
  %v584 = vld [vmem:[%s7 + $0x1d8] sm:$0xff]
  %v585 = vld [vmem:[%s7 + $0x1e0] sm:$0xff]
  %v586 = vld [vmem:[%s7 + $0x1e8] sm:$0xff]
  %v587 = vld [vmem:[%s7 + $0x1f0] sm:$0xff]
  %v588 = vld [vmem:[%s7 + $0x1f8] sm:$0xff]
  %v589 = vld [vmem:[%s7 + $0x200] sm:$0xff]
  %v590 = vld [vmem:[%s7 + $0x208] sm:$0xff]
  %v591 = vld [vmem:[%s7 + $0x210] sm:$0xff]
  %v592 = vld [vmem:[%s7 + $0x218] sm:$0xff]
  %v593 = vld [vmem:[%s7 + $0x220] sm:$0xff]
  %v594 = vld [vmem:[%s7 + $0x228] sm:$0xff]
  %v595 = vld [vmem:[%s7 + $0x230] sm:$0xff]
  %v596 = vld [vmem:[%s7 + $0x238] sm:$0xff]
  %v597 = vld [vmem:[%s7 + $0x240] sm:$0xff]
  %v598 = vld [vmem:[%s7 + $0x248] sm:$0xff]
  %v599 = vld [vmem:[%s7 + $0x250] sm:$0xff]
  %v600 = vld [vmem:[%s7 + $0x258] sm:$0xff]
  %v601 = vld [vmem:[%s7 + $0x260] sm:$0xff]
  %v602 = vld [vmem:[%s7 + $0x268] sm:$0xff]
  %v603 = vld [vmem:[%s7 + $0x270] sm:$0xff]
  %v604 = vld [vmem:[%s7 + $0x278] sm:$0xff]
  %v605 = vld [vmem:[%s7 + $0x280] sm:$0xff]
  %v606 = vld [vmem:[%s7 + $0x288] sm:$0xff]
  %v607 = vld [vmem:[%s7 + $0x290] sm:$0xff]
  %v608 = vld [vmem:[%s7 + $0x298] sm:$0xff]
  %v609 = vld [vmem:[%s7 + $0x2a0] sm:$0xff]
  %v610 = vld [vmem:[%s7 + $0x2a8] sm:$0xff]
  %v611 = vld [vmem:[%s7 + $0x2b0] sm:$0xff]
  %v612 = vld [vmem:[%s7 + $0x2b8] sm:$0xff]
  %v613 = vld [vmem:[%s7 + $0x2c0] sm:$0xff]
  %v614 = vld [vmem:[%s7 + $0x2c8] sm:$0xff]
  %v615 = vld [vmem:[%s7 + $0x2d0] sm:$0xff]
  %v616 = vld [vmem:[%s7 + $0x2d8] sm:$0xff]
  %v617 = vld [vmem:[%s7 + $0x2e0] sm:$0xff]
  %v618 = vld [vmem:[%s7 + $0x2e8] sm:$0xff]
  %v619 = vld [vmem:[%s7 + $0x2f0] sm:$0xff]
  %v620 = vld [vmem:[%s7 + $0x2f8] sm:$0xff]
  %v621 = vld [vmem:[%s7 + $0x300] sm:$0xff]
  %v622 = vld [vmem:[%s7 + $0x308] sm:$0xff]
  %v623 = vld [vmem:[%s7 + $0x310] sm:$0xff]
  %v624 = vld [vmem:[%s7 + $0x318] sm:$0xff]
  %v625 = vld [vmem:[%s7 + $0x320] sm:$0xff]
  %v626 = vld [vmem:[%s7 + $0x328] sm:$0xff]
  %v627 = vld [vmem:[%s7 + $0x330] sm:$0xff]
  %v628 = vld [vmem:[%s7 + $0x338] sm:$0xff]
  %v629 = vld [vmem:[%s7 + $0x340] sm:$0xff]
  %v630 = vld [vmem:[%s7 + $0x348] sm:$0xff]
  %v631 = vld [vmem:[%s7 + $0x350] sm:$0xff]
  %v632 = vld [vmem:[%s7 + $0x358] sm:$0xff]
  %v633 = vld [vmem:[%s7 + $0x360] sm:$0xff]
  %v634 = vld [vmem:[%s7 + $0x368] sm:$0xff]
  %v635 = vld [vmem:[%s7 + $0x370] sm:$0xff]
  %v636 = vld [vmem:[%s7 + $0x378] sm:$0xff]
  %v637 = vld [vmem:[%s7 + $0x380] sm:$0xff]
  %v638 = vld [vmem:[%s7 + $0x388] sm:$0xff]
  %v639 = vld [vmem:[%s7 + $0x390] sm:$0xff]
  %v640 = vld [vmem:[%s7 + $0x398] sm:$0xff]
  %v641 = vld [vmem:[%s7 + $0x3a0] sm:$0xff]
  %v642 = vld [vmem:[%s7 + $0x3a8] sm:$0xff]
  %v643 = vld [vmem:[%s7 + $0x3b0] sm:$0xff]
  %v644 = vld [vmem:[%s7 + $0x3b8] sm:$0xff]
  %v645 = vld [vmem:[%s7 + $0x3c0] sm:$0xff]
  %v646 = vld [vmem:[%s7 + $0x3c8] sm:$0xff]
  %v647 = vld [vmem:[%s7 + $0x3d0] sm:$0xff]
  %v648 = vld [vmem:[%s7 + $0x3d8] sm:$0xff]
  %v649 = vld [vmem:[%s7 + $0x3e0] sm:$0xff]
  %v650 = vld [vmem:[%s7 + $0x3e8] sm:$0xff]
  %v651 = vld [vmem:[%s7 + $0x3f0] sm:$0xff]
  %v652 = vld [vmem:[%s7 + $0x3f8] sm:$0xff]
  %v653 = vld [vmem:[%s7 + $0x400] sm:$0xff]
  %v654 = vld [vmem:[%s7 + $0x408] sm:$0xff]
  %v655 = vld [vmem:[%s7 + $0x410] sm:$0xff]
  %v656 = vld [vmem:[%s7 + $0x418] sm:$0xff]
  %v657 = vld [vmem:[%s7 + $0x420] sm:$0xff]
  %v658 = vld [vmem:[%s7 + $0x428] sm:$0xff]
  %v659 = vld [vmem:[%s7 + $0x430] sm:$0xff]
  %v660 = vld [vmem:[%s7 + $0x438] sm:$0xff]
  %v661 = vld [vmem:[%s7 + $0x440] sm:$0xff]
  %v662 = vld [vmem:[%s7 + $0x448] sm:$0xff]
  %v663 = vld [vmem:[%s7 + $0x450] sm:$0xff]
  %v664 = vld [vmem:[%s7 + $0x458] sm:$0xff]
  %v665 = vld [vmem:[%s7 + $0x460] sm:$0xff]
  %v666 = vld [vmem:[%s7 + $0x468] sm:$0xff]
  %v667 = vld [vmem:[%s7 + $0x470] sm:$0xff]
  %v668 = vld [vmem:[%s7 + $0x478] sm:$0xff]
  %v669 = vld [vmem:[%s7 + $0x480] sm:$0xff]
  %v670 = vld [vmem:[%s7 + $0x488] sm:$0xff]
  %v671 = vld [vmem:[%s7 + $0x490] sm:$0xff]
  %v672 = vld [vmem:[%s7 + $0x498] sm:$0xff]
  %v673 = vld [vmem:[%s7 + $0x4a0] sm:$0xff]
  %v674 = vld [vmem:[%s7 + $0x4a8] sm:$0xff]
  %v675 = vld [vmem:[%s7 + $0x4b0] sm:$0xff]
  %v676 = vld [vmem:[%s7 + $0x4b8] sm:$0xff]
  %v677 = vld [vmem:[%s7 + $0x4c0] sm:$0xff]
  %v678 = vld [vmem:[%s7 + $0x4c8] sm:$0xff]
  %v679 = vld [vmem:[%s7 + $0x4d0] sm:$0xff]
  %v680 = vld [vmem:[%s7 + $0x4d8] sm:$0xff]
  %v681 = vld [vmem:[%s7 + $0x4e0] sm:$0xff]
  %v682 = vld [vmem:[%s7 + $0x4e8] sm:$0xff]
  %v683 = vld [vmem:[%s7 + $0x4f0] sm:$0xff]
  %v684 = vld [vmem:[%s7 + $0x4f8] sm:$0xff]
  %v685 = vld [vmem:[%s7 + $0x500] sm:$0xff]
  %v686 = vld [vmem:[%s7 + $0x508] sm:$0xff]
  %v687 = vld [vmem:[%s7 + $0x510] sm:$0xff]
  %v688 = vld [vmem:[%s7 + $0x518] sm:$0xff]
  %v689 = vld [vmem:[%s7 + $0x520] sm:$0xff]
  %v690 = vld [vmem:[%s7 + $0x528] sm:$0xff]
  %v691 = vld [vmem:[%s7 + $0x530] sm:$0xff]
  %v692 = vld [vmem:[%s7 + $0x538] sm:$0xff]
  %v693 = vld [vmem:[%s7 + $0x540] sm:$0xff]
  %v694 = vld [vmem:[%s7 + $0x548] sm:$0xff]
  %v695 = vld [vmem:[%s7 + $0x550] sm:$0xff]
  %v696 = vld [vmem:[%s7 + $0x558] sm:$0xff]
  %v697 = vld [vmem:[%s7 + $0x560] sm:$0xff]
  %v698 = vld [vmem:[%s7 + $0x568] sm:$0xff]
  %v699 = vld [vmem:[%s7 + $0x570] sm:$0xff]
  %v700 = vld [vmem:[%s7 + $0x578] sm:$0xff]
  %v701 = vld [vmem:[%s7 + $0x580] sm:$0xff]
  %v702 = vld [vmem:[%s7 + $0x588] sm:$0xff]
  %v703 = vld [vmem:[%s7 + $0x590] sm:$0xff]
  %v704 = vld [vmem:[%s7 + $0x598] sm:$0xff]
  %v705 = vld [vmem:[%s7 + $0x5a0] sm:$0xff]
  %v706 = vld [vmem:[%s7 + $0x5a8] sm:$0xff]
  %v707 = vld [vmem:[%s7 + $0x5b0] sm:$0xff]
  %v708 = vld [vmem:[%s7 + $0x5b8] sm:$0xff]
  %v709 = vld [vmem:[%s7 + $0x5c0] sm:$0xff]
  %v710 = vld [vmem:[%s7 + $0x5c8] sm:$0xff]
  %v711 = vld [vmem:[%s7 + $0x5d0] sm:$0xff]
  %v712 = vld [vmem:[%s7 + $0x5d8] sm:$0xff]
  %v713 = vld [vmem:[%s7 + $0x5e0] sm:$0xff]
  %v714 = vld [vmem:[%s7 + $0x5e8] sm:$0xff]
  %v715 = vld [vmem:[%s7 + $0x5f0] sm:$0xff]
  %v716 = vld [vmem:[%s7 + $0x5f8] sm:$0xff]
  %v717 = vld [vmem:[%s7 + $0x600] sm:$0xff]
  %v718 = vld [vmem:[%s7 + $0x608] sm:$0xff]
  %v719 = vld [vmem:[%s7 + $0x610] sm:$0xff]
  %v720 = vld [vmem:[%s7 + $0x618] sm:$0xff]
  %v721 = vld [vmem:[%s7 + $0x620] sm:$0xff]
  %v722 = vld [vmem:[%s7 + $0x628] sm:$0xff]
  %v723 = vld [vmem:[%s7 + $0x630] sm:$0xff]
  %v724 = vld [vmem:[%s7 + $0x638] sm:$0xff]
  %v725 = vld [vmem:[%s7 + $0x640] sm:$0xff]
  %v726 = vld [vmem:[%s7 + $0x648] sm:$0xff]
  %v727 = vld [vmem:[%s7 + $0x650] sm:$0xff]
  %v728 = vld [vmem:[%s7 + $0x658] sm:$0xff]
  %v729 = vld [vmem:[%s7 + $0x660] sm:$0xff]
  %v730 = vld [vmem:[%s7 + $0x668] sm:$0xff]
  %v731 = vld [vmem:[%s7 + $0x670] sm:$0xff]
  %v732 = vld [vmem:[%s7 + $0x678] sm:$0xff]
  %v733 = vld [vmem:[%s7 + $0x680] sm:$0xff]
  %v734 = vld [vmem:[%s7 + $0x688] sm:$0xff]
  %v735 = vld [vmem:[%s7 + $0x690] sm:$0xff]
  %v736 = vld [vmem:[%s7 + $0x698] sm:$0xff]
  %v737 = vld [vmem:[%s7 + $0x6a0] sm:$0xff]
  %v738 = vld [vmem:[%s7 + $0x6a8] sm:$0xff]
  %v739 = vld [vmem:[%s7 + $0x6b0] sm:$0xff]
  %v740 = vld [vmem:[%s7 + $0x6b8] sm:$0xff]
  %v741 = vld [vmem:[%s7 + $0x6c0] sm:$0xff]
  %v742 = vld [vmem:[%s7 + $0x6c8] sm:$0xff]
  %v743 = vld [vmem:[%s7 + $0x6d0] sm:$0xff]
  %v744 = vld [vmem:[%s7 + $0x6d8] sm:$0xff]
  %v745 = vld [vmem:[%s7 + $0x6e0] sm:$0xff]
  %v746 = vld [vmem:[%s7 + $0x6e8] sm:$0xff]
  %v747 = vld [vmem:[%s7 + $0x6f0] sm:$0xff]
  %v748 = vld [vmem:[%s7 + $0x6f8] sm:$0xff]
  %v749 = vld [vmem:[%s7 + $0x700] sm:$0xff]
  %v750 = vld [vmem:[%s7 + $0x708] sm:$0xff]
  %v751 = vld [vmem:[%s7 + $0x710] sm:$0xff]
  %v752 = vld [vmem:[%s7 + $0x718] sm:$0xff]
  %v753 = vld [vmem:[%s7 + $0x720] sm:$0xff]
  %v754 = vld [vmem:[%s7 + $0x728] sm:$0xff]
  %v755 = vld [vmem:[%s7 + $0x730] sm:$0xff]
  %v756 = vld [vmem:[%s7 + $0x738] sm:$0xff]
  %v757 = vld [vmem:[%s7 + $0x740] sm:$0xff]
  %v758 = vld [vmem:[%s7 + $0x748] sm:$0xff]
  %v759 = vld [vmem:[%s7 + $0x750] sm:$0xff]
  %v760 = vld [vmem:[%s7 + $0x758] sm:$0xff]
  %v761 = vld [vmem:[%s7 + $0x760] sm:$0xff]
  %v762 = vld [vmem:[%s7 + $0x768] sm:$0xff]
  %v763 = vld [vmem:[%s7 + $0x770] sm:$0xff]
  %v764 = vld [vmem:[%s7 + $0x778] sm:$0xff]
  %v765 = vld [vmem:[%s7 + $0x780] sm:$0xff]
  %v766 = vld [vmem:[%s7 + $0x788] sm:$0xff]
  %v767 = vld [vmem:[%s7 + $0x790] sm:$0xff]
  %v768 = vld [vmem:[%s7 + $0x798] sm:$0xff]
  %v769 = vld [vmem:[%s7 + $0x7a0] sm:$0xff]
  %v770 = vld [vmem:[%s7 + $0x7a8] sm:$0xff]
  %v771 = vld [vmem:[%s7 + $0x7b0] sm:$0xff]
  %v772 = vld [vmem:[%s7 + $0x7b8] sm:$0xff]
  %v773 = vld [vmem:[%s7 + $0x7c0] sm:$0xff]
  %v774 = vld [vmem:[%s7 + $0x7c8] sm:$0xff]
  %v775 = vld [vmem:[%s7 + $0x7d0] sm:$0xff]
  %v776 = vld [vmem:[%s7 + $0x7d8] sm:$0xff]
  %v777 = vld [vmem:[%s7 + $0x7e0] sm:$0xff]
  %v778 = vld [vmem:[%s7 + $0x7e8] sm:$0xff]
  %v779 = vld [vmem:[%s7 + $0x7f0] sm:$0xff]
  %v780 = vld [vmem:[%s7 + $0x7f8] sm:$0xff]
  %v1037 = vunpack.c.l.b16 %v525
  %v1038 = vunpack.c.h.b16 %v525
  %v1039 = vunpack.c.l.b16 %v526
  %v1040 = vunpack.c.h.b16 %v526
  %v1041 = vunpack.c.l.b16 %v527
  %v1042 = vunpack.c.h.b16 %v527
  %v1043 = vunpack.c.l.b16 %v528
  %v1044 = vunpack.c.h.b16 %v528
  %v1045 = vunpack.c.l.b16 %v529
  %v1046 = vunpack.c.h.b16 %v529
  %v1047 = vunpack.c.l.b16 %v530
  %v1048 = vunpack.c.h.b16 %v530
  %v1049 = vunpack.c.l.b16 %v531
  %v1050 = vunpack.c.h.b16 %v531
  %v1051 = vunpack.c.l.b16 %v532
  %v1052 = vunpack.c.h.b16 %v532
  %v1053 = vunpack.c.l.b16 %v533
  %v1054 = vunpack.c.h.b16 %v533
  %v1055 = vunpack.c.l.b16 %v534
  %v1056 = vunpack.c.h.b16 %v534
  %v1057 = vunpack.c.l.b16 %v535
  %v1058 = vunpack.c.h.b16 %v535
  %v1059 = vunpack.c.l.b16 %v536
  %v1060 = vunpack.c.h.b16 %v536
  %v1061 = vunpack.c.l.b16 %v537
  %v1062 = vunpack.c.h.b16 %v537
  %v1063 = vunpack.c.l.b16 %v538
  %v1064 = vunpack.c.h.b16 %v538
  %v1065 = vunpack.c.l.b16 %v539
  %v1066 = vunpack.c.h.b16 %v539
  %v1067 = vunpack.c.l.b16 %v540
  %v1068 = vunpack.c.h.b16 %v540
  %v1069 = vunpack.c.l.b16 %v541
  %v1070 = vunpack.c.h.b16 %v541
  %v1071 = vunpack.c.l.b16 %v542
  %v1072 = vunpack.c.h.b16 %v542
  %v1073 = vunpack.c.l.b16 %v543
  %v1074 = vunpack.c.h.b16 %v543
  %v1075 = vunpack.c.l.b16 %v544
  %v1076 = vunpack.c.h.b16 %v544
  %v1077 = vunpack.c.l.b16 %v545
  %v1078 = vunpack.c.h.b16 %v545
  %v1079 = vunpack.c.l.b16 %v546
  %v1080 = vunpack.c.h.b16 %v546
  %v1081 = vunpack.c.l.b16 %v547
  %v1082 = vunpack.c.h.b16 %v547
  %v1083 = vunpack.c.l.b16 %v548
  %v1084 = vunpack.c.h.b16 %v548
  %v1085 = vunpack.c.l.b16 %v549
  %v1086 = vunpack.c.h.b16 %v549
  %v1087 = vunpack.c.l.b16 %v550
  %v1088 = vunpack.c.h.b16 %v550
  %v1089 = vunpack.c.l.b16 %v551
  %v1090 = vunpack.c.h.b16 %v551
  %v1091 = vunpack.c.l.b16 %v552
  %v1092 = vunpack.c.h.b16 %v552
  %v1093 = vunpack.c.l.b16 %v553
  %v1094 = vunpack.c.h.b16 %v553
  %v1095 = vunpack.c.l.b16 %v554
  %v1096 = vunpack.c.h.b16 %v554
  %v1097 = vunpack.c.l.b16 %v555
  %v1098 = vunpack.c.h.b16 %v555
  %v1099 = vunpack.c.l.b16 %v556
  %v1100 = vunpack.c.h.b16 %v556
  %v1101 = vunpack.c.l.b16 %v557
  %v1102 = vunpack.c.h.b16 %v557
  %v1103 = vunpack.c.l.b16 %v558
  %v1104 = vunpack.c.h.b16 %v558
  %v1105 = vunpack.c.l.b16 %v559
  %v1106 = vunpack.c.h.b16 %v559
  %v1107 = vunpack.c.l.b16 %v560
  %v1108 = vunpack.c.h.b16 %v560
  %v1109 = vunpack.c.l.b16 %v561
  %v1110 = vunpack.c.h.b16 %v561
  %v1111 = vunpack.c.l.b16 %v562
  %v1112 = vunpack.c.h.b16 %v562
  %v1113 = vunpack.c.l.b16 %v563
  %v1114 = vunpack.c.h.b16 %v563
  %v1115 = vunpack.c.l.b16 %v564
  %v1116 = vunpack.c.h.b16 %v564
  %v1117 = vunpack.c.l.b16 %v565
  %v1118 = vunpack.c.h.b16 %v565
  %v1119 = vunpack.c.l.b16 %v566
  %v1120 = vunpack.c.h.b16 %v566
  %v1121 = vunpack.c.l.b16 %v567
  %v1122 = vunpack.c.h.b16 %v567
  %v1123 = vunpack.c.l.b16 %v568
  %v1124 = vunpack.c.h.b16 %v568
  %v1125 = vunpack.c.l.b16 %v569
  %v1126 = vunpack.c.h.b16 %v569
  %v1127 = vunpack.c.l.b16 %v570
  %v1128 = vunpack.c.h.b16 %v570
  %v1129 = vunpack.c.l.b16 %v571
  %v1130 = vunpack.c.h.b16 %v571
  %v1131 = vunpack.c.l.b16 %v572
  %v1132 = vunpack.c.h.b16 %v572
  %v1133 = vunpack.c.l.b16 %v573
  %v1134 = vunpack.c.h.b16 %v573
  %v1135 = vunpack.c.l.b16 %v574
  %v1136 = vunpack.c.h.b16 %v574
  %v1137 = vunpack.c.l.b16 %v575
  %v1138 = vunpack.c.h.b16 %v575
  %v1139 = vunpack.c.l.b16 %v576
  %v1140 = vunpack.c.h.b16 %v576
  %v1141 = vunpack.c.l.b16 %v577
  %v1142 = vunpack.c.h.b16 %v577
  %v1143 = vunpack.c.l.b16 %v578
  %v1144 = vunpack.c.h.b16 %v578
  %v1145 = vunpack.c.l.b16 %v579
  %v1146 = vunpack.c.h.b16 %v579
  %v1147 = vunpack.c.l.b16 %v580
  %v1148 = vunpack.c.h.b16 %v580
  %v1149 = vunpack.c.l.b16 %v581
  %v1150 = vunpack.c.h.b16 %v581
  %v1151 = vunpack.c.l.b16 %v582
  %v1152 = vunpack.c.h.b16 %v582
  %v1153 = vunpack.c.l.b16 %v583
  %v1154 = vunpack.c.h.b16 %v583
  %v1155 = vunpack.c.l.b16 %v584
  %v1156 = vunpack.c.h.b16 %v584
  %v1157 = vunpack.c.l.b16 %v585
  %v1158 = vunpack.c.h.b16 %v585
  %v1159 = vunpack.c.l.b16 %v586
  %v1160 = vunpack.c.h.b16 %v586
  %v1161 = vunpack.c.l.b16 %v587
  %v1162 = vunpack.c.h.b16 %v587
  %v1163 = vunpack.c.l.b16 %v588
  %v1164 = vunpack.c.h.b16 %v588
  %v1165 = vunpack.c.l.b16 %v589
  %v1166 = vunpack.c.h.b16 %v589
  %v1167 = vunpack.c.l.b16 %v590
  %v1168 = vunpack.c.h.b16 %v590
  %v1169 = vunpack.c.l.b16 %v591
  %v1170 = vunpack.c.h.b16 %v591
  %v1171 = vunpack.c.l.b16 %v592
  %v1172 = vunpack.c.h.b16 %v592
  %v1173 = vunpack.c.l.b16 %v593
  %v1174 = vunpack.c.h.b16 %v593
  %v1175 = vunpack.c.l.b16 %v594
  %v1176 = vunpack.c.h.b16 %v594
  %v1177 = vunpack.c.l.b16 %v595
  %v1178 = vunpack.c.h.b16 %v595
  %v1179 = vunpack.c.l.b16 %v596
  %v1180 = vunpack.c.h.b16 %v596
  %v1181 = vunpack.c.l.b16 %v597
  %v1182 = vunpack.c.h.b16 %v597
  %v1183 = vunpack.c.l.b16 %v598
  %v1184 = vunpack.c.h.b16 %v598
  %v1185 = vunpack.c.l.b16 %v599
  %v1186 = vunpack.c.h.b16 %v599
  %v1187 = vunpack.c.l.b16 %v600
  %v1188 = vunpack.c.h.b16 %v600
  %v1189 = vunpack.c.l.b16 %v601
  %v1190 = vunpack.c.h.b16 %v601
  %v1191 = vunpack.c.l.b16 %v602
  %v1192 = vunpack.c.h.b16 %v602
  %v1193 = vunpack.c.l.b16 %v603
  %v1194 = vunpack.c.h.b16 %v603
  %v1195 = vunpack.c.l.b16 %v604
  %v1196 = vunpack.c.h.b16 %v604
  %v1197 = vunpack.c.l.b16 %v605
  %v1198 = vunpack.c.h.b16 %v605
  %v1199 = vunpack.c.l.b16 %v606
  %v1200 = vunpack.c.h.b16 %v606
  %v1201 = vunpack.c.l.b16 %v607
  %v1202 = vunpack.c.h.b16 %v607
  %v1203 = vunpack.c.l.b16 %v608
  %v1204 = vunpack.c.h.b16 %v608
  %v1205 = vunpack.c.l.b16 %v609
  %v1206 = vunpack.c.h.b16 %v609
  %v1207 = vunpack.c.l.b16 %v610
  %v1208 = vunpack.c.h.b16 %v610
  %v1209 = vunpack.c.l.b16 %v611
  %v1210 = vunpack.c.h.b16 %v611
  %v1211 = vunpack.c.l.b16 %v612
  %v1212 = vunpack.c.h.b16 %v612
  %v1213 = vunpack.c.l.b16 %v613
  %v1214 = vunpack.c.h.b16 %v613
  %v1215 = vunpack.c.l.b16 %v614
  %v1216 = vunpack.c.h.b16 %v614
  %v1217 = vunpack.c.l.b16 %v615
  %v1218 = vunpack.c.h.b16 %v615
  %v1219 = vunpack.c.l.b16 %v616
  %v1220 = vunpack.c.h.b16 %v616
  %v1221 = vunpack.c.l.b16 %v617
  %v1222 = vunpack.c.h.b16 %v617
  %v1223 = vunpack.c.l.b16 %v618
  %v1224 = vunpack.c.h.b16 %v618
  %v1225 = vunpack.c.l.b16 %v619
  %v1226 = vunpack.c.h.b16 %v619
  %v1227 = vunpack.c.l.b16 %v620
  %v1228 = vunpack.c.h.b16 %v620
  %v1229 = vunpack.c.l.b16 %v621
  %v1230 = vunpack.c.h.b16 %v621
  %v1231 = vunpack.c.l.b16 %v622
  %v1232 = vunpack.c.h.b16 %v622
  %v1233 = vunpack.c.l.b16 %v623
  %v1234 = vunpack.c.h.b16 %v623
  %v1235 = vunpack.c.l.b16 %v624
  %v1236 = vunpack.c.h.b16 %v624
  %v1237 = vunpack.c.l.b16 %v625
  %v1238 = vunpack.c.h.b16 %v625
  %v1239 = vunpack.c.l.b16 %v626
  %v1240 = vunpack.c.h.b16 %v626
  %v1241 = vunpack.c.l.b16 %v627
  %v1242 = vunpack.c.h.b16 %v627
  %v1243 = vunpack.c.l.b16 %v628
  %v1244 = vunpack.c.h.b16 %v628
  %v1245 = vunpack.c.l.b16 %v629
  %v1246 = vunpack.c.h.b16 %v629
  %v1247 = vunpack.c.l.b16 %v630
  %v1248 = vunpack.c.h.b16 %v630
  %v1249 = vunpack.c.l.b16 %v631
  %v1250 = vunpack.c.h.b16 %v631
  %v1251 = vunpack.c.l.b16 %v632
  %v1252 = vunpack.c.h.b16 %v632
  %v1253 = vunpack.c.l.b16 %v633
  %v1254 = vunpack.c.h.b16 %v633
  %v1255 = vunpack.c.l.b16 %v634
  %v1256 = vunpack.c.h.b16 %v634
  %v1257 = vunpack.c.l.b16 %v635
  %v1258 = vunpack.c.h.b16 %v635
  %v1259 = vunpack.c.l.b16 %v636
  %v1260 = vunpack.c.h.b16 %v636
  %v1261 = vunpack.c.l.b16 %v637
  %v1262 = vunpack.c.h.b16 %v637
  %v1263 = vunpack.c.l.b16 %v638
  %v1264 = vunpack.c.h.b16 %v638
  %v1265 = vunpack.c.l.b16 %v639
  %v1266 = vunpack.c.h.b16 %v639
  %v1267 = vunpack.c.l.b16 %v640
  %v1268 = vunpack.c.h.b16 %v640
  %v1269 = vunpack.c.l.b16 %v641
  %v1270 = vunpack.c.h.b16 %v641
  %v1271 = vunpack.c.l.b16 %v642
  %v1272 = vunpack.c.h.b16 %v642
  %v1273 = vunpack.c.l.b16 %v643
  %v1274 = vunpack.c.h.b16 %v643
  %v1275 = vunpack.c.l.b16 %v644
  %v1276 = vunpack.c.h.b16 %v644
  %v1277 = vunpack.c.l.b16 %v645
  %v1278 = vunpack.c.h.b16 %v645
  %v1279 = vunpack.c.l.b16 %v646
  %v1280 = vunpack.c.h.b16 %v646
  %v1281 = vunpack.c.l.b16 %v647
  %v1282 = vunpack.c.h.b16 %v647
  %v1283 = vunpack.c.l.b16 %v648
  %v1284 = vunpack.c.h.b16 %v648
  %v1285 = vunpack.c.l.b16 %v649
  %v1286 = vunpack.c.h.b16 %v649
  %v1287 = vunpack.c.l.b16 %v650
  %v1288 = vunpack.c.h.b16 %v650
  %v1289 = vunpack.c.l.b16 %v651
  %v1290 = vunpack.c.h.b16 %v651
  %v1291 = vunpack.c.l.b16 %v652
  %v1292 = vunpack.c.h.b16 %v652
  %v1293 = vunpack.c.l.b16 %v653
  %v1294 = vunpack.c.h.b16 %v653
  %v1295 = vunpack.c.l.b16 %v654
  %v1296 = vunpack.c.h.b16 %v654
  %v1297 = vunpack.c.l.b16 %v655
  %v1298 = vunpack.c.h.b16 %v655
  %v1299 = vunpack.c.l.b16 %v656
  %v1300 = vunpack.c.h.b16 %v656
  %v1301 = vunpack.c.l.b16 %v657
  %v1302 = vunpack.c.h.b16 %v657
  %v1303 = vunpack.c.l.b16 %v658
  %v1304 = vunpack.c.h.b16 %v658
  %v1305 = vunpack.c.l.b16 %v659
  %v1306 = vunpack.c.h.b16 %v659
  %v1307 = vunpack.c.l.b16 %v660
  %v1308 = vunpack.c.h.b16 %v660
  %v1309 = vunpack.c.l.b16 %v661
  %v1310 = vunpack.c.h.b16 %v661
  %v1311 = vunpack.c.l.b16 %v662
  %v1312 = vunpack.c.h.b16 %v662
  %v1313 = vunpack.c.l.b16 %v663
  %v1314 = vunpack.c.h.b16 %v663
  %v1315 = vunpack.c.l.b16 %v664
  %v1316 = vunpack.c.h.b16 %v664
  %v1317 = vunpack.c.l.b16 %v665
  %v1318 = vunpack.c.h.b16 %v665
  %v1319 = vunpack.c.l.b16 %v666
  %v1320 = vunpack.c.h.b16 %v666
  %v1321 = vunpack.c.l.b16 %v667
  %v1322 = vunpack.c.h.b16 %v667
  %v1323 = vunpack.c.l.b16 %v668
  %v1324 = vunpack.c.h.b16 %v668
  %v1325 = vunpack.c.l.b16 %v669
  %v1326 = vunpack.c.h.b16 %v669
  %v1327 = vunpack.c.l.b16 %v670
  %v1328 = vunpack.c.h.b16 %v670
  %v1329 = vunpack.c.l.b16 %v671
  %v1330 = vunpack.c.h.b16 %v671
  %v1331 = vunpack.c.l.b16 %v672
  %v1332 = vunpack.c.h.b16 %v672
  %v1333 = vunpack.c.l.b16 %v673
  %v1334 = vunpack.c.h.b16 %v673
  %v1335 = vunpack.c.l.b16 %v674
  %v1336 = vunpack.c.h.b16 %v674
  %v1337 = vunpack.c.l.b16 %v675
  %v1338 = vunpack.c.h.b16 %v675
  %v1339 = vunpack.c.l.b16 %v676
  %v1340 = vunpack.c.h.b16 %v676
  %v1341 = vunpack.c.l.b16 %v677
  %v1342 = vunpack.c.h.b16 %v677
  %v1343 = vunpack.c.l.b16 %v678
  %v1344 = vunpack.c.h.b16 %v678
  %v1345 = vunpack.c.l.b16 %v679
  %v1346 = vunpack.c.h.b16 %v679
  %v1347 = vunpack.c.l.b16 %v680
  %v1348 = vunpack.c.h.b16 %v680
  %v1349 = vunpack.c.l.b16 %v681
  %v1350 = vunpack.c.h.b16 %v681
  %v1351 = vunpack.c.l.b16 %v682
  %v1352 = vunpack.c.h.b16 %v682
  %v1353 = vunpack.c.l.b16 %v683
  %v1354 = vunpack.c.h.b16 %v683
  %v1355 = vunpack.c.l.b16 %v684
  %v1356 = vunpack.c.h.b16 %v684
  %v1357 = vunpack.c.l.b16 %v685
  %v1358 = vunpack.c.h.b16 %v685
  %v1359 = vunpack.c.l.b16 %v686
  %v1360 = vunpack.c.h.b16 %v686
  %v1361 = vunpack.c.l.b16 %v687
  %v1362 = vunpack.c.h.b16 %v687
  %v1363 = vunpack.c.l.b16 %v688
  %v1364 = vunpack.c.h.b16 %v688
  %v1365 = vunpack.c.l.b16 %v689
  %v1366 = vunpack.c.h.b16 %v689
  %v1367 = vunpack.c.l.b16 %v690
  %v1368 = vunpack.c.h.b16 %v690
  %v1369 = vunpack.c.l.b16 %v691
  %v1370 = vunpack.c.h.b16 %v691
  %v1371 = vunpack.c.l.b16 %v692
  %v1372 = vunpack.c.h.b16 %v692
  %v1373 = vunpack.c.l.b16 %v693
  %v1374 = vunpack.c.h.b16 %v693
  %v1375 = vunpack.c.l.b16 %v694
  %v1376 = vunpack.c.h.b16 %v694
  %v1377 = vunpack.c.l.b16 %v695
  %v1378 = vunpack.c.h.b16 %v695
  %v1379 = vunpack.c.l.b16 %v696
  %v1380 = vunpack.c.h.b16 %v696
  %v1381 = vunpack.c.l.b16 %v697
  %v1382 = vunpack.c.h.b16 %v697
  %v1383 = vunpack.c.l.b16 %v698
  %v1384 = vunpack.c.h.b16 %v698
  %v1385 = vunpack.c.l.b16 %v699
  %v1386 = vunpack.c.h.b16 %v699
  %v1387 = vunpack.c.l.b16 %v700
  %v1388 = vunpack.c.h.b16 %v700
  %v1389 = vunpack.c.l.b16 %v701
  %v1390 = vunpack.c.h.b16 %v701
  %v1391 = vunpack.c.l.b16 %v702
  %v1392 = vunpack.c.h.b16 %v702
  %v1393 = vunpack.c.l.b16 %v703
  %v1394 = vunpack.c.h.b16 %v703
  %v1395 = vunpack.c.l.b16 %v704
  %v1396 = vunpack.c.h.b16 %v704
  %v1397 = vunpack.c.l.b16 %v705
  %v1398 = vunpack.c.h.b16 %v705
  %v1399 = vunpack.c.l.b16 %v706
  %v1400 = vunpack.c.h.b16 %v706
  %v1401 = vunpack.c.l.b16 %v707
  %v1402 = vunpack.c.h.b16 %v707
  %v1403 = vunpack.c.l.b16 %v708
  %v1404 = vunpack.c.h.b16 %v708
  %v1405 = vunpack.c.l.b16 %v709
  %v1406 = vunpack.c.h.b16 %v709
  %v1407 = vunpack.c.l.b16 %v710
  %v1408 = vunpack.c.h.b16 %v710
  %v1409 = vunpack.c.l.b16 %v711
  %v1410 = vunpack.c.h.b16 %v711
  %v1411 = vunpack.c.l.b16 %v712
  %v1412 = vunpack.c.h.b16 %v712
  %v1413 = vunpack.c.l.b16 %v713
  %v1414 = vunpack.c.h.b16 %v713
  %v1415 = vunpack.c.l.b16 %v714
  %v1416 = vunpack.c.h.b16 %v714
  %v1417 = vunpack.c.l.b16 %v715
  %v1418 = vunpack.c.h.b16 %v715
  %v1419 = vunpack.c.l.b16 %v716
  %v1420 = vunpack.c.h.b16 %v716
  %v1421 = vunpack.c.l.b16 %v717
  %v1422 = vunpack.c.h.b16 %v717
  %v1423 = vunpack.c.l.b16 %v718
  %v1424 = vunpack.c.h.b16 %v718
  %v1425 = vunpack.c.l.b16 %v719
  %v1426 = vunpack.c.h.b16 %v719
  %v1427 = vunpack.c.l.b16 %v720
  %v1428 = vunpack.c.h.b16 %v720
  %v1429 = vunpack.c.l.b16 %v721
  %v1430 = vunpack.c.h.b16 %v721
  %v1431 = vunpack.c.l.b16 %v722
  %v1432 = vunpack.c.h.b16 %v722
  %v1433 = vunpack.c.l.b16 %v723
  %v1434 = vunpack.c.h.b16 %v723
  %v1435 = vunpack.c.l.b16 %v724
  %v1436 = vunpack.c.h.b16 %v724
  %v1437 = vunpack.c.l.b16 %v725
  %v1438 = vunpack.c.h.b16 %v725
  %v1439 = vunpack.c.l.b16 %v726
  %v1440 = vunpack.c.h.b16 %v726
  %v1441 = vunpack.c.l.b16 %v727
  %v1442 = vunpack.c.h.b16 %v727
  %v1443 = vunpack.c.l.b16 %v728
  %v1444 = vunpack.c.h.b16 %v728
  %v1445 = vunpack.c.l.b16 %v729
  %v1446 = vunpack.c.h.b16 %v729
  %v1447 = vunpack.c.l.b16 %v730
  %v1448 = vunpack.c.h.b16 %v730
  %v1449 = vunpack.c.l.b16 %v731
  %v1450 = vunpack.c.h.b16 %v731
  %v1451 = vunpack.c.l.b16 %v732
  %v1452 = vunpack.c.h.b16 %v732
  %v1453 = vunpack.c.l.b16 %v733
  %v1454 = vunpack.c.h.b16 %v733
  %v1455 = vunpack.c.l.b16 %v734
  %v1456 = vunpack.c.h.b16 %v734
  %v1457 = vunpack.c.l.b16 %v735
  %v1458 = vunpack.c.h.b16 %v735
  %v1459 = vunpack.c.l.b16 %v736
  %v1460 = vunpack.c.h.b16 %v736
  %v1461 = vunpack.c.l.b16 %v737
  %v1462 = vunpack.c.h.b16 %v737
  %v1463 = vunpack.c.l.b16 %v738
  %v1464 = vunpack.c.h.b16 %v738
  %v1465 = vunpack.c.l.b16 %v739
  %v1466 = vunpack.c.h.b16 %v739
  %v1467 = vunpack.c.l.b16 %v740
  %v1468 = vunpack.c.h.b16 %v740
  %v1469 = vunpack.c.l.b16 %v741
  %v1470 = vunpack.c.h.b16 %v741
  %v1471 = vunpack.c.l.b16 %v742
  %v1472 = vunpack.c.h.b16 %v742
  %v1473 = vunpack.c.l.b16 %v743
  %v1474 = vunpack.c.h.b16 %v743
  %v1475 = vunpack.c.l.b16 %v744
  %v1476 = vunpack.c.h.b16 %v744
  %v1477 = vunpack.c.l.b16 %v745
  %v1478 = vunpack.c.h.b16 %v745
  %v1479 = vunpack.c.l.b16 %v746
  %v1480 = vunpack.c.h.b16 %v746
  %v1481 = vunpack.c.l.b16 %v747
  %v1482 = vunpack.c.h.b16 %v747
  %v1483 = vunpack.c.l.b16 %v748
  %v1484 = vunpack.c.h.b16 %v748
  %v1485 = vunpack.c.l.b16 %v749
  %v1486 = vunpack.c.h.b16 %v749
  %v1487 = vunpack.c.l.b16 %v750
  %v1488 = vunpack.c.h.b16 %v750
  %v1489 = vunpack.c.l.b16 %v751
  %v1490 = vunpack.c.h.b16 %v751
  %v1491 = vunpack.c.l.b16 %v752
  %v1492 = vunpack.c.h.b16 %v752
  %v1493 = vunpack.c.l.b16 %v753
  %v1494 = vunpack.c.h.b16 %v753
  %v1495 = vunpack.c.l.b16 %v754
  %v1496 = vunpack.c.h.b16 %v754
  %v1497 = vunpack.c.l.b16 %v755
  %v1498 = vunpack.c.h.b16 %v755
  %v1499 = vunpack.c.l.b16 %v756
  %v1500 = vunpack.c.h.b16 %v756
  %v1501 = vunpack.c.l.b16 %v757
  %v1502 = vunpack.c.h.b16 %v757
  %v1503 = vunpack.c.l.b16 %v758
  %v1504 = vunpack.c.h.b16 %v758
  %v1505 = vunpack.c.l.b16 %v759
  %v1506 = vunpack.c.h.b16 %v759
  %v1507 = vunpack.c.l.b16 %v760
  %v1508 = vunpack.c.h.b16 %v760
  %v1509 = vunpack.c.l.b16 %v761
  %v1510 = vunpack.c.h.b16 %v761
  %v1511 = vunpack.c.l.b16 %v762
  %v1512 = vunpack.c.h.b16 %v762
  %v1513 = vunpack.c.l.b16 %v763
  %v1514 = vunpack.c.h.b16 %v763
  %v1515 = vunpack.c.l.b16 %v764
  %v1516 = vunpack.c.h.b16 %v764
  %v1517 = vunpack.c.l.b16 %v765
  %v1518 = vunpack.c.h.b16 %v765
  %v1519 = vunpack.c.l.b16 %v766
  %v1520 = vunpack.c.h.b16 %v766
  %v1521 = vunpack.c.l.b16 %v767
  %v1522 = vunpack.c.h.b16 %v767
  %v1523 = vunpack.c.l.b16 %v768
  %v1524 = vunpack.c.h.b16 %v768
  %v1525 = vunpack.c.l.b16 %v769
  %v1526 = vunpack.c.h.b16 %v769
  %v1527 = vunpack.c.l.b16 %v770
  %v1528 = vunpack.c.h.b16 %v770
  %v1529 = vunpack.c.l.b16 %v771
  %v1530 = vunpack.c.h.b16 %v771
  %v1531 = vunpack.c.l.b16 %v772
  %v1532 = vunpack.c.h.b16 %v772
  %v1533 = vunpack.c.l.b16 %v773
  %v1534 = vunpack.c.h.b16 %v773
  %v1535 = vunpack.c.l.b16 %v774
  %v1536 = vunpack.c.h.b16 %v774
  %v1537 = vunpack.c.l.b16 %v775
  %v1538 = vunpack.c.h.b16 %v775
  %v1539 = vunpack.c.l.b16 %v776
  %v1540 = vunpack.c.h.b16 %v776
  %v1541 = vunpack.c.l.b16 %v777
  %v1542 = vunpack.c.h.b16 %v777
  %v1543 = vunpack.c.l.b16 %v778
  %v1544 = vunpack.c.h.b16 %v778
  %v1545 = vunpack.c.l.b16 %v779
  %v1546 = vunpack.c.h.b16 %v779
  %v1547 = vunpack.c.l.b16 %v780
  %v1548 = vunpack.c.h.b16 %v780
  %v1549 = vpack.c.b16 %v1045, %v1037
  %v1550 = vpack.c.b16 %v1046, %v1038
  %v1551 = vpack.c.b16 %v1047, %v1039
  %v1552 = vpack.c.b16 %v1048, %v1040
  %v1553 = vpack.c.b16 %v1049, %v1041
  %v1554 = vpack.c.b16 %v1050, %v1042
  %v1555 = vpack.c.b16 %v1051, %v1043
  %v1556 = vpack.c.b16 %v1052, %v1044
  %v1557 = vpack.c.b16 %v1061, %v1053
  %v1558 = vpack.c.b16 %v1062, %v1054
  %v1559 = vpack.c.b16 %v1063, %v1055
  %v1560 = vpack.c.b16 %v1064, %v1056
  %v1561 = vpack.c.b16 %v1065, %v1057
  %v1562 = vpack.c.b16 %v1066, %v1058
  %v1563 = vpack.c.b16 %v1067, %v1059
  %v1564 = vpack.c.b16 %v1068, %v1060
  %v1565 = vpack.c.b16 %v1077, %v1069
  %v1566 = vpack.c.b16 %v1078, %v1070
  %v1567 = vpack.c.b16 %v1079, %v1071
  %v1568 = vpack.c.b16 %v1080, %v1072
  %v1569 = vpack.c.b16 %v1081, %v1073
  %v1570 = vpack.c.b16 %v1082, %v1074
  %v1571 = vpack.c.b16 %v1083, %v1075
  %v1572 = vpack.c.b16 %v1084, %v1076
  %v1573 = vpack.c.b16 %v1093, %v1085
  %v1574 = vpack.c.b16 %v1094, %v1086
  %v1575 = vpack.c.b16 %v1095, %v1087
  %v1576 = vpack.c.b16 %v1096, %v1088
  %v1577 = vpack.c.b16 %v1097, %v1089
  %v1578 = vpack.c.b16 %v1098, %v1090
  %v1579 = vpack.c.b16 %v1099, %v1091
  %v1580 = vpack.c.b16 %v1100, %v1092
  %v1581 = vpack.c.b16 %v1109, %v1101
  %v1582 = vpack.c.b16 %v1110, %v1102
  %v1583 = vpack.c.b16 %v1111, %v1103
  %v1584 = vpack.c.b16 %v1112, %v1104
  %v1585 = vpack.c.b16 %v1113, %v1105
  %v1586 = vpack.c.b16 %v1114, %v1106
  %v1587 = vpack.c.b16 %v1115, %v1107
  %v1588 = vpack.c.b16 %v1116, %v1108
  %v1589 = vpack.c.b16 %v1125, %v1117
  %v1590 = vpack.c.b16 %v1126, %v1118
  %v1591 = vpack.c.b16 %v1127, %v1119
  %v1592 = vpack.c.b16 %v1128, %v1120
  %v1593 = vpack.c.b16 %v1129, %v1121
  %v1594 = vpack.c.b16 %v1130, %v1122
  %v1595 = vpack.c.b16 %v1131, %v1123
  %v1596 = vpack.c.b16 %v1132, %v1124
  %v1597 = vpack.c.b16 %v1141, %v1133
  %v1598 = vpack.c.b16 %v1142, %v1134
  %v1599 = vpack.c.b16 %v1143, %v1135
  %v1600 = vpack.c.b16 %v1144, %v1136
  %v1601 = vpack.c.b16 %v1145, %v1137
  %v1602 = vpack.c.b16 %v1146, %v1138
  %v1603 = vpack.c.b16 %v1147, %v1139
  %v1604 = vpack.c.b16 %v1148, %v1140
  %v1605 = vpack.c.b16 %v1157, %v1149
  %v1606 = vpack.c.b16 %v1158, %v1150
  %v1607 = vpack.c.b16 %v1159, %v1151
  %v1608 = vpack.c.b16 %v1160, %v1152
  %v1609 = vpack.c.b16 %v1161, %v1153
  %v1610 = vpack.c.b16 %v1162, %v1154
  %v1611 = vpack.c.b16 %v1163, %v1155
  %v1612 = vpack.c.b16 %v1164, %v1156
  %v1613 = vpack.c.b16 %v1173, %v1165
  %v1614 = vpack.c.b16 %v1174, %v1166
  %v1615 = vpack.c.b16 %v1175, %v1167
  %v1616 = vpack.c.b16 %v1176, %v1168
  %v1617 = vpack.c.b16 %v1177, %v1169
  %v1618 = vpack.c.b16 %v1178, %v1170
  %v1619 = vpack.c.b16 %v1179, %v1171
  %v1620 = vpack.c.b16 %v1180, %v1172
  %v1621 = vpack.c.b16 %v1189, %v1181
  %v1622 = vpack.c.b16 %v1190, %v1182
  %v1623 = vpack.c.b16 %v1191, %v1183
  %v1624 = vpack.c.b16 %v1192, %v1184
  %v1625 = vpack.c.b16 %v1193, %v1185
  %v1626 = vpack.c.b16 %v1194, %v1186
  %v1627 = vpack.c.b16 %v1195, %v1187
  %v1628 = vpack.c.b16 %v1196, %v1188
  %v1629 = vpack.c.b16 %v1205, %v1197
  %v1630 = vpack.c.b16 %v1206, %v1198
  %v1631 = vpack.c.b16 %v1207, %v1199
  %v1632 = vpack.c.b16 %v1208, %v1200
  %v1633 = vpack.c.b16 %v1209, %v1201
  %v1634 = vpack.c.b16 %v1210, %v1202
  %v1635 = vpack.c.b16 %v1211, %v1203
  %v1636 = vpack.c.b16 %v1212, %v1204
  %v1637 = vpack.c.b16 %v1221, %v1213
  %v1638 = vpack.c.b16 %v1222, %v1214
  %v1639 = vpack.c.b16 %v1223, %v1215
  %v1640 = vpack.c.b16 %v1224, %v1216
  %v1641 = vpack.c.b16 %v1225, %v1217
  %v1642 = vpack.c.b16 %v1226, %v1218
  %v1643 = vpack.c.b16 %v1227, %v1219
  %v1644 = vpack.c.b16 %v1228, %v1220
  %v1645 = vpack.c.b16 %v1237, %v1229
  %v1646 = vpack.c.b16 %v1238, %v1230
  %v1647 = vpack.c.b16 %v1239, %v1231
  %v1648 = vpack.c.b16 %v1240, %v1232
  %v1649 = vpack.c.b16 %v1241, %v1233
  %v1650 = vpack.c.b16 %v1242, %v1234
  %v1651 = vpack.c.b16 %v1243, %v1235
  %v1652 = vpack.c.b16 %v1244, %v1236
  %v1653 = vpack.c.b16 %v1253, %v1245
  %v1654 = vpack.c.b16 %v1254, %v1246
  %v1655 = vpack.c.b16 %v1255, %v1247
  %v1656 = vpack.c.b16 %v1256, %v1248
  %v1657 = vpack.c.b16 %v1257, %v1249
  %v1658 = vpack.c.b16 %v1258, %v1250
  %v1659 = vpack.c.b16 %v1259, %v1251
  %v1660 = vpack.c.b16 %v1260, %v1252
  %v1661 = vpack.c.b16 %v1269, %v1261
  %v1662 = vpack.c.b16 %v1270, %v1262
  %v1663 = vpack.c.b16 %v1271, %v1263
  %v1664 = vpack.c.b16 %v1272, %v1264
  %v1665 = vpack.c.b16 %v1273, %v1265
  %v1666 = vpack.c.b16 %v1274, %v1266
  %v1667 = vpack.c.b16 %v1275, %v1267
  %v1668 = vpack.c.b16 %v1276, %v1268
  %v1669 = vpack.c.b16 %v1285, %v1277
  %v1670 = vpack.c.b16 %v1286, %v1278
  %v1671 = vpack.c.b16 %v1287, %v1279
  %v1672 = vpack.c.b16 %v1288, %v1280
  %v1673 = vpack.c.b16 %v1289, %v1281
  %v1674 = vpack.c.b16 %v1290, %v1282
  %v1675 = vpack.c.b16 %v1291, %v1283
  %v1676 = vpack.c.b16 %v1292, %v1284
  %v1677 = vpack.c.b16 %v1301, %v1293
  %v1678 = vpack.c.b16 %v1302, %v1294
  %v1679 = vpack.c.b16 %v1303, %v1295
  %v1680 = vpack.c.b16 %v1304, %v1296
  %v1681 = vpack.c.b16 %v1305, %v1297
  %v1682 = vpack.c.b16 %v1306, %v1298
  %v1683 = vpack.c.b16 %v1307, %v1299
  %v1684 = vpack.c.b16 %v1308, %v1300
  %v1685 = vpack.c.b16 %v1317, %v1309
  %v1686 = vpack.c.b16 %v1318, %v1310
  %v1687 = vpack.c.b16 %v1319, %v1311
  %v1688 = vpack.c.b16 %v1320, %v1312
  %v1689 = vpack.c.b16 %v1321, %v1313
  %v1690 = vpack.c.b16 %v1322, %v1314
  %v1691 = vpack.c.b16 %v1323, %v1315
  %v1692 = vpack.c.b16 %v1324, %v1316
  %v1693 = vpack.c.b16 %v1333, %v1325
  %v1694 = vpack.c.b16 %v1334, %v1326
  %v1695 = vpack.c.b16 %v1335, %v1327
  %v1696 = vpack.c.b16 %v1336, %v1328
  %v1697 = vpack.c.b16 %v1337, %v1329
  %v1698 = vpack.c.b16 %v1338, %v1330
  %v1699 = vpack.c.b16 %v1339, %v1331
  %v1700 = vpack.c.b16 %v1340, %v1332
  %v1701 = vpack.c.b16 %v1349, %v1341
  %v1702 = vpack.c.b16 %v1350, %v1342
  %v1703 = vpack.c.b16 %v1351, %v1343
  %v1704 = vpack.c.b16 %v1352, %v1344
  %v1705 = vpack.c.b16 %v1353, %v1345
  %v1706 = vpack.c.b16 %v1354, %v1346
  %v1707 = vpack.c.b16 %v1355, %v1347
  %v1708 = vpack.c.b16 %v1356, %v1348
  %v1709 = vpack.c.b16 %v1365, %v1357
  %v1710 = vpack.c.b16 %v1366, %v1358
  %v1711 = vpack.c.b16 %v1367, %v1359
  %v1712 = vpack.c.b16 %v1368, %v1360
  %v1713 = vpack.c.b16 %v1369, %v1361
  %v1714 = vpack.c.b16 %v1370, %v1362
  %v1715 = vpack.c.b16 %v1371, %v1363
  %v1716 = vpack.c.b16 %v1372, %v1364
  %v1717 = vpack.c.b16 %v1381, %v1373
  %v1718 = vpack.c.b16 %v1382, %v1374
  %v1719 = vpack.c.b16 %v1383, %v1375
  %v1720 = vpack.c.b16 %v1384, %v1376
  %v1721 = vpack.c.b16 %v1385, %v1377
  %v1722 = vpack.c.b16 %v1386, %v1378
  %v1723 = vpack.c.b16 %v1387, %v1379
  %v1724 = vpack.c.b16 %v1388, %v1380
  %v1725 = vpack.c.b16 %v1397, %v1389
  %v1726 = vpack.c.b16 %v1398, %v1390
  %v1727 = vpack.c.b16 %v1399, %v1391
  %v1728 = vpack.c.b16 %v1400, %v1392
  %v1729 = vpack.c.b16 %v1401, %v1393
  %v1730 = vpack.c.b16 %v1402, %v1394
  %v1731 = vpack.c.b16 %v1403, %v1395
  %v1732 = vpack.c.b16 %v1404, %v1396
  %v1733 = vpack.c.b16 %v1413, %v1405
  %v1734 = vpack.c.b16 %v1414, %v1406
  %v1735 = vpack.c.b16 %v1415, %v1407
  %v1736 = vpack.c.b16 %v1416, %v1408
  %v1737 = vpack.c.b16 %v1417, %v1409
  %v1738 = vpack.c.b16 %v1418, %v1410
  %v1739 = vpack.c.b16 %v1419, %v1411
  %v1740 = vpack.c.b16 %v1420, %v1412
  %v1741 = vpack.c.b16 %v1429, %v1421
  %v1742 = vpack.c.b16 %v1430, %v1422
  %v1743 = vpack.c.b16 %v1431, %v1423
  %v1744 = vpack.c.b16 %v1432, %v1424
  %v1745 = vpack.c.b16 %v1433, %v1425
  %v1746 = vpack.c.b16 %v1434, %v1426
  %v1747 = vpack.c.b16 %v1435, %v1427
  %v1748 = vpack.c.b16 %v1436, %v1428
  %v1749 = vpack.c.b16 %v1445, %v1437
  %v1750 = vpack.c.b16 %v1446, %v1438
  %v1751 = vpack.c.b16 %v1447, %v1439
  %v1752 = vpack.c.b16 %v1448, %v1440
  %v1753 = vpack.c.b16 %v1449, %v1441
  %v1754 = vpack.c.b16 %v1450, %v1442
  %v1755 = vpack.c.b16 %v1451, %v1443
  %v1756 = vpack.c.b16 %v1452, %v1444
  %v1757 = vpack.c.b16 %v1461, %v1453
  %v1758 = vpack.c.b16 %v1462, %v1454
  %v1759 = vpack.c.b16 %v1463, %v1455
  %v1760 = vpack.c.b16 %v1464, %v1456
  %v1761 = vpack.c.b16 %v1465, %v1457
  %v1762 = vpack.c.b16 %v1466, %v1458
  %v1763 = vpack.c.b16 %v1467, %v1459
  %v1764 = vpack.c.b16 %v1468, %v1460
  %v1765 = vpack.c.b16 %v1477, %v1469
  %v1766 = vpack.c.b16 %v1478, %v1470
  %v1767 = vpack.c.b16 %v1479, %v1471
  %v1768 = vpack.c.b16 %v1480, %v1472
  %v1769 = vpack.c.b16 %v1481, %v1473
  %v1770 = vpack.c.b16 %v1482, %v1474
  %v1771 = vpack.c.b16 %v1483, %v1475
  %v1772 = vpack.c.b16 %v1484, %v1476
  %v1773 = vpack.c.b16 %v1493, %v1485
  %v1774 = vpack.c.b16 %v1494, %v1486
  %v1775 = vpack.c.b16 %v1495, %v1487
  %v1776 = vpack.c.b16 %v1496, %v1488
  %v1777 = vpack.c.b16 %v1497, %v1489
  %v1778 = vpack.c.b16 %v1498, %v1490
  %v1779 = vpack.c.b16 %v1499, %v1491
  %v1780 = vpack.c.b16 %v1500, %v1492
  %v1781 = vpack.c.b16 %v1509, %v1501
  %v1782 = vpack.c.b16 %v1510, %v1502
  %v1783 = vpack.c.b16 %v1511, %v1503
  %v1784 = vpack.c.b16 %v1512, %v1504
  %v1785 = vpack.c.b16 %v1513, %v1505
  %v1786 = vpack.c.b16 %v1514, %v1506
  %v1787 = vpack.c.b16 %v1515, %v1507
  %v1788 = vpack.c.b16 %v1516, %v1508
  %v1789 = vpack.c.b16 %v1525, %v1517
  %v1790 = vpack.c.b16 %v1526, %v1518
  %v1791 = vpack.c.b16 %v1527, %v1519
  %v1792 = vpack.c.b16 %v1528, %v1520
  %v1793 = vpack.c.b16 %v1529, %v1521
  %v1794 = vpack.c.b16 %v1530, %v1522
  %v1795 = vpack.c.b16 %v1531, %v1523
  %v1796 = vpack.c.b16 %v1532, %v1524
  %v1797 = vpack.c.b16 %v1541, %v1533
  %v1798 = vpack.c.b16 %v1542, %v1534
  %v1799 = vpack.c.b16 %v1543, %v1535
  %v1800 = vpack.c.b16 %v1544, %v1536
  %v1801 = vpack.c.b16 %v1545, %v1537
  %v1802 = vpack.c.b16 %v1546, %v1538
  %v1803 = vpack.c.b16 %v1547, %v1539
  %v1804 = vpack.c.b16 %v1548, %v1540
  %2061 = vmatprep.subr.bf16.mxu0 %v1606
  %2062 = vmatpush1.bf16.msra.mxu0 %v1605
  %2063 = vmatprep.subr.bf16.mxu0 %v1598
  %2064 = vmatpush1.bf16.msra.mxu0 %v1597
  %2065 = vmatprep.subr.bf16.mxu0 %v1590
  %2066 = vmatpush1.bf16.msra.mxu0 %v1589
  %2067 = vmatprep.subr.bf16.mxu0 %v1582
  %2068 = vmatpush1.bf16.msra.mxu0 %v1581
  %2069 = vmatprep.subr.bf16.mxu0 %v1574
  %2070 = vmatpush1.bf16.msra.mxu0 %v1573
  %2071 = vmatprep.subr.bf16.mxu0 %v1566
  %2072 = vmatpush1.bf16.msra.mxu0 %v1565
  %2073 = vmatprep.subr.bf16.mxu0 %v1558
  %2074 = vmatpush1.bf16.msra.mxu0 %v1557
  %2075 = vmatprep.subr.bf16.mxu0 %v1550
  %2076 = vmatpush1.bf16.msra.mxu0 %v1549
  %2077 = vmatprep.subr.bf16.mxu0 %v1670
  %2078 = vmatpush2.bf16.msra.mxu0 %v1669
  %2079 = vmatprep.subr.bf16.mxu0 %v1662
  %2080 = vmatpush2.bf16.msra.mxu0 %v1661
  %2081 = vmatprep.subr.bf16.mxu0 %v1654
  %2082 = vmatpush2.bf16.msra.mxu0 %v1653
  %2083 = vmatprep.subr.bf16.mxu0 %v1646
  %2084 = vmatpush2.bf16.msra.mxu0 %v1645
  %2085 = vmatprep.subr.bf16.mxu0 %v1638
  %2086 = vmatpush2.bf16.msra.mxu0 %v1637
  %2087 = vmatprep.subr.bf16.mxu0 %v1630
  %2088 = vmatpush2.bf16.msra.mxu0 %v1629
  %2089 = vmatprep.subr.bf16.mxu0 %v1622
  %2090 = vmatpush2.bf16.msra.mxu0 %v1621
  %2091 = vmatprep.subr.bf16.mxu0 %v1614
  %2092 = vmatpush2.bf16.msra.mxu0 %v1613
  %2093 = vmatprep.mubr.bf16.mxu0 %v266
  %2094 = vmatmul.mubr.bf16.gmra.mxu0 %v265
  %v2095 = vpop.f32.mrf.mxu0
  %v2096 = vadd.f32 0.0, %v2095
  %v2097 = vpop.f32.mrf.mxu0
  %v2098 = vadd.f32 0.0, %v2097
  %v2099 = vpop.f32.mrf.mxu0
  %v2100 = vpop.f32.mrf.mxu0
  %2101 = vdwg.mxu0
  %2102 = vmatprep.subr.bf16.mxu0 %v1734
  %2103 = vmatpush1.bf16.msra.mxu0 %v1733
  %2104 = vmatprep.subr.bf16.mxu0 %v1726
  %2105 = vmatpush1.bf16.msra.mxu0 %v1725
  %2106 = vmatprep.subr.bf16.mxu0 %v1718
  %2107 = vmatpush1.bf16.msra.mxu0 %v1717
  %2108 = vmatprep.subr.bf16.mxu0 %v1710
  %2109 = vmatpush1.bf16.msra.mxu0 %v1709
  %2110 = vmatprep.subr.bf16.mxu0 %v1702
  %2111 = vmatpush1.bf16.msra.mxu0 %v1701
  %2112 = vmatprep.subr.bf16.mxu0 %v1694
  %2113 = vmatpush1.bf16.msra.mxu0 %v1693
  %2114 = vmatprep.subr.bf16.mxu0 %v1686
  %2115 = vmatpush1.bf16.msra.mxu0 %v1685
  %2116 = vmatprep.subr.bf16.mxu0 %v1678
  %2117 = vmatpush1.bf16.msra.mxu0 %v1677
  %2118 = vmatprep.subr.bf16.mxu0 %v1798
  %2119 = vmatpush2.bf16.msra.mxu0 %v1797
  %2120 = vmatprep.subr.bf16.mxu0 %v1790
  %2121 = vmatpush2.bf16.msra.mxu0 %v1789
  %2122 = vmatprep.subr.bf16.mxu0 %v1782
  %2123 = vmatpush2.bf16.msra.mxu0 %v1781
  %2124 = vmatprep.subr.bf16.mxu0 %v1774
  %2125 = vmatpush2.bf16.msra.mxu0 %v1773
  %2126 = vmatprep.subr.bf16.mxu0 %v1766
  %2127 = vmatpush2.bf16.msra.mxu0 %v1765
  %2128 = vmatprep.subr.bf16.mxu0 %v1758
  %2129 = vmatpush2.bf16.msra.mxu0 %v1757
  %2130 = vmatprep.subr.bf16.mxu0 %v1750
  %2131 = vmatpush2.bf16.msra.mxu0 %v1749
  %2132 = vmatprep.subr.bf16.mxu0 %v1742
  %2133 = vmatpush2.bf16.msra.mxu0 %v1741
  %2134 = vmatprep.mubr.bf16.mxu0 %v268
  %2135 = vmatmul.mubr.bf16.gmra.mxu0 %v267
  %v2136 = vpop.f32.mrf.mxu0
  %v2137 = vadd.f32 %v2096, %v2136
  %v2138 = vpop.f32.mrf.mxu0
  %v2139 = vadd.f32 %v2098, %v2138
  %v2140 = vpop.f32.mrf.mxu0
  %v2141 = vpop.f32.mrf.mxu0
  %2142 = vdwg.mxu0
  %2143 = vmatprep.subr.bf16.mxu0 %v1608
  %2144 = vmatpush1.bf16.msra.mxu0 %v1607
  %2145 = vmatprep.subr.bf16.mxu0 %v1600
  %2146 = vmatpush1.bf16.msra.mxu0 %v1599
  %2147 = vmatprep.subr.bf16.mxu0 %v1592
  %2148 = vmatpush1.bf16.msra.mxu0 %v1591
  %2149 = vmatprep.subr.bf16.mxu0 %v1584
  %2150 = vmatpush1.bf16.msra.mxu0 %v1583
  %2151 = vmatprep.subr.bf16.mxu0 %v1576
  %2152 = vmatpush1.bf16.msra.mxu0 %v1575
  %2153 = vmatprep.subr.bf16.mxu0 %v1568
  %2154 = vmatpush1.bf16.msra.mxu0 %v1567
  %2155 = vmatprep.subr.bf16.mxu0 %v1560
  %2156 = vmatpush1.bf16.msra.mxu0 %v1559
  %2157 = vmatprep.subr.bf16.mxu0 %v1552
  %2158 = vmatpush1.bf16.msra.mxu0 %v1551
  %2159 = vmatprep.subr.bf16.mxu0 %v1672
  %2160 = vmatpush2.bf16.msra.mxu0 %v1671
  %2161 = vmatprep.subr.bf16.mxu0 %v1664
  %2162 = vmatpush2.bf16.msra.mxu0 %v1663
  %2163 = vmatprep.subr.bf16.mxu0 %v1656
  %2164 = vmatpush2.bf16.msra.mxu0 %v1655
  %2165 = vmatprep.subr.bf16.mxu0 %v1648
  %2166 = vmatpush2.bf16.msra.mxu0 %v1647
  %2167 = vmatprep.subr.bf16.mxu0 %v1640
  %2168 = vmatpush2.bf16.msra.mxu0 %v1639
  %2169 = vmatprep.subr.bf16.mxu0 %v1632
  %2170 = vmatpush2.bf16.msra.mxu0 %v1631
  %2171 = vmatprep.subr.bf16.mxu0 %v1624
  %2172 = vmatpush2.bf16.msra.mxu0 %v1623
  %2173 = vmatprep.subr.bf16.mxu0 %v1616
  %2174 = vmatpush2.bf16.msra.mxu0 %v1615
  %2175 = vmatprep.mubr.bf16.mxu0 %v266
  %2176 = vmatmul.mubr.bf16.gmra.mxu0 %v265
  %v2177 = vpop.f32.mrf.mxu0
  %v2178 = vadd.f32 0.0, %v2177
  %v2179 = vpop.f32.mrf.mxu0
  %v2180 = vadd.f32 0.0, %v2179
  %v2181 = vpop.f32.mrf.mxu0
  %v2182 = vpop.f32.mrf.mxu0
  %2183 = vdwg.mxu0
  %2184 = vmatprep.subr.bf16.mxu0 %v1736
  %2185 = vmatpush1.bf16.msra.mxu0 %v1735
  %2186 = vmatprep.subr.bf16.mxu0 %v1728
  %2187 = vmatpush1.bf16.msra.mxu0 %v1727
  %2188 = vmatprep.subr.bf16.mxu0 %v1720
  %2189 = vmatpush1.bf16.msra.mxu0 %v1719
  %2190 = vmatprep.subr.bf16.mxu0 %v1712
  %2191 = vmatpush1.bf16.msra.mxu0 %v1711
  %2192 = vmatprep.subr.bf16.mxu0 %v1704
  %2193 = vmatpush1.bf16.msra.mxu0 %v1703
  %2194 = vmatprep.subr.bf16.mxu0 %v1696
  %2195 = vmatpush1.bf16.msra.mxu0 %v1695
  %2196 = vmatprep.subr.bf16.mxu0 %v1688
  %2197 = vmatpush1.bf16.msra.mxu0 %v1687
  %2198 = vmatprep.subr.bf16.mxu0 %v1680
  %2199 = vmatpush1.bf16.msra.mxu0 %v1679
  %2200 = vmatprep.subr.bf16.mxu0 %v1800
  %2201 = vmatpush2.bf16.msra.mxu0 %v1799
  %2202 = vmatprep.subr.bf16.mxu0 %v1792
  %2203 = vmatpush2.bf16.msra.mxu0 %v1791
  %2204 = vmatprep.subr.bf16.mxu0 %v1784
  %2205 = vmatpush2.bf16.msra.mxu0 %v1783
  %2206 = vmatprep.subr.bf16.mxu0 %v1776
  %2207 = vmatpush2.bf16.msra.mxu0 %v1775
  %2208 = vmatprep.subr.bf16.mxu0 %v1768
  %2209 = vmatpush2.bf16.msra.mxu0 %v1767
  %2210 = vmatprep.subr.bf16.mxu0 %v1760
  %2211 = vmatpush2.bf16.msra.mxu0 %v1759
  %2212 = vmatprep.subr.bf16.mxu0 %v1752
  %2213 = vmatpush2.bf16.msra.mxu0 %v1751
  %2214 = vmatprep.subr.bf16.mxu0 %v1744
  %2215 = vmatpush2.bf16.msra.mxu0 %v1743
  %2216 = vmatprep.mubr.bf16.mxu0 %v268
  %2217 = vmatmul.mubr.bf16.gmra.mxu0 %v267
  %v2218 = vpop.f32.mrf.mxu0
  %v2219 = vadd.f32 %v2178, %v2218
  %v2220 = vpop.f32.mrf.mxu0
  %v2221 = vadd.f32 %v2180, %v2220
  %v2222 = vpop.f32.mrf.mxu0
  %v2223 = vpop.f32.mrf.mxu0
  %2224 = vdwg.mxu0
  %2225 = vmatprep.subr.bf16.mxu0 %v1610
  %2226 = vmatpush1.bf16.msra.mxu0 %v1609
  %2227 = vmatprep.subr.bf16.mxu0 %v1602
  %2228 = vmatpush1.bf16.msra.mxu0 %v1601
  %2229 = vmatprep.subr.bf16.mxu0 %v1594
  %2230 = vmatpush1.bf16.msra.mxu0 %v1593
  %2231 = vmatprep.subr.bf16.mxu0 %v1586
  %2232 = vmatpush1.bf16.msra.mxu0 %v1585
  %2233 = vmatprep.subr.bf16.mxu0 %v1578
  %2234 = vmatpush1.bf16.msra.mxu0 %v1577
  %2235 = vmatprep.subr.bf16.mxu0 %v1570
  %2236 = vmatpush1.bf16.msra.mxu0 %v1569
  %2237 = vmatprep.subr.bf16.mxu0 %v1562
  %2238 = vmatpush1.bf16.msra.mxu0 %v1561
  %2239 = vmatprep.subr.bf16.mxu0 %v1554
  %2240 = vmatpush1.bf16.msra.mxu0 %v1553
  %2241 = vmatprep.subr.bf16.mxu0 %v1674
  %2242 = vmatpush2.bf16.msra.mxu0 %v1673
  %2243 = vmatprep.subr.bf16.mxu0 %v1666
  %2244 = vmatpush2.bf16.msra.mxu0 %v1665
  %2245 = vmatprep.subr.bf16.mxu0 %v1658
  %2246 = vmatpush2.bf16.msra.mxu0 %v1657
  %2247 = vmatprep.subr.bf16.mxu0 %v1650
  %2248 = vmatpush2.bf16.msra.mxu0 %v1649
  %2249 = vmatprep.subr.bf16.mxu0 %v1642
  %2250 = vmatpush2.bf16.msra.mxu0 %v1641
  %2251 = vmatprep.subr.bf16.mxu0 %v1634
  %2252 = vmatpush2.bf16.msra.mxu0 %v1633
  %2253 = vmatprep.subr.bf16.mxu0 %v1626
  %2254 = vmatpush2.bf16.msra.mxu0 %v1625
  %2255 = vmatprep.subr.bf16.mxu0 %v1618
  %2256 = vmatpush2.bf16.msra.mxu0 %v1617
  %2257 = vmatprep.mubr.bf16.mxu0 %v266
  %2258 = vmatmul.mubr.bf16.gmra.mxu0 %v265
  %v2259 = vpop.f32.mrf.mxu0
  %v2260 = vadd.f32 0.0, %v2259
  %v2261 = vpop.f32.mrf.mxu0
  %v2262 = vadd.f32 0.0, %v2261
  %v2263 = vpop.f32.mrf.mxu0
  %v2264 = vpop.f32.mrf.mxu0
  %2265 = vdwg.mxu0
  %2266 = vmatprep.subr.bf16.mxu0 %v1738
  %2267 = vmatpush1.bf16.msra.mxu0 %v1737
  %2268 = vmatprep.subr.bf16.mxu0 %v1730
  %2269 = vmatpush1.bf16.msra.mxu0 %v1729
  %2270 = vmatprep.subr.bf16.mxu0 %v1722
  %2271 = vmatpush1.bf16.msra.mxu0 %v1721
  %2272 = vmatprep.subr.bf16.mxu0 %v1714
  %2273 = vmatpush1.bf16.msra.mxu0 %v1713
  %2274 = vmatprep.subr.bf16.mxu0 %v1706
  %2275 = vmatpush1.bf16.msra.mxu0 %v1705
  %2276 = vmatprep.subr.bf16.mxu0 %v1698
  %2277 = vmatpush1.bf16.msra.mxu0 %v1697
  %2278 = vmatprep.subr.bf16.mxu0 %v1690
  %2279 = vmatpush1.bf16.msra.mxu0 %v1689
  %2280 = vmatprep.subr.bf16.mxu0 %v1682
  %2281 = vmatpush1.bf16.msra.mxu0 %v1681
  %2282 = vmatprep.subr.bf16.mxu0 %v1802
  %2283 = vmatpush2.bf16.msra.mxu0 %v1801
  %2284 = vmatprep.subr.bf16.mxu0 %v1794
  %2285 = vmatpush2.bf16.msra.mxu0 %v1793
  %2286 = vmatprep.subr.bf16.mxu0 %v1786
  %2287 = vmatpush2.bf16.msra.mxu0 %v1785
  %2288 = vmatprep.subr.bf16.mxu0 %v1778
  %2289 = vmatpush2.bf16.msra.mxu0 %v1777
  %2290 = vmatprep.subr.bf16.mxu0 %v1770
  %2291 = vmatpush2.bf16.msra.mxu0 %v1769
  %2292 = vmatprep.subr.bf16.mxu0 %v1762
  %2293 = vmatpush2.bf16.msra.mxu0 %v1761
  %2294 = vmatprep.subr.bf16.mxu0 %v1754
  %2295 = vmatpush2.bf16.msra.mxu0 %v1753
  %2296 = vmatprep.subr.bf16.mxu0 %v1746
  %2297 = vmatpush2.bf16.msra.mxu0 %v1745
  %2298 = vmatprep.mubr.bf16.mxu0 %v268
  %2299 = vmatmul.mubr.bf16.gmra.mxu0 %v267
  %v2300 = vpop.f32.mrf.mxu0
  %v2301 = vadd.f32 %v2260, %v2300
  %v2302 = vpop.f32.mrf.mxu0
  %v2303 = vadd.f32 %v2262, %v2302
  %v2304 = vpop.f32.mrf.mxu0
  %v2305 = vpop.f32.mrf.mxu0
  %2306 = vdwg.mxu0
  %2307 = vmatprep.subr.bf16.mxu0 %v1612
  %2308 = vmatpush1.bf16.msra.mxu0 %v1611
  %2309 = vmatprep.subr.bf16.mxu0 %v1604
  %2310 = vmatpush1.bf16.msra.mxu0 %v1603
  %2311 = vmatprep.subr.bf16.mxu0 %v1596
  %2312 = vmatpush1.bf16.msra.mxu0 %v1595
  %2313 = vmatprep.subr.bf16.mxu0 %v1588
  %2314 = vmatpush1.bf16.msra.mxu0 %v1587
  %2315 = vmatprep.subr.bf16.mxu0 %v1580
  %2316 = vmatpush1.bf16.msra.mxu0 %v1579
  %2317 = vmatprep.subr.bf16.mxu0 %v1572
  %2318 = vmatpush1.bf16.msra.mxu0 %v1571
  %2319 = vmatprep.subr.bf16.mxu0 %v1564
  %2320 = vmatpush1.bf16.msra.mxu0 %v1563
  %2321 = vmatprep.subr.bf16.mxu0 %v1556
  %2322 = vmatpush1.bf16.msra.mxu0 %v1555
  %2323 = vmatprep.subr.bf16.mxu0 %v1676
  %2324 = vmatpush2.bf16.msra.mxu0 %v1675
  %2325 = vmatprep.subr.bf16.mxu0 %v1668
  %2326 = vmatpush2.bf16.msra.mxu0 %v1667
  %2327 = vmatprep.subr.bf16.mxu0 %v1660
  %2328 = vmatpush2.bf16.msra.mxu0 %v1659
  %2329 = vmatprep.subr.bf16.mxu0 %v1652
  %2330 = vmatpush2.bf16.msra.mxu0 %v1651
  %2331 = vmatprep.subr.bf16.mxu0 %v1644
  %2332 = vmatpush2.bf16.msra.mxu0 %v1643
  %2333 = vmatprep.subr.bf16.mxu0 %v1636
  %2334 = vmatpush2.bf16.msra.mxu0 %v1635
  %2335 = vmatprep.subr.bf16.mxu0 %v1628
  %2336 = vmatpush2.bf16.msra.mxu0 %v1627
  %2337 = vmatprep.subr.bf16.mxu0 %v1620
  %2338 = vmatpush2.bf16.msra.mxu0 %v1619
  %2339 = vmatprep.mubr.bf16.mxu0 %v266
  %2340 = vmatmul.mubr.bf16.gmra.mxu0 %v265
  %v2341 = vpop.f32.mrf.mxu0
  %v2342 = vadd.f32 0.0, %v2341
  %v2343 = vpop.f32.mrf.mxu0
  %v2344 = vadd.f32 0.0, %v2343
  %v2345 = vpop.f32.mrf.mxu0
  %v2346 = vpop.f32.mrf.mxu0
  %2347 = vdwg.mxu0
  %2348 = vmatprep.subr.bf16.mxu0 %v1740
  %2349 = vmatpush1.bf16.msra.mxu0 %v1739
  %2350 = vmatprep.subr.bf16.mxu0 %v1732
  %2351 = vmatpush1.bf16.msra.mxu0 %v1731
  %2352 = vmatprep.subr.bf16.mxu0 %v1724
  %2353 = vmatpush1.bf16.msra.mxu0 %v1723
  %2354 = vmatprep.subr.bf16.mxu0 %v1716
  %2355 = vmatpush1.bf16.msra.mxu0 %v1715
  %2356 = vmatprep.subr.bf16.mxu0 %v1708
  %2357 = vmatpush1.bf16.msra.mxu0 %v1707
  %2358 = vmatprep.subr.bf16.mxu0 %v1700
  %2359 = vmatpush1.bf16.msra.mxu0 %v1699
  %2360 = vmatprep.subr.bf16.mxu0 %v1692
  %2361 = vmatpush1.bf16.msra.mxu0 %v1691
  %2362 = vmatprep.subr.bf16.mxu0 %v1684
  %2363 = vmatpush1.bf16.msra.mxu0 %v1683
  %2364 = vmatprep.subr.bf16.mxu0 %v1804
  %2365 = vmatpush2.bf16.msra.mxu0 %v1803
  %2366 = vmatprep.subr.bf16.mxu0 %v1796
  %2367 = vmatpush2.bf16.msra.mxu0 %v1795
  %2368 = vmatprep.subr.bf16.mxu0 %v1788
  %2369 = vmatpush2.bf16.msra.mxu0 %v1787
  %2370 = vmatprep.subr.bf16.mxu0 %v1780
  %2371 = vmatpush2.bf16.msra.mxu0 %v1779
  %2372 = vmatprep.subr.bf16.mxu0 %v1772
  %2373 = vmatpush2.bf16.msra.mxu0 %v1771
  %2374 = vmatprep.subr.bf16.mxu0 %v1764
  %2375 = vmatpush2.bf16.msra.mxu0 %v1763
  %2376 = vmatprep.subr.bf16.mxu0 %v1756
  %2377 = vmatpush2.bf16.msra.mxu0 %v1755
  %2378 = vmatprep.subr.bf16.mxu0 %v1748
  %2379 = vmatpush2.bf16.msra.mxu0 %v1747
  %2380 = vmatprep.mubr.bf16.mxu0 %v268
  %2381 = vmatmul.mubr.bf16.gmra.mxu0 %v267
  %v2382 = vpop.f32.mrf.mxu0
  %v2383 = vadd.f32 %v2342, %v2382
  %v2384 = vpop.f32.mrf.mxu0
  %v2385 = vadd.f32 %v2344, %v2384
  %v2386 = vpop.f32.mrf.mxu0
  %v2387 = vpop.f32.mrf.mxu0
  %2388 = vdwg.mxu0
  %v2645 = vunpack.c.l.b16 %v269
  %v2646 = vunpack.c.h.b16 %v269
  %v2647 = vunpack.c.l.b16 %v270
  %v2648 = vunpack.c.h.b16 %v270
  %v2649 = vunpack.c.l.b16 %v271
  %v2650 = vunpack.c.h.b16 %v271
  %v2651 = vunpack.c.l.b16 %v272
  %v2652 = vunpack.c.h.b16 %v272
  %v2653 = vunpack.c.l.b16 %v273
  %v2654 = vunpack.c.h.b16 %v273
  %v2655 = vunpack.c.l.b16 %v274
  %v2656 = vunpack.c.h.b16 %v274
  %v2657 = vunpack.c.l.b16 %v275
  %v2658 = vunpack.c.h.b16 %v275
  %v2659 = vunpack.c.l.b16 %v276
  %v2660 = vunpack.c.h.b16 %v276
  %v2661 = vunpack.c.l.b16 %v277
  %v2662 = vunpack.c.h.b16 %v277
  %v2663 = vunpack.c.l.b16 %v278
  %v2664 = vunpack.c.h.b16 %v278
  %v2665 = vunpack.c.l.b16 %v279
  %v2666 = vunpack.c.h.b16 %v279
  %v2667 = vunpack.c.l.b16 %v280
  %v2668 = vunpack.c.h.b16 %v280
  %v2669 = vunpack.c.l.b16 %v281
  %v2670 = vunpack.c.h.b16 %v281
  %v2671 = vunpack.c.l.b16 %v282
  %v2672 = vunpack.c.h.b16 %v282
  %v2673 = vunpack.c.l.b16 %v283
  %v2674 = vunpack.c.h.b16 %v283
  %v2675 = vunpack.c.l.b16 %v284
  %v2676 = vunpack.c.h.b16 %v284
  %v2677 = vunpack.c.l.b16 %v285
  %v2678 = vunpack.c.h.b16 %v285
  %v2679 = vunpack.c.l.b16 %v286
  %v2680 = vunpack.c.h.b16 %v286
  %v2681 = vunpack.c.l.b16 %v287
  %v2682 = vunpack.c.h.b16 %v287
  %v2683 = vunpack.c.l.b16 %v288
  %v2684 = vunpack.c.h.b16 %v288
  %v2685 = vunpack.c.l.b16 %v289
  %v2686 = vunpack.c.h.b16 %v289
  %v2687 = vunpack.c.l.b16 %v290
  %v2688 = vunpack.c.h.b16 %v290
  %v2689 = vunpack.c.l.b16 %v291
  %v2690 = vunpack.c.h.b16 %v291
  %v2691 = vunpack.c.l.b16 %v292
  %v2692 = vunpack.c.h.b16 %v292
  %v2693 = vunpack.c.l.b16 %v293
  %v2694 = vunpack.c.h.b16 %v293
  %v2695 = vunpack.c.l.b16 %v294
  %v2696 = vunpack.c.h.b16 %v294
  %v2697 = vunpack.c.l.b16 %v295
  %v2698 = vunpack.c.h.b16 %v295
  %v2699 = vunpack.c.l.b16 %v296
  %v2700 = vunpack.c.h.b16 %v296
  %v2701 = vunpack.c.l.b16 %v297
  %v2702 = vunpack.c.h.b16 %v297
  %v2703 = vunpack.c.l.b16 %v298
  %v2704 = vunpack.c.h.b16 %v298
  %v2705 = vunpack.c.l.b16 %v299
  %v2706 = vunpack.c.h.b16 %v299
  %v2707 = vunpack.c.l.b16 %v300
  %v2708 = vunpack.c.h.b16 %v300
  %v2709 = vunpack.c.l.b16 %v301
  %v2710 = vunpack.c.h.b16 %v301
  %v2711 = vunpack.c.l.b16 %v302
  %v2712 = vunpack.c.h.b16 %v302
  %v2713 = vunpack.c.l.b16 %v303
  %v2714 = vunpack.c.h.b16 %v303
  %v2715 = vunpack.c.l.b16 %v304
  %v2716 = vunpack.c.h.b16 %v304
  %v2717 = vunpack.c.l.b16 %v305
  %v2718 = vunpack.c.h.b16 %v305
  %v2719 = vunpack.c.l.b16 %v306
  %v2720 = vunpack.c.h.b16 %v306
  %v2721 = vunpack.c.l.b16 %v307
  %v2722 = vunpack.c.h.b16 %v307
  %v2723 = vunpack.c.l.b16 %v308
  %v2724 = vunpack.c.h.b16 %v308
  %v2725 = vunpack.c.l.b16 %v309
  %v2726 = vunpack.c.h.b16 %v309
  %v2727 = vunpack.c.l.b16 %v310
  %v2728 = vunpack.c.h.b16 %v310
  %v2729 = vunpack.c.l.b16 %v311
  %v2730 = vunpack.c.h.b16 %v311
  %v2731 = vunpack.c.l.b16 %v312
  %v2732 = vunpack.c.h.b16 %v312
  %v2733 = vunpack.c.l.b16 %v313
  %v2734 = vunpack.c.h.b16 %v313
  %v2735 = vunpack.c.l.b16 %v314
  %v2736 = vunpack.c.h.b16 %v314
  %v2737 = vunpack.c.l.b16 %v315
  %v2738 = vunpack.c.h.b16 %v315
  %v2739 = vunpack.c.l.b16 %v316
  %v2740 = vunpack.c.h.b16 %v316
  %v2741 = vunpack.c.l.b16 %v317
  %v2742 = vunpack.c.h.b16 %v317
  %v2743 = vunpack.c.l.b16 %v318
  %v2744 = vunpack.c.h.b16 %v318
  %v2745 = vunpack.c.l.b16 %v319
  %v2746 = vunpack.c.h.b16 %v319
  %v2747 = vunpack.c.l.b16 %v320
  %v2748 = vunpack.c.h.b16 %v320
  %v2749 = vunpack.c.l.b16 %v321
  %v2750 = vunpack.c.h.b16 %v321
  %v2751 = vunpack.c.l.b16 %v322
  %v2752 = vunpack.c.h.b16 %v322
  %v2753 = vunpack.c.l.b16 %v323
  %v2754 = vunpack.c.h.b16 %v323
  %v2755 = vunpack.c.l.b16 %v324
  %v2756 = vunpack.c.h.b16 %v324
  %v2757 = vunpack.c.l.b16 %v325
  %v2758 = vunpack.c.h.b16 %v325
  %v2759 = vunpack.c.l.b16 %v326
  %v2760 = vunpack.c.h.b16 %v326
  %v2761 = vunpack.c.l.b16 %v327
  %v2762 = vunpack.c.h.b16 %v327
  %v2763 = vunpack.c.l.b16 %v328
  %v2764 = vunpack.c.h.b16 %v328
  %v2765 = vunpack.c.l.b16 %v329
  %v2766 = vunpack.c.h.b16 %v329
  %v2767 = vunpack.c.l.b16 %v330
  %v2768 = vunpack.c.h.b16 %v330
  %v2769 = vunpack.c.l.b16 %v331
  %v2770 = vunpack.c.h.b16 %v331
  %v2771 = vunpack.c.l.b16 %v332
  %v2772 = vunpack.c.h.b16 %v332
  %v2773 = vunpack.c.l.b16 %v333
  %v2774 = vunpack.c.h.b16 %v333
  %v2775 = vunpack.c.l.b16 %v334
  %v2776 = vunpack.c.h.b16 %v334
  %v2777 = vunpack.c.l.b16 %v335
  %v2778 = vunpack.c.h.b16 %v335
  %v2779 = vunpack.c.l.b16 %v336
  %v2780 = vunpack.c.h.b16 %v336
  %v2781 = vunpack.c.l.b16 %v337
  %v2782 = vunpack.c.h.b16 %v337
  %v2783 = vunpack.c.l.b16 %v338
  %v2784 = vunpack.c.h.b16 %v338
  %v2785 = vunpack.c.l.b16 %v339
  %v2786 = vunpack.c.h.b16 %v339
  %v2787 = vunpack.c.l.b16 %v340
  %v2788 = vunpack.c.h.b16 %v340
  %v2789 = vunpack.c.l.b16 %v341
  %v2790 = vunpack.c.h.b16 %v341
  %v2791 = vunpack.c.l.b16 %v342
  %v2792 = vunpack.c.h.b16 %v342
  %v2793 = vunpack.c.l.b16 %v343
  %v2794 = vunpack.c.h.b16 %v343
  %v2795 = vunpack.c.l.b16 %v344
  %v2796 = vunpack.c.h.b16 %v344
  %v2797 = vunpack.c.l.b16 %v345
  %v2798 = vunpack.c.h.b16 %v345
  %v2799 = vunpack.c.l.b16 %v346
  %v2800 = vunpack.c.h.b16 %v346
  %v2801 = vunpack.c.l.b16 %v347
  %v2802 = vunpack.c.h.b16 %v347
  %v2803 = vunpack.c.l.b16 %v348
  %v2804 = vunpack.c.h.b16 %v348
  %v2805 = vunpack.c.l.b16 %v349
  %v2806 = vunpack.c.h.b16 %v349
  %v2807 = vunpack.c.l.b16 %v350
  %v2808 = vunpack.c.h.b16 %v350
  %v2809 = vunpack.c.l.b16 %v351
  %v2810 = vunpack.c.h.b16 %v351
  %v2811 = vunpack.c.l.b16 %v352
  %v2812 = vunpack.c.h.b16 %v352
  %v2813 = vunpack.c.l.b16 %v353
  %v2814 = vunpack.c.h.b16 %v353
  %v2815 = vunpack.c.l.b16 %v354
  %v2816 = vunpack.c.h.b16 %v354
  %v2817 = vunpack.c.l.b16 %v355
  %v2818 = vunpack.c.h.b16 %v355
  %v2819 = vunpack.c.l.b16 %v356
  %v2820 = vunpack.c.h.b16 %v356
  %v2821 = vunpack.c.l.b16 %v357
  %v2822 = vunpack.c.h.b16 %v357
  %v2823 = vunpack.c.l.b16 %v358
  %v2824 = vunpack.c.h.b16 %v358
  %v2825 = vunpack.c.l.b16 %v359
  %v2826 = vunpack.c.h.b16 %v359
  %v2827 = vunpack.c.l.b16 %v360
  %v2828 = vunpack.c.h.b16 %v360
  %v2829 = vunpack.c.l.b16 %v361
  %v2830 = vunpack.c.h.b16 %v361
  %v2831 = vunpack.c.l.b16 %v362
  %v2832 = vunpack.c.h.b16 %v362
  %v2833 = vunpack.c.l.b16 %v363
  %v2834 = vunpack.c.h.b16 %v363
  %v2835 = vunpack.c.l.b16 %v364
  %v2836 = vunpack.c.h.b16 %v364
  %v2837 = vunpack.c.l.b16 %v365
  %v2838 = vunpack.c.h.b16 %v365
  %v2839 = vunpack.c.l.b16 %v366
  %v2840 = vunpack.c.h.b16 %v366
  %v2841 = vunpack.c.l.b16 %v367
  %v2842 = vunpack.c.h.b16 %v367
  %v2843 = vunpack.c.l.b16 %v368
  %v2844 = vunpack.c.h.b16 %v368
  %v2845 = vunpack.c.l.b16 %v369
  %v2846 = vunpack.c.h.b16 %v369
  %v2847 = vunpack.c.l.b16 %v370
  %v2848 = vunpack.c.h.b16 %v370
  %v2849 = vunpack.c.l.b16 %v371
  %v2850 = vunpack.c.h.b16 %v371
  %v2851 = vunpack.c.l.b16 %v372
  %v2852 = vunpack.c.h.b16 %v372
  %v2853 = vunpack.c.l.b16 %v373
  %v2854 = vunpack.c.h.b16 %v373
  %v2855 = vunpack.c.l.b16 %v374
  %v2856 = vunpack.c.h.b16 %v374
  %v2857 = vunpack.c.l.b16 %v375
  %v2858 = vunpack.c.h.b16 %v375
  %v2859 = vunpack.c.l.b16 %v376
  %v2860 = vunpack.c.h.b16 %v376
  %v2861 = vunpack.c.l.b16 %v377
  %v2862 = vunpack.c.h.b16 %v377
  %v2863 = vunpack.c.l.b16 %v378
  %v2864 = vunpack.c.h.b16 %v378
  %v2865 = vunpack.c.l.b16 %v379
  %v2866 = vunpack.c.h.b16 %v379
  %v2867 = vunpack.c.l.b16 %v380
  %v2868 = vunpack.c.h.b16 %v380
  %v2869 = vunpack.c.l.b16 %v381
  %v2870 = vunpack.c.h.b16 %v381
  %v2871 = vunpack.c.l.b16 %v382
  %v2872 = vunpack.c.h.b16 %v382
  %v2873 = vunpack.c.l.b16 %v383
  %v2874 = vunpack.c.h.b16 %v383
  %v2875 = vunpack.c.l.b16 %v384
  %v2876 = vunpack.c.h.b16 %v384
  %v2877 = vunpack.c.l.b16 %v385
  %v2878 = vunpack.c.h.b16 %v385
  %v2879 = vunpack.c.l.b16 %v386
  %v2880 = vunpack.c.h.b16 %v386
  %v2881 = vunpack.c.l.b16 %v387
  %v2882 = vunpack.c.h.b16 %v387
  %v2883 = vunpack.c.l.b16 %v388
  %v2884 = vunpack.c.h.b16 %v388
  %v2885 = vunpack.c.l.b16 %v389
  %v2886 = vunpack.c.h.b16 %v389
  %v2887 = vunpack.c.l.b16 %v390
  %v2888 = vunpack.c.h.b16 %v390
  %v2889 = vunpack.c.l.b16 %v391
  %v2890 = vunpack.c.h.b16 %v391
  %v2891 = vunpack.c.l.b16 %v392
  %v2892 = vunpack.c.h.b16 %v392
  %v2893 = vunpack.c.l.b16 %v393
  %v2894 = vunpack.c.h.b16 %v393
  %v2895 = vunpack.c.l.b16 %v394
  %v2896 = vunpack.c.h.b16 %v394
  %v2897 = vunpack.c.l.b16 %v395
  %v2898 = vunpack.c.h.b16 %v395
  %v2899 = vunpack.c.l.b16 %v396
  %v2900 = vunpack.c.h.b16 %v396
  %v2901 = vunpack.c.l.b16 %v397
  %v2902 = vunpack.c.h.b16 %v397
  %v2903 = vunpack.c.l.b16 %v398
  %v2904 = vunpack.c.h.b16 %v398
  %v2905 = vunpack.c.l.b16 %v399
  %v2906 = vunpack.c.h.b16 %v399
  %v2907 = vunpack.c.l.b16 %v400
  %v2908 = vunpack.c.h.b16 %v400
  %v2909 = vunpack.c.l.b16 %v401
  %v2910 = vunpack.c.h.b16 %v401
  %v2911 = vunpack.c.l.b16 %v402
  %v2912 = vunpack.c.h.b16 %v402
  %v2913 = vunpack.c.l.b16 %v403
  %v2914 = vunpack.c.h.b16 %v403
  %v2915 = vunpack.c.l.b16 %v404
  %v2916 = vunpack.c.h.b16 %v404
  %v2917 = vunpack.c.l.b16 %v405
  %v2918 = vunpack.c.h.b16 %v405
  %v2919 = vunpack.c.l.b16 %v406
  %v2920 = vunpack.c.h.b16 %v406
  %v2921 = vunpack.c.l.b16 %v407
  %v2922 = vunpack.c.h.b16 %v407
  %v2923 = vunpack.c.l.b16 %v408
  %v2924 = vunpack.c.h.b16 %v408
  %v2925 = vunpack.c.l.b16 %v409
  %v2926 = vunpack.c.h.b16 %v409
  %v2927 = vunpack.c.l.b16 %v410
  %v2928 = vunpack.c.h.b16 %v410
  %v2929 = vunpack.c.l.b16 %v411
  %v2930 = vunpack.c.h.b16 %v411
  %v2931 = vunpack.c.l.b16 %v412
  %v2932 = vunpack.c.h.b16 %v412
  %v2933 = vunpack.c.l.b16 %v413
  %v2934 = vunpack.c.h.b16 %v413
  %v2935 = vunpack.c.l.b16 %v414
  %v2936 = vunpack.c.h.b16 %v414
  %v2937 = vunpack.c.l.b16 %v415
  %v2938 = vunpack.c.h.b16 %v415
  %v2939 = vunpack.c.l.b16 %v416
  %v2940 = vunpack.c.h.b16 %v416
  %v2941 = vunpack.c.l.b16 %v417
  %v2942 = vunpack.c.h.b16 %v417
  %v2943 = vunpack.c.l.b16 %v418
  %v2944 = vunpack.c.h.b16 %v418
  %v2945 = vunpack.c.l.b16 %v419
  %v2946 = vunpack.c.h.b16 %v419
  %v2947 = vunpack.c.l.b16 %v420
  %v2948 = vunpack.c.h.b16 %v420
  %v2949 = vunpack.c.l.b16 %v421
  %v2950 = vunpack.c.h.b16 %v421
  %v2951 = vunpack.c.l.b16 %v422
  %v2952 = vunpack.c.h.b16 %v422
  %v2953 = vunpack.c.l.b16 %v423
  %v2954 = vunpack.c.h.b16 %v423
  %v2955 = vunpack.c.l.b16 %v424
  %v2956 = vunpack.c.h.b16 %v424
  %v2957 = vunpack.c.l.b16 %v425
  %v2958 = vunpack.c.h.b16 %v425
  %v2959 = vunpack.c.l.b16 %v426
  %v2960 = vunpack.c.h.b16 %v426
  %v2961 = vunpack.c.l.b16 %v427
  %v2962 = vunpack.c.h.b16 %v427
  %v2963 = vunpack.c.l.b16 %v428
  %v2964 = vunpack.c.h.b16 %v428
  %v2965 = vunpack.c.l.b16 %v429
  %v2966 = vunpack.c.h.b16 %v429
  %v2967 = vunpack.c.l.b16 %v430
  %v2968 = vunpack.c.h.b16 %v430
  %v2969 = vunpack.c.l.b16 %v431
  %v2970 = vunpack.c.h.b16 %v431
  %v2971 = vunpack.c.l.b16 %v432
  %v2972 = vunpack.c.h.b16 %v432
  %v2973 = vunpack.c.l.b16 %v433
  %v2974 = vunpack.c.h.b16 %v433
  %v2975 = vunpack.c.l.b16 %v434
  %v2976 = vunpack.c.h.b16 %v434
  %v2977 = vunpack.c.l.b16 %v435
  %v2978 = vunpack.c.h.b16 %v435
  %v2979 = vunpack.c.l.b16 %v436
  %v2980 = vunpack.c.h.b16 %v436
  %v2981 = vunpack.c.l.b16 %v437
  %v2982 = vunpack.c.h.b16 %v437
  %v2983 = vunpack.c.l.b16 %v438
  %v2984 = vunpack.c.h.b16 %v438
  %v2985 = vunpack.c.l.b16 %v439
  %v2986 = vunpack.c.h.b16 %v439
  %v2987 = vunpack.c.l.b16 %v440
  %v2988 = vunpack.c.h.b16 %v440
  %v2989 = vunpack.c.l.b16 %v441
  %v2990 = vunpack.c.h.b16 %v441
  %v2991 = vunpack.c.l.b16 %v442
  %v2992 = vunpack.c.h.b16 %v442
  %v2993 = vunpack.c.l.b16 %v443
  %v2994 = vunpack.c.h.b16 %v443
  %v2995 = vunpack.c.l.b16 %v444
  %v2996 = vunpack.c.h.b16 %v444
  %v2997 = vunpack.c.l.b16 %v445
  %v2998 = vunpack.c.h.b16 %v445
  %v2999 = vunpack.c.l.b16 %v446
  %v3000 = vunpack.c.h.b16 %v446
  %v3001 = vunpack.c.l.b16 %v447
  %v3002 = vunpack.c.h.b16 %v447
  %v3003 = vunpack.c.l.b16 %v448
  %v3004 = vunpack.c.h.b16 %v448
  %v3005 = vunpack.c.l.b16 %v449
  %v3006 = vunpack.c.h.b16 %v449
  %v3007 = vunpack.c.l.b16 %v450
  %v3008 = vunpack.c.h.b16 %v450
  %v3009 = vunpack.c.l.b16 %v451
  %v3010 = vunpack.c.h.b16 %v451
  %v3011 = vunpack.c.l.b16 %v452
  %v3012 = vunpack.c.h.b16 %v452
  %v3013 = vunpack.c.l.b16 %v453
  %v3014 = vunpack.c.h.b16 %v453
  %v3015 = vunpack.c.l.b16 %v454
  %v3016 = vunpack.c.h.b16 %v454
  %v3017 = vunpack.c.l.b16 %v455
  %v3018 = vunpack.c.h.b16 %v455
  %v3019 = vunpack.c.l.b16 %v456
  %v3020 = vunpack.c.h.b16 %v456
  %v3021 = vunpack.c.l.b16 %v457
  %v3022 = vunpack.c.h.b16 %v457
  %v3023 = vunpack.c.l.b16 %v458
  %v3024 = vunpack.c.h.b16 %v458
  %v3025 = vunpack.c.l.b16 %v459
  %v3026 = vunpack.c.h.b16 %v459
  %v3027 = vunpack.c.l.b16 %v460
  %v3028 = vunpack.c.h.b16 %v460
  %v3029 = vunpack.c.l.b16 %v461
  %v3030 = vunpack.c.h.b16 %v461
  %v3031 = vunpack.c.l.b16 %v462
  %v3032 = vunpack.c.h.b16 %v462
  %v3033 = vunpack.c.l.b16 %v463
  %v3034 = vunpack.c.h.b16 %v463
  %v3035 = vunpack.c.l.b16 %v464
  %v3036 = vunpack.c.h.b16 %v464
  %v3037 = vunpack.c.l.b16 %v465
  %v3038 = vunpack.c.h.b16 %v465
  %v3039 = vunpack.c.l.b16 %v466
  %v3040 = vunpack.c.h.b16 %v466
  %v3041 = vunpack.c.l.b16 %v467
  %v3042 = vunpack.c.h.b16 %v467
  %v3043 = vunpack.c.l.b16 %v468
  %v3044 = vunpack.c.h.b16 %v468
  %v3045 = vunpack.c.l.b16 %v469
  %v3046 = vunpack.c.h.b16 %v469
  %v3047 = vunpack.c.l.b16 %v470
  %v3048 = vunpack.c.h.b16 %v470
  %v3049 = vunpack.c.l.b16 %v471
  %v3050 = vunpack.c.h.b16 %v471
  %v3051 = vunpack.c.l.b16 %v472
  %v3052 = vunpack.c.h.b16 %v472
  %v3053 = vunpack.c.l.b16 %v473
  %v3054 = vunpack.c.h.b16 %v473
  %v3055 = vunpack.c.l.b16 %v474
  %v3056 = vunpack.c.h.b16 %v474
  %v3057 = vunpack.c.l.b16 %v475
  %v3058 = vunpack.c.h.b16 %v475
  %v3059 = vunpack.c.l.b16 %v476
  %v3060 = vunpack.c.h.b16 %v476
  %v3061 = vunpack.c.l.b16 %v477
  %v3062 = vunpack.c.h.b16 %v477
  %v3063 = vunpack.c.l.b16 %v478
  %v3064 = vunpack.c.h.b16 %v478
  %v3065 = vunpack.c.l.b16 %v479
  %v3066 = vunpack.c.h.b16 %v479
  %v3067 = vunpack.c.l.b16 %v480
  %v3068 = vunpack.c.h.b16 %v480
  %v3069 = vunpack.c.l.b16 %v481
  %v3070 = vunpack.c.h.b16 %v481
  %v3071 = vunpack.c.l.b16 %v482
  %v3072 = vunpack.c.h.b16 %v482
  %v3073 = vunpack.c.l.b16 %v483
  %v3074 = vunpack.c.h.b16 %v483
  %v3075 = vunpack.c.l.b16 %v484
  %v3076 = vunpack.c.h.b16 %v484
  %v3077 = vunpack.c.l.b16 %v485
  %v3078 = vunpack.c.h.b16 %v485
  %v3079 = vunpack.c.l.b16 %v486
  %v3080 = vunpack.c.h.b16 %v486
  %v3081 = vunpack.c.l.b16 %v487
  %v3082 = vunpack.c.h.b16 %v487
  %v3083 = vunpack.c.l.b16 %v488
  %v3084 = vunpack.c.h.b16 %v488
  %v3085 = vunpack.c.l.b16 %v489
  %v3086 = vunpack.c.h.b16 %v489
  %v3087 = vunpack.c.l.b16 %v490
  %v3088 = vunpack.c.h.b16 %v490
  %v3089 = vunpack.c.l.b16 %v491
  %v3090 = vunpack.c.h.b16 %v491
  %v3091 = vunpack.c.l.b16 %v492
  %v3092 = vunpack.c.h.b16 %v492
  %v3093 = vunpack.c.l.b16 %v493
  %v3094 = vunpack.c.h.b16 %v493
  %v3095 = vunpack.c.l.b16 %v494
  %v3096 = vunpack.c.h.b16 %v494
  %v3097 = vunpack.c.l.b16 %v495
  %v3098 = vunpack.c.h.b16 %v495
  %v3099 = vunpack.c.l.b16 %v496
  %v3100 = vunpack.c.h.b16 %v496
  %v3101 = vunpack.c.l.b16 %v497
  %v3102 = vunpack.c.h.b16 %v497
  %v3103 = vunpack.c.l.b16 %v498
  %v3104 = vunpack.c.h.b16 %v498
  %v3105 = vunpack.c.l.b16 %v499
  %v3106 = vunpack.c.h.b16 %v499
  %v3107 = vunpack.c.l.b16 %v500
  %v3108 = vunpack.c.h.b16 %v500
  %v3109 = vunpack.c.l.b16 %v501
  %v3110 = vunpack.c.h.b16 %v501
  %v3111 = vunpack.c.l.b16 %v502
  %v3112 = vunpack.c.h.b16 %v502
  %v3113 = vunpack.c.l.b16 %v503
  %v3114 = vunpack.c.h.b16 %v503
  %v3115 = vunpack.c.l.b16 %v504
  %v3116 = vunpack.c.h.b16 %v504
  %v3117 = vunpack.c.l.b16 %v505
  %v3118 = vunpack.c.h.b16 %v505
  %v3119 = vunpack.c.l.b16 %v506
  %v3120 = vunpack.c.h.b16 %v506
  %v3121 = vunpack.c.l.b16 %v507
  %v3122 = vunpack.c.h.b16 %v507
  %v3123 = vunpack.c.l.b16 %v508
  %v3124 = vunpack.c.h.b16 %v508
  %v3125 = vunpack.c.l.b16 %v509
  %v3126 = vunpack.c.h.b16 %v509
  %v3127 = vunpack.c.l.b16 %v510
  %v3128 = vunpack.c.h.b16 %v510
  %v3129 = vunpack.c.l.b16 %v511
  %v3130 = vunpack.c.h.b16 %v511
  %v3131 = vunpack.c.l.b16 %v512
  %v3132 = vunpack.c.h.b16 %v512
  %v3133 = vunpack.c.l.b16 %v513
  %v3134 = vunpack.c.h.b16 %v513
  %v3135 = vunpack.c.l.b16 %v514
  %v3136 = vunpack.c.h.b16 %v514
  %v3137 = vunpack.c.l.b16 %v515
  %v3138 = vunpack.c.h.b16 %v515
  %v3139 = vunpack.c.l.b16 %v516
  %v3140 = vunpack.c.h.b16 %v516
  %v3141 = vunpack.c.l.b16 %v517
  %v3142 = vunpack.c.h.b16 %v517
  %v3143 = vunpack.c.l.b16 %v518
  %v3144 = vunpack.c.h.b16 %v518
  %v3145 = vunpack.c.l.b16 %v519
  %v3146 = vunpack.c.h.b16 %v519
  %v3147 = vunpack.c.l.b16 %v520
  %v3148 = vunpack.c.h.b16 %v520
  %v3149 = vunpack.c.l.b16 %v521
  %v3150 = vunpack.c.h.b16 %v521
  %v3151 = vunpack.c.l.b16 %v522
  %v3152 = vunpack.c.h.b16 %v522
  %v3153 = vunpack.c.l.b16 %v523
  %v3154 = vunpack.c.h.b16 %v523
  %v3155 = vunpack.c.l.b16 %v524
  %v3156 = vunpack.c.h.b16 %v524
  %v3157 = vpack.c.b16 %v2653, %v2645
  %v3158 = vpack.c.b16 %v2654, %v2646
  %v3159 = vpack.c.b16 %v2655, %v2647
  %v3160 = vpack.c.b16 %v2656, %v2648
  %v3161 = vpack.c.b16 %v2657, %v2649
  %v3162 = vpack.c.b16 %v2658, %v2650
  %v3163 = vpack.c.b16 %v2659, %v2651
  %v3164 = vpack.c.b16 %v2660, %v2652
  %v3165 = vpack.c.b16 %v2669, %v2661
  %v3166 = vpack.c.b16 %v2670, %v2662
  %v3167 = vpack.c.b16 %v2671, %v2663
  %v3168 = vpack.c.b16 %v2672, %v2664
  %v3169 = vpack.c.b16 %v2673, %v2665
  %v3170 = vpack.c.b16 %v2674, %v2666
  %v3171 = vpack.c.b16 %v2675, %v2667
  %v3172 = vpack.c.b16 %v2676, %v2668
  %v3173 = vpack.c.b16 %v2685, %v2677
  %v3174 = vpack.c.b16 %v2686, %v2678
  %v3175 = vpack.c.b16 %v2687, %v2679
  %v3176 = vpack.c.b16 %v2688, %v2680
  %v3177 = vpack.c.b16 %v2689, %v2681
  %v3178 = vpack.c.b16 %v2690, %v2682
  %v3179 = vpack.c.b16 %v2691, %v2683
  %v3180 = vpack.c.b16 %v2692, %v2684
  %v3181 = vpack.c.b16 %v2701, %v2693
  %v3182 = vpack.c.b16 %v2702, %v2694
  %v3183 = vpack.c.b16 %v2703, %v2695
  %v3184 = vpack.c.b16 %v2704, %v2696
  %v3185 = vpack.c.b16 %v2705, %v2697
  %v3186 = vpack.c.b16 %v2706, %v2698
  %v3187 = vpack.c.b16 %v2707, %v2699
  %v3188 = vpack.c.b16 %v2708, %v2700
  %v3189 = vpack.c.b16 %v2717, %v2709
  %v3190 = vpack.c.b16 %v2718, %v2710
  %v3191 = vpack.c.b16 %v2719, %v2711
  %v3192 = vpack.c.b16 %v2720, %v2712
  %v3193 = vpack.c.b16 %v2721, %v2713
  %v3194 = vpack.c.b16 %v2722, %v2714
  %v3195 = vpack.c.b16 %v2723, %v2715
  %v3196 = vpack.c.b16 %v2724, %v2716
  %v3197 = vpack.c.b16 %v2733, %v2725
  %v3198 = vpack.c.b16 %v2734, %v2726
  %v3199 = vpack.c.b16 %v2735, %v2727
  %v3200 = vpack.c.b16 %v2736, %v2728
  %v3201 = vpack.c.b16 %v2737, %v2729
  %v3202 = vpack.c.b16 %v2738, %v2730
  %v3203 = vpack.c.b16 %v2739, %v2731
  %v3204 = vpack.c.b16 %v2740, %v2732
  %v3205 = vpack.c.b16 %v2749, %v2741
  %v3206 = vpack.c.b16 %v2750, %v2742
  %v3207 = vpack.c.b16 %v2751, %v2743
  %v3208 = vpack.c.b16 %v2752, %v2744
  %v3209 = vpack.c.b16 %v2753, %v2745
  %v3210 = vpack.c.b16 %v2754, %v2746
  %v3211 = vpack.c.b16 %v2755, %v2747
  %v3212 = vpack.c.b16 %v2756, %v2748
  %v3213 = vpack.c.b16 %v2765, %v2757
  %v3214 = vpack.c.b16 %v2766, %v2758
  %v3215 = vpack.c.b16 %v2767, %v2759
  %v3216 = vpack.c.b16 %v2768, %v2760
  %v3217 = vpack.c.b16 %v2769, %v2761
  %v3218 = vpack.c.b16 %v2770, %v2762
  %v3219 = vpack.c.b16 %v2771, %v2763
  %v3220 = vpack.c.b16 %v2772, %v2764
  %v3221 = vpack.c.b16 %v2781, %v2773
  %v3222 = vpack.c.b16 %v2782, %v2774
  %v3223 = vpack.c.b16 %v2783, %v2775
  %v3224 = vpack.c.b16 %v2784, %v2776
  %v3225 = vpack.c.b16 %v2785, %v2777
  %v3226 = vpack.c.b16 %v2786, %v2778
  %v3227 = vpack.c.b16 %v2787, %v2779
  %v3228 = vpack.c.b16 %v2788, %v2780
  %v3229 = vpack.c.b16 %v2797, %v2789
  %v3230 = vpack.c.b16 %v2798, %v2790
  %v3231 = vpack.c.b16 %v2799, %v2791
  %v3232 = vpack.c.b16 %v2800, %v2792
  %v3233 = vpack.c.b16 %v2801, %v2793
  %v3234 = vpack.c.b16 %v2802, %v2794
  %v3235 = vpack.c.b16 %v2803, %v2795
  %v3236 = vpack.c.b16 %v2804, %v2796
  %v3237 = vpack.c.b16 %v2813, %v2805
  %v3238 = vpack.c.b16 %v2814, %v2806
  %v3239 = vpack.c.b16 %v2815, %v2807
  %v3240 = vpack.c.b16 %v2816, %v2808
  %v3241 = vpack.c.b16 %v2817, %v2809
  %v3242 = vpack.c.b16 %v2818, %v2810
  %v3243 = vpack.c.b16 %v2819, %v2811
  %v3244 = vpack.c.b16 %v2820, %v2812
  %v3245 = vpack.c.b16 %v2829, %v2821
  %v3246 = vpack.c.b16 %v2830, %v2822
  %v3247 = vpack.c.b16 %v2831, %v2823
  %v3248 = vpack.c.b16 %v2832, %v2824
  %v3249 = vpack.c.b16 %v2833, %v2825
  %v3250 = vpack.c.b16 %v2834, %v2826
  %v3251 = vpack.c.b16 %v2835, %v2827
  %v3252 = vpack.c.b16 %v2836, %v2828
  %v3253 = vpack.c.b16 %v2845, %v2837
  %v3254 = vpack.c.b16 %v2846, %v2838
  %v3255 = vpack.c.b16 %v2847, %v2839
  %v3256 = vpack.c.b16 %v2848, %v2840
  %v3257 = vpack.c.b16 %v2849, %v2841
  %v3258 = vpack.c.b16 %v2850, %v2842
  %v3259 = vpack.c.b16 %v2851, %v2843
  %v3260 = vpack.c.b16 %v2852, %v2844
  %v3261 = vpack.c.b16 %v2861, %v2853
  %v3262 = vpack.c.b16 %v2862, %v2854
  %v3263 = vpack.c.b16 %v2863, %v2855
  %v3264 = vpack.c.b16 %v2864, %v2856
  %v3265 = vpack.c.b16 %v2865, %v2857
  %v3266 = vpack.c.b16 %v2866, %v2858
  %v3267 = vpack.c.b16 %v2867, %v2859
  %v3268 = vpack.c.b16 %v2868, %v2860
  %v3269 = vpack.c.b16 %v2877, %v2869
  %v3270 = vpack.c.b16 %v2878, %v2870
  %v3271 = vpack.c.b16 %v2879, %v2871
  %v3272 = vpack.c.b16 %v2880, %v2872
  %v3273 = vpack.c.b16 %v2881, %v2873
  %v3274 = vpack.c.b16 %v2882, %v2874
  %v3275 = vpack.c.b16 %v2883, %v2875
  %v3276 = vpack.c.b16 %v2884, %v2876
  %v3277 = vpack.c.b16 %v2893, %v2885
  %v3278 = vpack.c.b16 %v2894, %v2886
  %v3279 = vpack.c.b16 %v2895, %v2887
  %v3280 = vpack.c.b16 %v2896, %v2888
  %v3281 = vpack.c.b16 %v2897, %v2889
  %v3282 = vpack.c.b16 %v2898, %v2890
  %v3283 = vpack.c.b16 %v2899, %v2891
  %v3284 = vpack.c.b16 %v2900, %v2892
  %v3285 = vpack.c.b16 %v2909, %v2901
  %v3286 = vpack.c.b16 %v2910, %v2902
  %v3287 = vpack.c.b16 %v2911, %v2903
  %v3288 = vpack.c.b16 %v2912, %v2904
  %v3289 = vpack.c.b16 %v2913, %v2905
  %v3290 = vpack.c.b16 %v2914, %v2906
  %v3291 = vpack.c.b16 %v2915, %v2907
  %v3292 = vpack.c.b16 %v2916, %v2908
  %v3293 = vpack.c.b16 %v2925, %v2917
  %v3294 = vpack.c.b16 %v2926, %v2918
  %v3295 = vpack.c.b16 %v2927, %v2919
  %v3296 = vpack.c.b16 %v2928, %v2920
  %v3297 = vpack.c.b16 %v2929, %v2921
  %v3298 = vpack.c.b16 %v2930, %v2922
  %v3299 = vpack.c.b16 %v2931, %v2923
  %v3300 = vpack.c.b16 %v2932, %v2924
  %v3301 = vpack.c.b16 %v2941, %v2933
  %v3302 = vpack.c.b16 %v2942, %v2934
  %v3303 = vpack.c.b16 %v2943, %v2935
  %v3304 = vpack.c.b16 %v2944, %v2936
  %v3305 = vpack.c.b16 %v2945, %v2937
  %v3306 = vpack.c.b16 %v2946, %v2938
  %v3307 = vpack.c.b16 %v2947, %v2939
  %v3308 = vpack.c.b16 %v2948, %v2940
  %v3309 = vpack.c.b16 %v2957, %v2949
  %v3310 = vpack.c.b16 %v2958, %v2950
  %v3311 = vpack.c.b16 %v2959, %v2951
  %v3312 = vpack.c.b16 %v2960, %v2952
  %v3313 = vpack.c.b16 %v2961, %v2953
  %v3314 = vpack.c.b16 %v2962, %v2954
  %v3315 = vpack.c.b16 %v2963, %v2955
  %v3316 = vpack.c.b16 %v2964, %v2956
  %v3317 = vpack.c.b16 %v2973, %v2965
  %v3318 = vpack.c.b16 %v2974, %v2966
  %v3319 = vpack.c.b16 %v2975, %v2967
  %v3320 = vpack.c.b16 %v2976, %v2968
  %v3321 = vpack.c.b16 %v2977, %v2969
  %v3322 = vpack.c.b16 %v2978, %v2970
  %v3323 = vpack.c.b16 %v2979, %v2971
  %v3324 = vpack.c.b16 %v2980, %v2972
  %v3325 = vpack.c.b16 %v2989, %v2981
  %v3326 = vpack.c.b16 %v2990, %v2982
  %v3327 = vpack.c.b16 %v2991, %v2983
  %v3328 = vpack.c.b16 %v2992, %v2984
  %v3329 = vpack.c.b16 %v2993, %v2985
  %v3330 = vpack.c.b16 %v2994, %v2986
  %v3331 = vpack.c.b16 %v2995, %v2987
  %v3332 = vpack.c.b16 %v2996, %v2988
  %v3333 = vpack.c.b16 %v3005, %v2997
  %v3334 = vpack.c.b16 %v3006, %v2998
  %v3335 = vpack.c.b16 %v3007, %v2999
  %v3336 = vpack.c.b16 %v3008, %v3000
  %v3337 = vpack.c.b16 %v3009, %v3001
  %v3338 = vpack.c.b16 %v3010, %v3002
  %v3339 = vpack.c.b16 %v3011, %v3003
  %v3340 = vpack.c.b16 %v3012, %v3004
  %v3341 = vpack.c.b16 %v3021, %v3013
  %v3342 = vpack.c.b16 %v3022, %v3014
  %v3343 = vpack.c.b16 %v3023, %v3015
  %v3344 = vpack.c.b16 %v3024, %v3016
  %v3345 = vpack.c.b16 %v3025, %v3017
  %v3346 = vpack.c.b16 %v3026, %v3018
  %v3347 = vpack.c.b16 %v3027, %v3019
  %v3348 = vpack.c.b16 %v3028, %v3020
  %v3349 = vpack.c.b16 %v3037, %v3029
  %v3350 = vpack.c.b16 %v3038, %v3030
  %v3351 = vpack.c.b16 %v3039, %v3031
  %v3352 = vpack.c.b16 %v3040, %v3032
  %v3353 = vpack.c.b16 %v3041, %v3033
  %v3354 = vpack.c.b16 %v3042, %v3034
  %v3355 = vpack.c.b16 %v3043, %v3035
  %v3356 = vpack.c.b16 %v3044, %v3036
  %v3357 = vpack.c.b16 %v3053, %v3045
  %v3358 = vpack.c.b16 %v3054, %v3046
  %v3359 = vpack.c.b16 %v3055, %v3047
  %v3360 = vpack.c.b16 %v3056, %v3048
  %v3361 = vpack.c.b16 %v3057, %v3049
  %v3362 = vpack.c.b16 %v3058, %v3050
  %v3363 = vpack.c.b16 %v3059, %v3051
  %v3364 = vpack.c.b16 %v3060, %v3052
  %v3365 = vpack.c.b16 %v3069, %v3061
  %v3366 = vpack.c.b16 %v3070, %v3062
  %v3367 = vpack.c.b16 %v3071, %v3063
  %v3368 = vpack.c.b16 %v3072, %v3064
  %v3369 = vpack.c.b16 %v3073, %v3065
  %v3370 = vpack.c.b16 %v3074, %v3066
  %v3371 = vpack.c.b16 %v3075, %v3067
  %v3372 = vpack.c.b16 %v3076, %v3068
  %v3373 = vpack.c.b16 %v3085, %v3077
  %v3374 = vpack.c.b16 %v3086, %v3078
  %v3375 = vpack.c.b16 %v3087, %v3079
  %v3376 = vpack.c.b16 %v3088, %v3080
  %v3377 = vpack.c.b16 %v3089, %v3081
  %v3378 = vpack.c.b16 %v3090, %v3082
  %v3379 = vpack.c.b16 %v3091, %v3083
  %v3380 = vpack.c.b16 %v3092, %v3084
  %v3381 = vpack.c.b16 %v3101, %v3093
  %v3382 = vpack.c.b16 %v3102, %v3094
  %v3383 = vpack.c.b16 %v3103, %v3095
  %v3384 = vpack.c.b16 %v3104, %v3096
  %v3385 = vpack.c.b16 %v3105, %v3097
  %v3386 = vpack.c.b16 %v3106, %v3098
  %v3387 = vpack.c.b16 %v3107, %v3099
  %v3388 = vpack.c.b16 %v3108, %v3100
  %v3389 = vpack.c.b16 %v3117, %v3109
  %v3390 = vpack.c.b16 %v3118, %v3110
  %v3391 = vpack.c.b16 %v3119, %v3111
  %v3392 = vpack.c.b16 %v3120, %v3112
  %v3393 = vpack.c.b16 %v3121, %v3113
  %v3394 = vpack.c.b16 %v3122, %v3114
  %v3395 = vpack.c.b16 %v3123, %v3115
  %v3396 = vpack.c.b16 %v3124, %v3116
  %v3397 = vpack.c.b16 %v3133, %v3125
  %v3398 = vpack.c.b16 %v3134, %v3126
  %v3399 = vpack.c.b16 %v3135, %v3127
  %v3400 = vpack.c.b16 %v3136, %v3128
  %v3401 = vpack.c.b16 %v3137, %v3129
  %v3402 = vpack.c.b16 %v3138, %v3130
  %v3403 = vpack.c.b16 %v3139, %v3131
  %v3404 = vpack.c.b16 %v3140, %v3132
  %v3405 = vpack.c.b16 %v3149, %v3141
  %v3406 = vpack.c.b16 %v3150, %v3142
  %v3407 = vpack.c.b16 %v3151, %v3143
  %v3408 = vpack.c.b16 %v3152, %v3144
  %v3409 = vpack.c.b16 %v3153, %v3145
  %v3410 = vpack.c.b16 %v3154, %v3146
  %v3411 = vpack.c.b16 %v3155, %v3147
  %v3412 = vpack.c.b16 %v3156, %v3148
  %3669 = vmatprep.subr.bf16.mxu0 %v3214
  %3670 = vmatpush1.bf16.msra.mxu0 %v3213
  %3671 = vmatprep.subr.bf16.mxu0 %v3206
  %3672 = vmatpush1.bf16.msra.mxu0 %v3205
  %3673 = vmatprep.subr.bf16.mxu0 %v3198
  %3674 = vmatpush1.bf16.msra.mxu0 %v3197
  %3675 = vmatprep.subr.bf16.mxu0 %v3190
  %3676 = vmatpush1.bf16.msra.mxu0 %v3189
  %3677 = vmatprep.subr.bf16.mxu0 %v3182
  %3678 = vmatpush1.bf16.msra.mxu0 %v3181
  %3679 = vmatprep.subr.bf16.mxu0 %v3174
  %3680 = vmatpush1.bf16.msra.mxu0 %v3173
  %3681 = vmatprep.subr.bf16.mxu0 %v3166
  %3682 = vmatpush1.bf16.msra.mxu0 %v3165
  %3683 = vmatprep.subr.bf16.mxu0 %v3158
  %3684 = vmatpush1.bf16.msra.mxu0 %v3157
  %3685 = vmatprep.subr.bf16.mxu0 %v3278
  %3686 = vmatpush2.bf16.msra.mxu0 %v3277
  %3687 = vmatprep.subr.bf16.mxu0 %v3270
  %3688 = vmatpush2.bf16.msra.mxu0 %v3269
  %3689 = vmatprep.subr.bf16.mxu0 %v3262
  %3690 = vmatpush2.bf16.msra.mxu0 %v3261
  %3691 = vmatprep.subr.bf16.mxu0 %v3254
  %3692 = vmatpush2.bf16.msra.mxu0 %v3253
  %3693 = vmatprep.subr.bf16.mxu0 %v3246
  %3694 = vmatpush2.bf16.msra.mxu0 %v3245
  %3695 = vmatprep.subr.bf16.mxu0 %v3238
  %3696 = vmatpush2.bf16.msra.mxu0 %v3237
  %3697 = vmatprep.subr.bf16.mxu0 %v3230
  %3698 = vmatpush2.bf16.msra.mxu0 %v3229
  %3699 = vmatprep.subr.bf16.mxu0 %v3222
  %3700 = vmatpush2.bf16.msra.mxu0 %v3221
  %3701 = vmatprep.mubr.bf16.mxu0 %v262
  %3702 = vmatmul.mubr.bf16.gmra.mxu0 %v261
  %v3703 = vpop.f32.mrf.mxu0
  %v3704 = vadd.f32 %v2137, %v3703
  %v3705 = vpop.f32.mrf.mxu0
  %v3706 = vadd.f32 %v2139, %v3705
  %v3707 = vpop.f32.mrf.mxu0
  %v3708 = vpop.f32.mrf.mxu0
  %3709 = vdwg.mxu0
  %3710 = vmatprep.subr.bf16.mxu0 %v3342
  %3711 = vmatpush1.bf16.msra.mxu0 %v3341
  %3712 = vmatprep.subr.bf16.mxu0 %v3334
  %3713 = vmatpush1.bf16.msra.mxu0 %v3333
  %3714 = vmatprep.subr.bf16.mxu0 %v3326
  %3715 = vmatpush1.bf16.msra.mxu0 %v3325
  %3716 = vmatprep.subr.bf16.mxu0 %v3318
  %3717 = vmatpush1.bf16.msra.mxu0 %v3317
  %3718 = vmatprep.subr.bf16.mxu0 %v3310
  %3719 = vmatpush1.bf16.msra.mxu0 %v3309
  %3720 = vmatprep.subr.bf16.mxu0 %v3302
  %3721 = vmatpush1.bf16.msra.mxu0 %v3301
  %3722 = vmatprep.subr.bf16.mxu0 %v3294
  %3723 = vmatpush1.bf16.msra.mxu0 %v3293
  %3724 = vmatprep.subr.bf16.mxu0 %v3286
  %3725 = vmatpush1.bf16.msra.mxu0 %v3285
  %3726 = vmatprep.subr.bf16.mxu0 %v3406
  %3727 = vmatpush2.bf16.msra.mxu0 %v3405
  %3728 = vmatprep.subr.bf16.mxu0 %v3398
  %3729 = vmatpush2.bf16.msra.mxu0 %v3397
  %3730 = vmatprep.subr.bf16.mxu0 %v3390
  %3731 = vmatpush2.bf16.msra.mxu0 %v3389
  %3732 = vmatprep.subr.bf16.mxu0 %v3382
  %3733 = vmatpush2.bf16.msra.mxu0 %v3381
  %3734 = vmatprep.subr.bf16.mxu0 %v3374
  %3735 = vmatpush2.bf16.msra.mxu0 %v3373
  %3736 = vmatprep.subr.bf16.mxu0 %v3366
  %3737 = vmatpush2.bf16.msra.mxu0 %v3365
  %3738 = vmatprep.subr.bf16.mxu0 %v3358
  %3739 = vmatpush2.bf16.msra.mxu0 %v3357
  %3740 = vmatprep.subr.bf16.mxu0 %v3350
  %3741 = vmatpush2.bf16.msra.mxu0 %v3349
  %3742 = vmatprep.mubr.bf16.mxu0 %v264
  %3743 = vmatmul.mubr.bf16.gmra.mxu0 %v263
  %v3744 = vpop.f32.mrf.mxu0
  %v3745 = vadd.f32 %v3704, %v3744
  %v3746 = vpop.f32.mrf.mxu0
  %v3747 = vadd.f32 %v3706, %v3746
  %v3748 = vpop.f32.mrf.mxu0
  %v3749 = vpop.f32.mrf.mxu0
  %3750 = vdwg.mxu0
  %3751 = vmatprep.subr.bf16.mxu0 %v3216
  %3752 = vmatpush1.bf16.msra.mxu0 %v3215
  %3753 = vmatprep.subr.bf16.mxu0 %v3208
  %3754 = vmatpush1.bf16.msra.mxu0 %v3207
  %3755 = vmatprep.subr.bf16.mxu0 %v3200
  %3756 = vmatpush1.bf16.msra.mxu0 %v3199
  %3757 = vmatprep.subr.bf16.mxu0 %v3192
  %3758 = vmatpush1.bf16.msra.mxu0 %v3191
  %3759 = vmatprep.subr.bf16.mxu0 %v3184
  %3760 = vmatpush1.bf16.msra.mxu0 %v3183
  %3761 = vmatprep.subr.bf16.mxu0 %v3176
  %3762 = vmatpush1.bf16.msra.mxu0 %v3175
  %3763 = vmatprep.subr.bf16.mxu0 %v3168
  %3764 = vmatpush1.bf16.msra.mxu0 %v3167
  %3765 = vmatprep.subr.bf16.mxu0 %v3160
  %3766 = vmatpush1.bf16.msra.mxu0 %v3159
  %3767 = vmatprep.subr.bf16.mxu0 %v3280
  %3768 = vmatpush2.bf16.msra.mxu0 %v3279
  %3769 = vmatprep.subr.bf16.mxu0 %v3272
  %3770 = vmatpush2.bf16.msra.mxu0 %v3271
  %3771 = vmatprep.subr.bf16.mxu0 %v3264
  %3772 = vmatpush2.bf16.msra.mxu0 %v3263
  %3773 = vmatprep.subr.bf16.mxu0 %v3256
  %3774 = vmatpush2.bf16.msra.mxu0 %v3255
  %3775 = vmatprep.subr.bf16.mxu0 %v3248
  %3776 = vmatpush2.bf16.msra.mxu0 %v3247
  %3777 = vmatprep.subr.bf16.mxu0 %v3240
  %3778 = vmatpush2.bf16.msra.mxu0 %v3239
  %3779 = vmatprep.subr.bf16.mxu0 %v3232
  %3780 = vmatpush2.bf16.msra.mxu0 %v3231
  %3781 = vmatprep.subr.bf16.mxu0 %v3224
  %3782 = vmatpush2.bf16.msra.mxu0 %v3223
  %3783 = vmatprep.mubr.bf16.mxu0 %v262
  %3784 = vmatmul.mubr.bf16.gmra.mxu0 %v261
  %v3785 = vpop.f32.mrf.mxu0
  %v3786 = vadd.f32 %v2219, %v3785
  %v3787 = vpop.f32.mrf.mxu0
  %v3788 = vadd.f32 %v2221, %v3787
  %v3789 = vpop.f32.mrf.mxu0
  %v3790 = vpop.f32.mrf.mxu0
  %3791 = vdwg.mxu0
  %3792 = vmatprep.subr.bf16.mxu0 %v3344
  %3793 = vmatpush1.bf16.msra.mxu0 %v3343
  %3794 = vmatprep.subr.bf16.mxu0 %v3336
  %3795 = vmatpush1.bf16.msra.mxu0 %v3335
  %3796 = vmatprep.subr.bf16.mxu0 %v3328
  %3797 = vmatpush1.bf16.msra.mxu0 %v3327
  %3798 = vmatprep.subr.bf16.mxu0 %v3320
  %3799 = vmatpush1.bf16.msra.mxu0 %v3319
  %3800 = vmatprep.subr.bf16.mxu0 %v3312
  %3801 = vmatpush1.bf16.msra.mxu0 %v3311
  %3802 = vmatprep.subr.bf16.mxu0 %v3304
  %3803 = vmatpush1.bf16.msra.mxu0 %v3303
  %3804 = vmatprep.subr.bf16.mxu0 %v3296
  %3805 = vmatpush1.bf16.msra.mxu0 %v3295
  %3806 = vmatprep.subr.bf16.mxu0 %v3288
  %3807 = vmatpush1.bf16.msra.mxu0 %v3287
  %3808 = vmatprep.subr.bf16.mxu0 %v3408
  %3809 = vmatpush2.bf16.msra.mxu0 %v3407
  %3810 = vmatprep.subr.bf16.mxu0 %v3400
  %3811 = vmatpush2.bf16.msra.mxu0 %v3399
  %3812 = vmatprep.subr.bf16.mxu0 %v3392
  %3813 = vmatpush2.bf16.msra.mxu0 %v3391
  %3814 = vmatprep.subr.bf16.mxu0 %v3384
  %3815 = vmatpush2.bf16.msra.mxu0 %v3383
  %3816 = vmatprep.subr.bf16.mxu0 %v3376
  %3817 = vmatpush2.bf16.msra.mxu0 %v3375
  %3818 = vmatprep.subr.bf16.mxu0 %v3368
  %3819 = vmatpush2.bf16.msra.mxu0 %v3367
  %3820 = vmatprep.subr.bf16.mxu0 %v3360
  %3821 = vmatpush2.bf16.msra.mxu0 %v3359
  %3822 = vmatprep.subr.bf16.mxu0 %v3352
  %3823 = vmatpush2.bf16.msra.mxu0 %v3351
  %3824 = vmatprep.mubr.bf16.mxu0 %v264
  %3825 = vmatmul.mubr.bf16.gmra.mxu0 %v263
  %v3826 = vpop.f32.mrf.mxu0
  %v3827 = vadd.f32 %v3786, %v3826
  %v3828 = vpop.f32.mrf.mxu0
  %v3829 = vadd.f32 %v3788, %v3828
  %v3830 = vpop.f32.mrf.mxu0
  %v3831 = vpop.f32.mrf.mxu0
  %3832 = vdwg.mxu0
  %3833 = vmatprep.subr.bf16.mxu0 %v3218
  %3834 = vmatpush1.bf16.msra.mxu0 %v3217
  %3835 = vmatprep.subr.bf16.mxu0 %v3210
  %3836 = vmatpush1.bf16.msra.mxu0 %v3209
  %3837 = vmatprep.subr.bf16.mxu0 %v3202
  %3838 = vmatpush1.bf16.msra.mxu0 %v3201
  %3839 = vmatprep.subr.bf16.mxu0 %v3194
  %3840 = vmatpush1.bf16.msra.mxu0 %v3193
  %3841 = vmatprep.subr.bf16.mxu0 %v3186
  %3842 = vmatpush1.bf16.msra.mxu0 %v3185
  %3843 = vmatprep.subr.bf16.mxu0 %v3178
  %3844 = vmatpush1.bf16.msra.mxu0 %v3177
  %3845 = vmatprep.subr.bf16.mxu0 %v3170
  %3846 = vmatpush1.bf16.msra.mxu0 %v3169
  %3847 = vmatprep.subr.bf16.mxu0 %v3162
  %3848 = vmatpush1.bf16.msra.mxu0 %v3161
  %3849 = vmatprep.subr.bf16.mxu0 %v3282
  %3850 = vmatpush2.bf16.msra.mxu0 %v3281
  %3851 = vmatprep.subr.bf16.mxu0 %v3274
  %3852 = vmatpush2.bf16.msra.mxu0 %v3273
  %3853 = vmatprep.subr.bf16.mxu0 %v3266
  %3854 = vmatpush2.bf16.msra.mxu0 %v3265
  %3855 = vmatprep.subr.bf16.mxu0 %v3258
  %3856 = vmatpush2.bf16.msra.mxu0 %v3257
  %3857 = vmatprep.subr.bf16.mxu0 %v3250
  %3858 = vmatpush2.bf16.msra.mxu0 %v3249
  %3859 = vmatprep.subr.bf16.mxu0 %v3242
  %3860 = vmatpush2.bf16.msra.mxu0 %v3241
  %3861 = vmatprep.subr.bf16.mxu0 %v3234
  %3862 = vmatpush2.bf16.msra.mxu0 %v3233
  %3863 = vmatprep.subr.bf16.mxu0 %v3226
  %3864 = vmatpush2.bf16.msra.mxu0 %v3225
  %3865 = vmatprep.mubr.bf16.mxu0 %v262
  %3866 = vmatmul.mubr.bf16.gmra.mxu0 %v261
  %v3867 = vpop.f32.mrf.mxu0
  %v3868 = vadd.f32 %v2301, %v3867
  %v3869 = vpop.f32.mrf.mxu0
  %v3870 = vadd.f32 %v2303, %v3869
  %v3871 = vpop.f32.mrf.mxu0
  %v3872 = vpop.f32.mrf.mxu0
  %3873 = vdwg.mxu0
  %3874 = vmatprep.subr.bf16.mxu0 %v3346
  %3875 = vmatpush1.bf16.msra.mxu0 %v3345
  %3876 = vmatprep.subr.bf16.mxu0 %v3338
  %3877 = vmatpush1.bf16.msra.mxu0 %v3337
  %3878 = vmatprep.subr.bf16.mxu0 %v3330
  %3879 = vmatpush1.bf16.msra.mxu0 %v3329
  %3880 = vmatprep.subr.bf16.mxu0 %v3322
  %3881 = vmatpush1.bf16.msra.mxu0 %v3321
  %3882 = vmatprep.subr.bf16.mxu0 %v3314
  %3883 = vmatpush1.bf16.msra.mxu0 %v3313
  %3884 = vmatprep.subr.bf16.mxu0 %v3306
  %3885 = vmatpush1.bf16.msra.mxu0 %v3305
  %3886 = vmatprep.subr.bf16.mxu0 %v3298
  %3887 = vmatpush1.bf16.msra.mxu0 %v3297
  %3888 = vmatprep.subr.bf16.mxu0 %v3290
  %3889 = vmatpush1.bf16.msra.mxu0 %v3289
  %3890 = vmatprep.subr.bf16.mxu0 %v3410
  %3891 = vmatpush2.bf16.msra.mxu0 %v3409
  %3892 = vmatprep.subr.bf16.mxu0 %v3402
  %3893 = vmatpush2.bf16.msra.mxu0 %v3401
  %3894 = vmatprep.subr.bf16.mxu0 %v3394
  %3895 = vmatpush2.bf16.msra.mxu0 %v3393
  %3896 = vmatprep.subr.bf16.mxu0 %v3386
  %3897 = vmatpush2.bf16.msra.mxu0 %v3385
  %3898 = vmatprep.subr.bf16.mxu0 %v3378
  %3899 = vmatpush2.bf16.msra.mxu0 %v3377
  %3900 = vmatprep.subr.bf16.mxu0 %v3370
  %3901 = vmatpush2.bf16.msra.mxu0 %v3369
  %3902 = vmatprep.subr.bf16.mxu0 %v3362
  %3903 = vmatpush2.bf16.msra.mxu0 %v3361
  %3904 = vmatprep.subr.bf16.mxu0 %v3354
  %3905 = vmatpush2.bf16.msra.mxu0 %v3353
  %3906 = vmatprep.mubr.bf16.mxu0 %v264
  %3907 = vmatmul.mubr.bf16.gmra.mxu0 %v263
  %v3908 = vpop.f32.mrf.mxu0
  %v3909 = vadd.f32 %v3868, %v3908
  %v3910 = vpop.f32.mrf.mxu0
  %v3911 = vadd.f32 %v3870, %v3910
  %v3912 = vpop.f32.mrf.mxu0
  %v3913 = vpop.f32.mrf.mxu0
  %3914 = vdwg.mxu0
  %3915 = vmatprep.subr.bf16.mxu0 %v3220
  %3916 = vmatpush1.bf16.msra.mxu0 %v3219
  %3917 = vmatprep.subr.bf16.mxu0 %v3212
  %3918 = vmatpush1.bf16.msra.mxu0 %v3211
  %3919 = vmatprep.subr.bf16.mxu0 %v3204
  %3920 = vmatpush1.bf16.msra.mxu0 %v3203
  %3921 = vmatprep.subr.bf16.mxu0 %v3196
  %3922 = vmatpush1.bf16.msra.mxu0 %v3195
  %3923 = vmatprep.subr.bf16.mxu0 %v3188
  %3924 = vmatpush1.bf16.msra.mxu0 %v3187
  %3925 = vmatprep.subr.bf16.mxu0 %v3180
  %3926 = vmatpush1.bf16.msra.mxu0 %v3179
  %3927 = vmatprep.subr.bf16.mxu0 %v3172
  %3928 = vmatpush1.bf16.msra.mxu0 %v3171
  %3929 = vmatprep.subr.bf16.mxu0 %v3164
  %3930 = vmatpush1.bf16.msra.mxu0 %v3163
  %3931 = vmatprep.subr.bf16.mxu0 %v3284
  %3932 = vmatpush2.bf16.msra.mxu0 %v3283
  %3933 = vmatprep.subr.bf16.mxu0 %v3276
  %3934 = vmatpush2.bf16.msra.mxu0 %v3275
  %3935 = vmatprep.subr.bf16.mxu0 %v3268
  %3936 = vmatpush2.bf16.msra.mxu0 %v3267
  %3937 = vmatprep.subr.bf16.mxu0 %v3260
  %3938 = vmatpush2.bf16.msra.mxu0 %v3259
  %3939 = vmatprep.subr.bf16.mxu0 %v3252
  %3940 = vmatpush2.bf16.msra.mxu0 %v3251
  %3941 = vmatprep.subr.bf16.mxu0 %v3244
  %3942 = vmatpush2.bf16.msra.mxu0 %v3243
  %3943 = vmatprep.subr.bf16.mxu0 %v3236
  %3944 = vmatpush2.bf16.msra.mxu0 %v3235
  %3945 = vmatprep.subr.bf16.mxu0 %v3228
  %3946 = vmatpush2.bf16.msra.mxu0 %v3227
  %3947 = vmatprep.mubr.bf16.mxu0 %v262
  %3948 = vmatmul.mubr.bf16.gmra.mxu0 %v261
  %v3949 = vpop.f32.mrf.mxu0
  %v3950 = vadd.f32 %v2383, %v3949
  %v3951 = vpop.f32.mrf.mxu0
  %v3952 = vadd.f32 %v2385, %v3951
  %v3953 = vpop.f32.mrf.mxu0
  %v3954 = vpop.f32.mrf.mxu0
  %3955 = vdwg.mxu0
  %3956 = vmatprep.subr.bf16.mxu0 %v3348
  %3957 = vmatpush1.bf16.msra.mxu0 %v3347
  %3958 = vmatprep.subr.bf16.mxu0 %v3340
  %3959 = vmatpush1.bf16.msra.mxu0 %v3339
  %3960 = vmatprep.subr.bf16.mxu0 %v3332
  %3961 = vmatpush1.bf16.msra.mxu0 %v3331
  %3962 = vmatprep.subr.bf16.mxu0 %v3324
  %3963 = vmatpush1.bf16.msra.mxu0 %v3323
  %3964 = vmatprep.subr.bf16.mxu0 %v3316
  %3965 = vmatpush1.bf16.msra.mxu0 %v3315
  %3966 = vmatprep.subr.bf16.mxu0 %v3308
  %3967 = vmatpush1.bf16.msra.mxu0 %v3307
  %3968 = vmatprep.subr.bf16.mxu0 %v3300
  %3969 = vmatpush1.bf16.msra.mxu0 %v3299
  %3970 = vmatprep.subr.bf16.mxu0 %v3292
  %3971 = vmatpush1.bf16.msra.mxu0 %v3291
  %3972 = vmatprep.subr.bf16.mxu0 %v3412
  %3973 = vmatpush2.bf16.msra.mxu0 %v3411
  %3974 = vmatprep.subr.bf16.mxu0 %v3404
  %3975 = vmatpush2.bf16.msra.mxu0 %v3403
  %3976 = vmatprep.subr.bf16.mxu0 %v3396
  %3977 = vmatpush2.bf16.msra.mxu0 %v3395
  %3978 = vmatprep.subr.bf16.mxu0 %v3388
  %3979 = vmatpush2.bf16.msra.mxu0 %v3387
  %3980 = vmatprep.subr.bf16.mxu0 %v3380
  %3981 = vmatpush2.bf16.msra.mxu0 %v3379
  %3982 = vmatprep.subr.bf16.mxu0 %v3372
  %3983 = vmatpush2.bf16.msra.mxu0 %v3371
  %3984 = vmatprep.subr.bf16.mxu0 %v3364
  %3985 = vmatpush2.bf16.msra.mxu0 %v3363
  %3986 = vmatprep.subr.bf16.mxu0 %v3356
  %3987 = vmatpush2.bf16.msra.mxu0 %v3355
  %3988 = vmatprep.mubr.bf16.mxu0 %v264
  %3989 = vmatmul.mubr.bf16.gmra.mxu0 %v263
  %v3990 = vpop.f32.mrf.mxu0
  %v3991 = vadd.f32 %v3950, %v3990
  %v3992 = vpop.f32.mrf.mxu0
  %v3993 = vadd.f32 %v3952, %v3992
  %v3994 = vpop.f32.mrf.mxu0
  %v3995 = vpop.f32.mrf.mxu0
  %3996 = vdwg.mxu0
  %v3997 = vld [vmem:[%s8] sm:$0xff]
  %v3999 = vlaneseq
  %v4000 = vshrl.u32 %v3999, 7
  %v4001 = vsub.s32 0, %v4000
  %v4002 = vrot.slane %v3997, %v4001
  %v4003 = vlaneseq
  %v4004 = vshrl.u32 %v4003, 7
  %v4005 = vsub.s32 1, %v4004
  %v4006 = vrot.slane %v3997, %v4005
  %v4007 = vlaneseq
  %v4008 = vshrl.u32 %v4007, 7
  %v4009 = vsub.s32 2, %v4008
  %v4010 = vrot.slane %v3997, %v4009
  %v4011 = vlaneseq
  %v4012 = vshrl.u32 %v4011, 7
  %v4013 = vsub.s32 3, %v4012
  %v4014 = vrot.slane %v3997, %v4013
  %v4015 = vlaneseq
  %v4016 = vshrl.u32 %v4015, 7
  %v4017 = vsub.s32 4, %v4016
  %v4018 = vrot.slane %v3997, %v4017
  %v4019 = vlaneseq
  %v4020 = vshrl.u32 %v4019, 7
  %v4021 = vsub.s32 5, %v4020
  %v4022 = vrot.slane %v3997, %v4021
  %v4023 = vlaneseq
  %v4024 = vshrl.u32 %v4023, 7
  %v4025 = vsub.s32 6, %v4024
  %v4026 = vrot.slane %v3997, %v4025
  %v4027 = vlaneseq
  %v4028 = vshrl.u32 %v4027, 7
  %v4029 = vsub.s32 7, %v4028
  %v4030 = vrot.slane %v3997, %v4029
  %v4039 = vadd.f32 %v3745, %v4002
  %v4040 = vadd.f32 %v3747, %v4006
  %v4041 = vadd.f32 %v3827, %v4010
  %v4042 = vadd.f32 %v3829, %v4014
  %v4043 = vadd.f32 %v3909, %v4018
  %v4044 = vadd.f32 %v3911, %v4022
  %v4045 = vadd.f32 %v3991, %v4026
  %v4046 = vadd.f32 %v3993, %v4030
  %v4047 = vld [vmem:[%s9] sm:$0xff]
  %v4048 = vld [vmem:[%s10] sm:$0xff]
  %v4049 = vadd.f32 %v4039, %v4040
  %v4050 = vadd.f32 %v4049, %v4041
  %v4051 = vadd.f32 %v4050, %v4042
  %v4052 = vadd.f32 %v4051, %v4043
  %v4053 = vadd.f32 %v4052, %v4044
  %v4054 = vadd.f32 %v4053, %v4045
  %v4055 = vadd.f32 %v4054, %v4046
  %4056 = vadd.xlane.f32.xlu0 %v4055
  %v4057 = vpop.xlane.xlu0 %4056
  %v4058 = vrcp.pop 1024.0
  %v4059 = vmul.f32 %v4057, %v4058
  %v4060 = vsub.f32 %v4039, %v4059
  %v4061 = vsub.f32 %v4040, %v4059
  %v4062 = vsub.f32 %v4041, %v4059
  %v4063 = vsub.f32 %v4042, %v4059
  %v4064 = vsub.f32 %v4043, %v4059
  %v4065 = vsub.f32 %v4044, %v4059
  %v4066 = vsub.f32 %v4045, %v4059
  %v4067 = vsub.f32 %v4046, %v4059
  %v4068 = vmul.f32 %v4060, %v4060
  %v4069 = vmul.f32 %v4061, %v4061
  %v4070 = vmul.f32 %v4062, %v4062
  %v4071 = vmul.f32 %v4063, %v4063
  %v4072 = vmul.f32 %v4064, %v4064
  %v4073 = vmul.f32 %v4065, %v4065
  %v4074 = vmul.f32 %v4066, %v4066
  %v4075 = vmul.f32 %v4067, %v4067
  %v4076 = vadd.f32 %v4068, %v4069
  %v4077 = vadd.f32 %v4076, %v4070
  %v4078 = vadd.f32 %v4077, %v4071
  %v4079 = vadd.f32 %v4078, %v4072
  %v4080 = vadd.f32 %v4079, %v4073
  %v4081 = vadd.f32 %v4080, %v4074
  %v4082 = vadd.f32 %v4081, %v4075
  %4083 = vadd.xlane.f32.xlu0 %v4082
  %v4084 = vpop.xlane.xlu0 %4083
  %v4085 = vmul.f32 %v4084, %v4058
  %v4086 = vadd.f32 %v4085, 1e-05
  %v4087 = vrsqrt.pop %v4086
  %v4088 = vmul.f32 %v4060, %v4087
  %v4089 = vmul.f32 %v4061, %v4087
  %v4090 = vmul.f32 %v4062, %v4087
  %v4091 = vmul.f32 %v4063, %v4087
  %v4092 = vmul.f32 %v4064, %v4087
  %v4093 = vmul.f32 %v4065, %v4087
  %v4094 = vmul.f32 %v4066, %v4087
  %v4095 = vmul.f32 %v4067, %v4087
  %v4097 = vlaneseq
  %v4098 = vshrl.u32 %v4097, 7
  %v4099 = vsub.s32 0, %v4098
  %v4100 = vrot.slane %v4047, %v4099
  %v4101 = vlaneseq
  %v4102 = vshrl.u32 %v4101, 7
  %v4103 = vsub.s32 1, %v4102
  %v4104 = vrot.slane %v4047, %v4103
  %v4105 = vlaneseq
  %v4106 = vshrl.u32 %v4105, 7
  %v4107 = vsub.s32 2, %v4106
  %v4108 = vrot.slane %v4047, %v4107
  %v4109 = vlaneseq
  %v4110 = vshrl.u32 %v4109, 7
  %v4111 = vsub.s32 3, %v4110
  %v4112 = vrot.slane %v4047, %v4111
  %v4113 = vlaneseq
  %v4114 = vshrl.u32 %v4113, 7
  %v4115 = vsub.s32 4, %v4114
  %v4116 = vrot.slane %v4047, %v4115
  %v4117 = vlaneseq
  %v4118 = vshrl.u32 %v4117, 7
  %v4119 = vsub.s32 5, %v4118
  %v4120 = vrot.slane %v4047, %v4119
  %v4121 = vlaneseq
  %v4122 = vshrl.u32 %v4121, 7
  %v4123 = vsub.s32 6, %v4122
  %v4124 = vrot.slane %v4047, %v4123
  %v4125 = vlaneseq
  %v4126 = vshrl.u32 %v4125, 7
  %v4127 = vsub.s32 7, %v4126
  %v4128 = vrot.slane %v4047, %v4127
  %v4137 = vmul.f32 %v4088, %v4100
  %v4138 = vmul.f32 %v4089, %v4104
  %v4139 = vmul.f32 %v4090, %v4108
  %v4140 = vmul.f32 %v4091, %v4112
  %v4141 = vmul.f32 %v4092, %v4116
  %v4142 = vmul.f32 %v4093, %v4120
  %v4143 = vmul.f32 %v4094, %v4124
  %v4144 = vmul.f32 %v4095, %v4128
  %v4146 = vlaneseq
  %v4147 = vshrl.u32 %v4146, 7
  %v4148 = vsub.s32 0, %v4147
  %v4149 = vrot.slane %v4048, %v4148
  %v4150 = vlaneseq
  %v4151 = vshrl.u32 %v4150, 7
  %v4152 = vsub.s32 1, %v4151
  %v4153 = vrot.slane %v4048, %v4152
  %v4154 = vlaneseq
  %v4155 = vshrl.u32 %v4154, 7
  %v4156 = vsub.s32 2, %v4155
  %v4157 = vrot.slane %v4048, %v4156
  %v4158 = vlaneseq
  %v4159 = vshrl.u32 %v4158, 7
  %v4160 = vsub.s32 3, %v4159
  %v4161 = vrot.slane %v4048, %v4160
  %v4162 = vlaneseq
  %v4163 = vshrl.u32 %v4162, 7
  %v4164 = vsub.s32 4, %v4163
  %v4165 = vrot.slane %v4048, %v4164
  %v4166 = vlaneseq
  %v4167 = vshrl.u32 %v4166, 7
  %v4168 = vsub.s32 5, %v4167
  %v4169 = vrot.slane %v4048, %v4168
  %v4170 = vlaneseq
  %v4171 = vshrl.u32 %v4170, 7
  %v4172 = vsub.s32 6, %v4171
  %v4173 = vrot.slane %v4048, %v4172
  %v4174 = vlaneseq
  %v4175 = vshrl.u32 %v4174, 7
  %v4176 = vsub.s32 7, %v4175
  %v4177 = vrot.slane %v4048, %v4176
  %v4186 = vadd.f32 %v4137, %v4149
  %v4187 = vadd.f32 %v4138, %v4153
  %v4188 = vadd.f32 %v4139, %v4157
  %v4189 = vadd.f32 %v4140, %v4161
  %v4190 = vadd.f32 %v4141, %v4165
  %v4191 = vadd.f32 %v4142, %v4169
  %v4192 = vadd.f32 %v4143, %v4173
  %v4193 = vadd.f32 %v4144, %v4177
  %v4194 = vmax.f32 %v4186, 0.0
  %v4195 = vmax.f32 %v4187, 0.0
  %v4196 = vmax.f32 %v4188, 0.0
  %v4197 = vmax.f32 %v4189, 0.0
  %v4198 = vmax.f32 %v4190, 0.0
  %v4199 = vmax.f32 %v4191, 0.0
  %v4200 = vmax.f32 %v4192, 0.0
  %v4201 = vmax.f32 %v4193, 0.0
  %v4202 = vpack.c.bf16 %v4194, %v4194
  %v4203 = vpack.c.bf16 %v4195, %v4195
  %v4204 = vpack.c.bf16 %v4196, %v4196
  %v4205 = vpack.c.bf16 %v4197, %v4197
  %v4206 = vpack.c.bf16 %v4198, %v4198
  %v4207 = vpack.c.bf16 %v4199, %v4199
  %v4208 = vpack.c.bf16 %v4200, %v4200
  %v4209 = vpack.c.bf16 %v4201, %v4201
  %v4210 = vld [vmem:[%s11] sm:$0xff]
  %v4211 = vld [vmem:[%s11 + $0x8] sm:$0xff]
  %v4212 = vld [vmem:[%s11 + $0x10] sm:$0xff]
  %v4213 = vld [vmem:[%s11 + $0x18] sm:$0xff]
  %v4214 = vld [vmem:[%s11 + $0x20] sm:$0xff]
  %v4215 = vld [vmem:[%s11 + $0x28] sm:$0xff]
  %v4216 = vld [vmem:[%s11 + $0x30] sm:$0xff]
  %v4217 = vld [vmem:[%s11 + $0x38] sm:$0xff]
  %v4218 = vld [vmem:[%s11 + $0x40] sm:$0xff]
  %v4219 = vld [vmem:[%s11 + $0x48] sm:$0xff]
  %v4220 = vld [vmem:[%s11 + $0x50] sm:$0xff]
  %v4221 = vld [vmem:[%s11 + $0x58] sm:$0xff]
  %v4222 = vld [vmem:[%s11 + $0x60] sm:$0xff]
  %v4223 = vld [vmem:[%s11 + $0x68] sm:$0xff]
  %v4224 = vld [vmem:[%s11 + $0x70] sm:$0xff]
  %v4225 = vld [vmem:[%s11 + $0x78] sm:$0xff]
  %v4226 = vld [vmem:[%s11 + $0x80] sm:$0xff]
  %v4227 = vld [vmem:[%s11 + $0x88] sm:$0xff]
  %v4228 = vld [vmem:[%s11 + $0x90] sm:$0xff]
  %v4229 = vld [vmem:[%s11 + $0x98] sm:$0xff]
  %v4230 = vld [vmem:[%s11 + $0xa0] sm:$0xff]
  %v4231 = vld [vmem:[%s11 + $0xa8] sm:$0xff]
  %v4232 = vld [vmem:[%s11 + $0xb0] sm:$0xff]
  %v4233 = vld [vmem:[%s11 + $0xb8] sm:$0xff]
  %v4234 = vld [vmem:[%s11 + $0xc0] sm:$0xff]
  %v4235 = vld [vmem:[%s11 + $0xc8] sm:$0xff]
  %v4236 = vld [vmem:[%s11 + $0xd0] sm:$0xff]
  %v4237 = vld [vmem:[%s11 + $0xd8] sm:$0xff]
  %v4238 = vld [vmem:[%s11 + $0xe0] sm:$0xff]
  %v4239 = vld [vmem:[%s11 + $0xe8] sm:$0xff]
  %v4240 = vld [vmem:[%s11 + $0xf0] sm:$0xff]
  %v4241 = vld [vmem:[%s11 + $0xf8] sm:$0xff]
  %v4242 = vld [vmem:[%s11 + $0x100] sm:$0xff]
  %v4243 = vld [vmem:[%s11 + $0x108] sm:$0xff]
  %v4244 = vld [vmem:[%s11 + $0x110] sm:$0xff]
  %v4245 = vld [vmem:[%s11 + $0x118] sm:$0xff]
  %v4246 = vld [vmem:[%s11 + $0x120] sm:$0xff]
  %v4247 = vld [vmem:[%s11 + $0x128] sm:$0xff]
  %v4248 = vld [vmem:[%s11 + $0x130] sm:$0xff]
  %v4249 = vld [vmem:[%s11 + $0x138] sm:$0xff]
  %v4250 = vld [vmem:[%s11 + $0x140] sm:$0xff]
  %v4251 = vld [vmem:[%s11 + $0x148] sm:$0xff]
  %v4252 = vld [vmem:[%s11 + $0x150] sm:$0xff]
  %v4253 = vld [vmem:[%s11 + $0x158] sm:$0xff]
  %v4254 = vld [vmem:[%s11 + $0x160] sm:$0xff]
  %v4255 = vld [vmem:[%s11 + $0x168] sm:$0xff]
  %v4256 = vld [vmem:[%s11 + $0x170] sm:$0xff]
  %v4257 = vld [vmem:[%s11 + $0x178] sm:$0xff]
  %v4258 = vld [vmem:[%s11 + $0x180] sm:$0xff]
  %v4259 = vld [vmem:[%s11 + $0x188] sm:$0xff]
  %v4260 = vld [vmem:[%s11 + $0x190] sm:$0xff]
  %v4261 = vld [vmem:[%s11 + $0x198] sm:$0xff]
  %v4262 = vld [vmem:[%s11 + $0x1a0] sm:$0xff]
  %v4263 = vld [vmem:[%s11 + $0x1a8] sm:$0xff]
  %v4264 = vld [vmem:[%s11 + $0x1b0] sm:$0xff]
  %v4265 = vld [vmem:[%s11 + $0x1b8] sm:$0xff]
  %v4266 = vld [vmem:[%s11 + $0x1c0] sm:$0xff]
  %v4267 = vld [vmem:[%s11 + $0x1c8] sm:$0xff]
  %v4268 = vld [vmem:[%s11 + $0x1d0] sm:$0xff]
  %v4269 = vld [vmem:[%s11 + $0x1d8] sm:$0xff]
  %v4270 = vld [vmem:[%s11 + $0x1e0] sm:$0xff]
  %v4271 = vld [vmem:[%s11 + $0x1e8] sm:$0xff]
  %v4272 = vld [vmem:[%s11 + $0x1f0] sm:$0xff]
  %v4273 = vld [vmem:[%s11 + $0x1f8] sm:$0xff]
  %v4274 = vld [vmem:[%s11 + $0x200] sm:$0xff]
  %v4275 = vld [vmem:[%s11 + $0x208] sm:$0xff]
  %v4276 = vld [vmem:[%s11 + $0x210] sm:$0xff]
  %v4277 = vld [vmem:[%s11 + $0x218] sm:$0xff]
  %v4278 = vld [vmem:[%s11 + $0x220] sm:$0xff]
  %v4279 = vld [vmem:[%s11 + $0x228] sm:$0xff]
  %v4280 = vld [vmem:[%s11 + $0x230] sm:$0xff]
  %v4281 = vld [vmem:[%s11 + $0x238] sm:$0xff]
  %v4282 = vld [vmem:[%s11 + $0x240] sm:$0xff]
  %v4283 = vld [vmem:[%s11 + $0x248] sm:$0xff]
  %v4284 = vld [vmem:[%s11 + $0x250] sm:$0xff]
  %v4285 = vld [vmem:[%s11 + $0x258] sm:$0xff]
  %v4286 = vld [vmem:[%s11 + $0x260] sm:$0xff]
  %v4287 = vld [vmem:[%s11 + $0x268] sm:$0xff]
  %v4288 = vld [vmem:[%s11 + $0x270] sm:$0xff]
  %v4289 = vld [vmem:[%s11 + $0x278] sm:$0xff]
  %v4290 = vld [vmem:[%s11 + $0x280] sm:$0xff]
  %v4291 = vld [vmem:[%s11 + $0x288] sm:$0xff]
  %v4292 = vld [vmem:[%s11 + $0x290] sm:$0xff]
  %v4293 = vld [vmem:[%s11 + $0x298] sm:$0xff]
  %v4294 = vld [vmem:[%s11 + $0x2a0] sm:$0xff]
  %v4295 = vld [vmem:[%s11 + $0x2a8] sm:$0xff]
  %v4296 = vld [vmem:[%s11 + $0x2b0] sm:$0xff]
  %v4297 = vld [vmem:[%s11 + $0x2b8] sm:$0xff]
  %v4298 = vld [vmem:[%s11 + $0x2c0] sm:$0xff]
  %v4299 = vld [vmem:[%s11 + $0x2c8] sm:$0xff]
  %v4300 = vld [vmem:[%s11 + $0x2d0] sm:$0xff]
  %v4301 = vld [vmem:[%s11 + $0x2d8] sm:$0xff]
  %v4302 = vld [vmem:[%s11 + $0x2e0] sm:$0xff]
  %v4303 = vld [vmem:[%s11 + $0x2e8] sm:$0xff]
  %v4304 = vld [vmem:[%s11 + $0x2f0] sm:$0xff]
  %v4305 = vld [vmem:[%s11 + $0x2f8] sm:$0xff]
  %v4306 = vld [vmem:[%s11 + $0x300] sm:$0xff]
  %v4307 = vld [vmem:[%s11 + $0x308] sm:$0xff]
  %v4308 = vld [vmem:[%s11 + $0x310] sm:$0xff]
  %v4309 = vld [vmem:[%s11 + $0x318] sm:$0xff]
  %v4310 = vld [vmem:[%s11 + $0x320] sm:$0xff]
  %v4311 = vld [vmem:[%s11 + $0x328] sm:$0xff]
  %v4312 = vld [vmem:[%s11 + $0x330] sm:$0xff]
  %v4313 = vld [vmem:[%s11 + $0x338] sm:$0xff]
  %v4314 = vld [vmem:[%s11 + $0x340] sm:$0xff]
  %v4315 = vld [vmem:[%s11 + $0x348] sm:$0xff]
  %v4316 = vld [vmem:[%s11 + $0x350] sm:$0xff]
  %v4317 = vld [vmem:[%s11 + $0x358] sm:$0xff]
  %v4318 = vld [vmem:[%s11 + $0x360] sm:$0xff]
  %v4319 = vld [vmem:[%s11 + $0x368] sm:$0xff]
  %v4320 = vld [vmem:[%s11 + $0x370] sm:$0xff]
  %v4321 = vld [vmem:[%s11 + $0x378] sm:$0xff]
  %v4322 = vld [vmem:[%s11 + $0x380] sm:$0xff]
  %v4323 = vld [vmem:[%s11 + $0x388] sm:$0xff]
  %v4324 = vld [vmem:[%s11 + $0x390] sm:$0xff]
  %v4325 = vld [vmem:[%s11 + $0x398] sm:$0xff]
  %v4326 = vld [vmem:[%s11 + $0x3a0] sm:$0xff]
  %v4327 = vld [vmem:[%s11 + $0x3a8] sm:$0xff]
  %v4328 = vld [vmem:[%s11 + $0x3b0] sm:$0xff]
  %v4329 = vld [vmem:[%s11 + $0x3b8] sm:$0xff]
  %v4330 = vld [vmem:[%s11 + $0x3c0] sm:$0xff]
  %v4331 = vld [vmem:[%s11 + $0x3c8] sm:$0xff]
  %v4332 = vld [vmem:[%s11 + $0x3d0] sm:$0xff]
  %v4333 = vld [vmem:[%s11 + $0x3d8] sm:$0xff]
  %v4334 = vld [vmem:[%s11 + $0x3e0] sm:$0xff]
  %v4335 = vld [vmem:[%s11 + $0x3e8] sm:$0xff]
  %v4336 = vld [vmem:[%s11 + $0x3f0] sm:$0xff]
  %v4337 = vld [vmem:[%s11 + $0x3f8] sm:$0xff]
  %v4338 = vld [vmem:[%s11 + $0x400] sm:$0xff]
  %v4339 = vld [vmem:[%s11 + $0x408] sm:$0xff]
  %v4340 = vld [vmem:[%s11 + $0x410] sm:$0xff]
  %v4341 = vld [vmem:[%s11 + $0x418] sm:$0xff]
  %v4342 = vld [vmem:[%s11 + $0x420] sm:$0xff]
  %v4343 = vld [vmem:[%s11 + $0x428] sm:$0xff]
  %v4344 = vld [vmem:[%s11 + $0x430] sm:$0xff]
  %v4345 = vld [vmem:[%s11 + $0x438] sm:$0xff]
  %v4346 = vld [vmem:[%s11 + $0x440] sm:$0xff]
  %v4347 = vld [vmem:[%s11 + $0x448] sm:$0xff]
  %v4348 = vld [vmem:[%s11 + $0x450] sm:$0xff]
  %v4349 = vld [vmem:[%s11 + $0x458] sm:$0xff]
  %v4350 = vld [vmem:[%s11 + $0x460] sm:$0xff]
  %v4351 = vld [vmem:[%s11 + $0x468] sm:$0xff]
  %v4352 = vld [vmem:[%s11 + $0x470] sm:$0xff]
  %v4353 = vld [vmem:[%s11 + $0x478] sm:$0xff]
  %v4354 = vld [vmem:[%s11 + $0x480] sm:$0xff]
  %v4355 = vld [vmem:[%s11 + $0x488] sm:$0xff]
  %v4356 = vld [vmem:[%s11 + $0x490] sm:$0xff]
  %v4357 = vld [vmem:[%s11 + $0x498] sm:$0xff]
  %v4358 = vld [vmem:[%s11 + $0x4a0] sm:$0xff]
  %v4359 = vld [vmem:[%s11 + $0x4a8] sm:$0xff]
  %v4360 = vld [vmem:[%s11 + $0x4b0] sm:$0xff]
  %v4361 = vld [vmem:[%s11 + $0x4b8] sm:$0xff]
  %v4362 = vld [vmem:[%s11 + $0x4c0] sm:$0xff]
  %v4363 = vld [vmem:[%s11 + $0x4c8] sm:$0xff]
  %v4364 = vld [vmem:[%s11 + $0x4d0] sm:$0xff]
  %v4365 = vld [vmem:[%s11 + $0x4d8] sm:$0xff]
  %v4366 = vld [vmem:[%s11 + $0x4e0] sm:$0xff]
  %v4367 = vld [vmem:[%s11 + $0x4e8] sm:$0xff]
  %v4368 = vld [vmem:[%s11 + $0x4f0] sm:$0xff]
  %v4369 = vld [vmem:[%s11 + $0x4f8] sm:$0xff]
  %v4370 = vld [vmem:[%s11 + $0x500] sm:$0xff]
  %v4371 = vld [vmem:[%s11 + $0x508] sm:$0xff]
  %v4372 = vld [vmem:[%s11 + $0x510] sm:$0xff]
  %v4373 = vld [vmem:[%s11 + $0x518] sm:$0xff]
  %v4374 = vld [vmem:[%s11 + $0x520] sm:$0xff]
  %v4375 = vld [vmem:[%s11 + $0x528] sm:$0xff]
  %v4376 = vld [vmem:[%s11 + $0x530] sm:$0xff]
  %v4377 = vld [vmem:[%s11 + $0x538] sm:$0xff]
  %v4378 = vld [vmem:[%s11 + $0x540] sm:$0xff]
  %v4379 = vld [vmem:[%s11 + $0x548] sm:$0xff]
  %v4380 = vld [vmem:[%s11 + $0x550] sm:$0xff]
  %v4381 = vld [vmem:[%s11 + $0x558] sm:$0xff]
  %v4382 = vld [vmem:[%s11 + $0x560] sm:$0xff]
  %v4383 = vld [vmem:[%s11 + $0x568] sm:$0xff]
  %v4384 = vld [vmem:[%s11 + $0x570] sm:$0xff]
  %v4385 = vld [vmem:[%s11 + $0x578] sm:$0xff]
  %v4386 = vld [vmem:[%s11 + $0x580] sm:$0xff]
  %v4387 = vld [vmem:[%s11 + $0x588] sm:$0xff]
  %v4388 = vld [vmem:[%s11 + $0x590] sm:$0xff]
  %v4389 = vld [vmem:[%s11 + $0x598] sm:$0xff]
  %v4390 = vld [vmem:[%s11 + $0x5a0] sm:$0xff]
  %v4391 = vld [vmem:[%s11 + $0x5a8] sm:$0xff]
  %v4392 = vld [vmem:[%s11 + $0x5b0] sm:$0xff]
  %v4393 = vld [vmem:[%s11 + $0x5b8] sm:$0xff]
  %v4394 = vld [vmem:[%s11 + $0x5c0] sm:$0xff]
  %v4395 = vld [vmem:[%s11 + $0x5c8] sm:$0xff]
  %v4396 = vld [vmem:[%s11 + $0x5d0] sm:$0xff]
  %v4397 = vld [vmem:[%s11 + $0x5d8] sm:$0xff]
  %v4398 = vld [vmem:[%s11 + $0x5e0] sm:$0xff]
  %v4399 = vld [vmem:[%s11 + $0x5e8] sm:$0xff]
  %v4400 = vld [vmem:[%s11 + $0x5f0] sm:$0xff]
  %v4401 = vld [vmem:[%s11 + $0x5f8] sm:$0xff]
  %v4402 = vld [vmem:[%s11 + $0x600] sm:$0xff]
  %v4403 = vld [vmem:[%s11 + $0x608] sm:$0xff]
  %v4404 = vld [vmem:[%s11 + $0x610] sm:$0xff]
  %v4405 = vld [vmem:[%s11 + $0x618] sm:$0xff]
  %v4406 = vld [vmem:[%s11 + $0x620] sm:$0xff]
  %v4407 = vld [vmem:[%s11 + $0x628] sm:$0xff]
  %v4408 = vld [vmem:[%s11 + $0x630] sm:$0xff]
  %v4409 = vld [vmem:[%s11 + $0x638] sm:$0xff]
  %v4410 = vld [vmem:[%s11 + $0x640] sm:$0xff]
  %v4411 = vld [vmem:[%s11 + $0x648] sm:$0xff]
  %v4412 = vld [vmem:[%s11 + $0x650] sm:$0xff]
  %v4413 = vld [vmem:[%s11 + $0x658] sm:$0xff]
  %v4414 = vld [vmem:[%s11 + $0x660] sm:$0xff]
  %v4415 = vld [vmem:[%s11 + $0x668] sm:$0xff]
  %v4416 = vld [vmem:[%s11 + $0x670] sm:$0xff]
  %v4417 = vld [vmem:[%s11 + $0x678] sm:$0xff]
  %v4418 = vld [vmem:[%s11 + $0x680] sm:$0xff]
  %v4419 = vld [vmem:[%s11 + $0x688] sm:$0xff]
  %v4420 = vld [vmem:[%s11 + $0x690] sm:$0xff]
  %v4421 = vld [vmem:[%s11 + $0x698] sm:$0xff]
  %v4422 = vld [vmem:[%s11 + $0x6a0] sm:$0xff]
  %v4423 = vld [vmem:[%s11 + $0x6a8] sm:$0xff]
  %v4424 = vld [vmem:[%s11 + $0x6b0] sm:$0xff]
  %v4425 = vld [vmem:[%s11 + $0x6b8] sm:$0xff]
  %v4426 = vld [vmem:[%s11 + $0x6c0] sm:$0xff]
  %v4427 = vld [vmem:[%s11 + $0x6c8] sm:$0xff]
  %v4428 = vld [vmem:[%s11 + $0x6d0] sm:$0xff]
  %v4429 = vld [vmem:[%s11 + $0x6d8] sm:$0xff]
  %v4430 = vld [vmem:[%s11 + $0x6e0] sm:$0xff]
  %v4431 = vld [vmem:[%s11 + $0x6e8] sm:$0xff]
  %v4432 = vld [vmem:[%s11 + $0x6f0] sm:$0xff]
  %v4433 = vld [vmem:[%s11 + $0x6f8] sm:$0xff]
  %v4434 = vld [vmem:[%s11 + $0x700] sm:$0xff]
  %v4435 = vld [vmem:[%s11 + $0x708] sm:$0xff]
  %v4436 = vld [vmem:[%s11 + $0x710] sm:$0xff]
  %v4437 = vld [vmem:[%s11 + $0x718] sm:$0xff]
  %v4438 = vld [vmem:[%s11 + $0x720] sm:$0xff]
  %v4439 = vld [vmem:[%s11 + $0x728] sm:$0xff]
  %v4440 = vld [vmem:[%s11 + $0x730] sm:$0xff]
  %v4441 = vld [vmem:[%s11 + $0x738] sm:$0xff]
  %v4442 = vld [vmem:[%s11 + $0x740] sm:$0xff]
  %v4443 = vld [vmem:[%s11 + $0x748] sm:$0xff]
  %v4444 = vld [vmem:[%s11 + $0x750] sm:$0xff]
  %v4445 = vld [vmem:[%s11 + $0x758] sm:$0xff]
  %v4446 = vld [vmem:[%s11 + $0x760] sm:$0xff]
  %v4447 = vld [vmem:[%s11 + $0x768] sm:$0xff]
  %v4448 = vld [vmem:[%s11 + $0x770] sm:$0xff]
  %v4449 = vld [vmem:[%s11 + $0x778] sm:$0xff]
  %v4450 = vld [vmem:[%s11 + $0x780] sm:$0xff]
  %v4451 = vld [vmem:[%s11 + $0x788] sm:$0xff]
  %v4452 = vld [vmem:[%s11 + $0x790] sm:$0xff]
  %v4453 = vld [vmem:[%s11 + $0x798] sm:$0xff]
  %v4454 = vld [vmem:[%s11 + $0x7a0] sm:$0xff]
  %v4455 = vld [vmem:[%s11 + $0x7a8] sm:$0xff]
  %v4456 = vld [vmem:[%s11 + $0x7b0] sm:$0xff]
  %v4457 = vld [vmem:[%s11 + $0x7b8] sm:$0xff]
  %v4458 = vld [vmem:[%s11 + $0x7c0] sm:$0xff]
  %v4459 = vld [vmem:[%s11 + $0x7c8] sm:$0xff]
  %v4460 = vld [vmem:[%s11 + $0x7d0] sm:$0xff]
  %v4461 = vld [vmem:[%s11 + $0x7d8] sm:$0xff]
  %v4462 = vld [vmem:[%s11 + $0x7e0] sm:$0xff]
  %v4463 = vld [vmem:[%s11 + $0x7e8] sm:$0xff]
  %v4464 = vld [vmem:[%s11 + $0x7f0] sm:$0xff]
  %v4465 = vld [vmem:[%s11 + $0x7f8] sm:$0xff]
  %v4466 = vld [vmem:[%s12] sm:$0xf]
  %v4468 = vlaneseq
  %v4469 = vshrl.u32 %v4468, 7
  %v4470 = vsub.s32 0, %v4469
  %v4471 = vrot.slane %v4466, %v4470
  %v4472 = vlaneseq
  %v4473 = vshrl.u32 %v4472, 7
  %v4474 = vsub.s32 1, %v4473
  %v4475 = vrot.slane %v4466, %v4474
  %v4476 = vlaneseq
  %v4477 = vshrl.u32 %v4476, 7
  %v4478 = vsub.s32 2, %v4477
  %v4479 = vrot.slane %v4466, %v4478
  %v4480 = vlaneseq
  %v4481 = vshrl.u32 %v4480, 7
  %v4482 = vsub.s32 3, %v4481
  %v4483 = vrot.slane %v4466, %v4482
  %v4744 = vunpack.c.l.b16 %v4210
  %v4745 = vunpack.c.h.b16 %v4210
  %v4746 = vunpack.c.l.b16 %v4211
  %v4747 = vunpack.c.h.b16 %v4211
  %v4748 = vunpack.c.l.b16 %v4212
  %v4749 = vunpack.c.h.b16 %v4212
  %v4750 = vunpack.c.l.b16 %v4213
  %v4751 = vunpack.c.h.b16 %v4213
  %v4752 = vunpack.c.l.b16 %v4214
  %v4753 = vunpack.c.h.b16 %v4214
  %v4754 = vunpack.c.l.b16 %v4215
  %v4755 = vunpack.c.h.b16 %v4215
  %v4756 = vunpack.c.l.b16 %v4216
  %v4757 = vunpack.c.h.b16 %v4216
  %v4758 = vunpack.c.l.b16 %v4217
  %v4759 = vunpack.c.h.b16 %v4217
  %v4760 = vunpack.c.l.b16 %v4218
  %v4761 = vunpack.c.h.b16 %v4218
  %v4762 = vunpack.c.l.b16 %v4219
  %v4763 = vunpack.c.h.b16 %v4219
  %v4764 = vunpack.c.l.b16 %v4220
  %v4765 = vunpack.c.h.b16 %v4220
  %v4766 = vunpack.c.l.b16 %v4221
  %v4767 = vunpack.c.h.b16 %v4221
  %v4768 = vunpack.c.l.b16 %v4222
  %v4769 = vunpack.c.h.b16 %v4222
  %v4770 = vunpack.c.l.b16 %v4223
  %v4771 = vunpack.c.h.b16 %v4223
  %v4772 = vunpack.c.l.b16 %v4224
  %v4773 = vunpack.c.h.b16 %v4224
  %v4774 = vunpack.c.l.b16 %v4225
  %v4775 = vunpack.c.h.b16 %v4225
  %v4776 = vunpack.c.l.b16 %v4226
  %v4777 = vunpack.c.h.b16 %v4226
  %v4778 = vunpack.c.l.b16 %v4227
  %v4779 = vunpack.c.h.b16 %v4227
  %v4780 = vunpack.c.l.b16 %v4228
  %v4781 = vunpack.c.h.b16 %v4228
  %v4782 = vunpack.c.l.b16 %v4229
  %v4783 = vunpack.c.h.b16 %v4229
  %v4784 = vunpack.c.l.b16 %v4230
  %v4785 = vunpack.c.h.b16 %v4230
  %v4786 = vunpack.c.l.b16 %v4231
  %v4787 = vunpack.c.h.b16 %v4231
  %v4788 = vunpack.c.l.b16 %v4232
  %v4789 = vunpack.c.h.b16 %v4232
  %v4790 = vunpack.c.l.b16 %v4233
  %v4791 = vunpack.c.h.b16 %v4233
  %v4792 = vunpack.c.l.b16 %v4234
  %v4793 = vunpack.c.h.b16 %v4234
  %v4794 = vunpack.c.l.b16 %v4235
  %v4795 = vunpack.c.h.b16 %v4235
  %v4796 = vunpack.c.l.b16 %v4236
  %v4797 = vunpack.c.h.b16 %v4236
  %v4798 = vunpack.c.l.b16 %v4237
  %v4799 = vunpack.c.h.b16 %v4237
  %v4800 = vunpack.c.l.b16 %v4238
  %v4801 = vunpack.c.h.b16 %v4238
  %v4802 = vunpack.c.l.b16 %v4239
  %v4803 = vunpack.c.h.b16 %v4239
  %v4804 = vunpack.c.l.b16 %v4240
  %v4805 = vunpack.c.h.b16 %v4240
  %v4806 = vunpack.c.l.b16 %v4241
  %v4807 = vunpack.c.h.b16 %v4241
  %v4808 = vunpack.c.l.b16 %v4242
  %v4809 = vunpack.c.h.b16 %v4242
  %v4810 = vunpack.c.l.b16 %v4243
  %v4811 = vunpack.c.h.b16 %v4243
  %v4812 = vunpack.c.l.b16 %v4244
  %v4813 = vunpack.c.h.b16 %v4244
  %v4814 = vunpack.c.l.b16 %v4245
  %v4815 = vunpack.c.h.b16 %v4245
  %v4816 = vunpack.c.l.b16 %v4246
  %v4817 = vunpack.c.h.b16 %v4246
  %v4818 = vunpack.c.l.b16 %v4247
  %v4819 = vunpack.c.h.b16 %v4247
  %v4820 = vunpack.c.l.b16 %v4248
  %v4821 = vunpack.c.h.b16 %v4248
  %v4822 = vunpack.c.l.b16 %v4249
  %v4823 = vunpack.c.h.b16 %v4249
  %v4824 = vunpack.c.l.b16 %v4250
  %v4825 = vunpack.c.h.b16 %v4250
  %v4826 = vunpack.c.l.b16 %v4251
  %v4827 = vunpack.c.h.b16 %v4251
  %v4828 = vunpack.c.l.b16 %v4252
  %v4829 = vunpack.c.h.b16 %v4252
  %v4830 = vunpack.c.l.b16 %v4253
  %v4831 = vunpack.c.h.b16 %v4253
  %v4832 = vunpack.c.l.b16 %v4254
  %v4833 = vunpack.c.h.b16 %v4254
  %v4834 = vunpack.c.l.b16 %v4255
  %v4835 = vunpack.c.h.b16 %v4255
  %v4836 = vunpack.c.l.b16 %v4256
  %v4837 = vunpack.c.h.b16 %v4256
  %v4838 = vunpack.c.l.b16 %v4257
  %v4839 = vunpack.c.h.b16 %v4257
  %v4840 = vunpack.c.l.b16 %v4258
  %v4841 = vunpack.c.h.b16 %v4258
  %v4842 = vunpack.c.l.b16 %v4259
  %v4843 = vunpack.c.h.b16 %v4259
  %v4844 = vunpack.c.l.b16 %v4260
  %v4845 = vunpack.c.h.b16 %v4260
  %v4846 = vunpack.c.l.b16 %v4261
  %v4847 = vunpack.c.h.b16 %v4261
  %v4848 = vunpack.c.l.b16 %v4262
  %v4849 = vunpack.c.h.b16 %v4262
  %v4850 = vunpack.c.l.b16 %v4263
  %v4851 = vunpack.c.h.b16 %v4263
  %v4852 = vunpack.c.l.b16 %v4264
  %v4853 = vunpack.c.h.b16 %v4264
  %v4854 = vunpack.c.l.b16 %v4265
  %v4855 = vunpack.c.h.b16 %v4265
  %v4856 = vunpack.c.l.b16 %v4266
  %v4857 = vunpack.c.h.b16 %v4266
  %v4858 = vunpack.c.l.b16 %v4267
  %v4859 = vunpack.c.h.b16 %v4267
  %v4860 = vunpack.c.l.b16 %v4268
  %v4861 = vunpack.c.h.b16 %v4268
  %v4862 = vunpack.c.l.b16 %v4269
  %v4863 = vunpack.c.h.b16 %v4269
  %v4864 = vunpack.c.l.b16 %v4270
  %v4865 = vunpack.c.h.b16 %v4270
  %v4866 = vunpack.c.l.b16 %v4271
  %v4867 = vunpack.c.h.b16 %v4271
  %v4868 = vunpack.c.l.b16 %v4272
  %v4869 = vunpack.c.h.b16 %v4272
  %v4870 = vunpack.c.l.b16 %v4273
  %v4871 = vunpack.c.h.b16 %v4273
  %v4872 = vunpack.c.l.b16 %v4274
  %v4873 = vunpack.c.h.b16 %v4274
  %v4874 = vunpack.c.l.b16 %v4275
  %v4875 = vunpack.c.h.b16 %v4275
  %v4876 = vunpack.c.l.b16 %v4276
  %v4877 = vunpack.c.h.b16 %v4276
  %v4878 = vunpack.c.l.b16 %v4277
  %v4879 = vunpack.c.h.b16 %v4277
  %v4880 = vunpack.c.l.b16 %v4278
  %v4881 = vunpack.c.h.b16 %v4278
  %v4882 = vunpack.c.l.b16 %v4279
  %v4883 = vunpack.c.h.b16 %v4279
  %v4884 = vunpack.c.l.b16 %v4280
  %v4885 = vunpack.c.h.b16 %v4280
  %v4886 = vunpack.c.l.b16 %v4281
  %v4887 = vunpack.c.h.b16 %v4281
  %v4888 = vunpack.c.l.b16 %v4282
  %v4889 = vunpack.c.h.b16 %v4282
  %v4890 = vunpack.c.l.b16 %v4283
  %v4891 = vunpack.c.h.b16 %v4283
  %v4892 = vunpack.c.l.b16 %v4284
  %v4893 = vunpack.c.h.b16 %v4284
  %v4894 = vunpack.c.l.b16 %v4285
  %v4895 = vunpack.c.h.b16 %v4285
  %v4896 = vunpack.c.l.b16 %v4286
  %v4897 = vunpack.c.h.b16 %v4286
  %v4898 = vunpack.c.l.b16 %v4287
  %v4899 = vunpack.c.h.b16 %v4287
  %v4900 = vunpack.c.l.b16 %v4288
  %v4901 = vunpack.c.h.b16 %v4288
  %v4902 = vunpack.c.l.b16 %v4289
  %v4903 = vunpack.c.h.b16 %v4289
  %v4904 = vunpack.c.l.b16 %v4290
  %v4905 = vunpack.c.h.b16 %v4290
  %v4906 = vunpack.c.l.b16 %v4291
  %v4907 = vunpack.c.h.b16 %v4291
  %v4908 = vunpack.c.l.b16 %v4292
  %v4909 = vunpack.c.h.b16 %v4292
  %v4910 = vunpack.c.l.b16 %v4293
  %v4911 = vunpack.c.h.b16 %v4293
  %v4912 = vunpack.c.l.b16 %v4294
  %v4913 = vunpack.c.h.b16 %v4294
  %v4914 = vunpack.c.l.b16 %v4295
  %v4915 = vunpack.c.h.b16 %v4295
  %v4916 = vunpack.c.l.b16 %v4296
  %v4917 = vunpack.c.h.b16 %v4296
  %v4918 = vunpack.c.l.b16 %v4297
  %v4919 = vunpack.c.h.b16 %v4297
  %v4920 = vunpack.c.l.b16 %v4298
  %v4921 = vunpack.c.h.b16 %v4298
  %v4922 = vunpack.c.l.b16 %v4299
  %v4923 = vunpack.c.h.b16 %v4299
  %v4924 = vunpack.c.l.b16 %v4300
  %v4925 = vunpack.c.h.b16 %v4300
  %v4926 = vunpack.c.l.b16 %v4301
  %v4927 = vunpack.c.h.b16 %v4301
  %v4928 = vunpack.c.l.b16 %v4302
  %v4929 = vunpack.c.h.b16 %v4302
  %v4930 = vunpack.c.l.b16 %v4303
  %v4931 = vunpack.c.h.b16 %v4303
  %v4932 = vunpack.c.l.b16 %v4304
  %v4933 = vunpack.c.h.b16 %v4304
  %v4934 = vunpack.c.l.b16 %v4305
  %v4935 = vunpack.c.h.b16 %v4305
  %v4936 = vunpack.c.l.b16 %v4306
  %v4937 = vunpack.c.h.b16 %v4306
  %v4938 = vunpack.c.l.b16 %v4307
  %v4939 = vunpack.c.h.b16 %v4307
  %v4940 = vunpack.c.l.b16 %v4308
  %v4941 = vunpack.c.h.b16 %v4308
  %v4942 = vunpack.c.l.b16 %v4309
  %v4943 = vunpack.c.h.b16 %v4309
  %v4944 = vunpack.c.l.b16 %v4310
  %v4945 = vunpack.c.h.b16 %v4310
  %v4946 = vunpack.c.l.b16 %v4311
  %v4947 = vunpack.c.h.b16 %v4311
  %v4948 = vunpack.c.l.b16 %v4312
  %v4949 = vunpack.c.h.b16 %v4312
  %v4950 = vunpack.c.l.b16 %v4313
  %v4951 = vunpack.c.h.b16 %v4313
  %v4952 = vunpack.c.l.b16 %v4314
  %v4953 = vunpack.c.h.b16 %v4314
  %v4954 = vunpack.c.l.b16 %v4315
  %v4955 = vunpack.c.h.b16 %v4315
  %v4956 = vunpack.c.l.b16 %v4316
  %v4957 = vunpack.c.h.b16 %v4316
  %v4958 = vunpack.c.l.b16 %v4317
  %v4959 = vunpack.c.h.b16 %v4317
  %v4960 = vunpack.c.l.b16 %v4318
  %v4961 = vunpack.c.h.b16 %v4318
  %v4962 = vunpack.c.l.b16 %v4319
  %v4963 = vunpack.c.h.b16 %v4319
  %v4964 = vunpack.c.l.b16 %v4320
  %v4965 = vunpack.c.h.b16 %v4320
  %v4966 = vunpack.c.l.b16 %v4321
  %v4967 = vunpack.c.h.b16 %v4321
  %v4968 = vunpack.c.l.b16 %v4322
  %v4969 = vunpack.c.h.b16 %v4322
  %v4970 = vunpack.c.l.b16 %v4323
  %v4971 = vunpack.c.h.b16 %v4323
  %v4972 = vunpack.c.l.b16 %v4324
  %v4973 = vunpack.c.h.b16 %v4324
  %v4974 = vunpack.c.l.b16 %v4325
  %v4975 = vunpack.c.h.b16 %v4325
  %v4976 = vunpack.c.l.b16 %v4326
  %v4977 = vunpack.c.h.b16 %v4326
  %v4978 = vunpack.c.l.b16 %v4327
  %v4979 = vunpack.c.h.b16 %v4327
  %v4980 = vunpack.c.l.b16 %v4328
  %v4981 = vunpack.c.h.b16 %v4328
  %v4982 = vunpack.c.l.b16 %v4329
  %v4983 = vunpack.c.h.b16 %v4329
  %v4984 = vunpack.c.l.b16 %v4330
  %v4985 = vunpack.c.h.b16 %v4330
  %v4986 = vunpack.c.l.b16 %v4331
  %v4987 = vunpack.c.h.b16 %v4331
  %v4988 = vunpack.c.l.b16 %v4332
  %v4989 = vunpack.c.h.b16 %v4332
  %v4990 = vunpack.c.l.b16 %v4333
  %v4991 = vunpack.c.h.b16 %v4333
  %v4992 = vunpack.c.l.b16 %v4334
  %v4993 = vunpack.c.h.b16 %v4334
  %v4994 = vunpack.c.l.b16 %v4335
  %v4995 = vunpack.c.h.b16 %v4335
  %v4996 = vunpack.c.l.b16 %v4336
  %v4997 = vunpack.c.h.b16 %v4336
  %v4998 = vunpack.c.l.b16 %v4337
  %v4999 = vunpack.c.h.b16 %v4337
  %v5000 = vunpack.c.l.b16 %v4338
  %v5001 = vunpack.c.h.b16 %v4338
  %v5002 = vunpack.c.l.b16 %v4339
  %v5003 = vunpack.c.h.b16 %v4339
  %v5004 = vunpack.c.l.b16 %v4340
  %v5005 = vunpack.c.h.b16 %v4340
  %v5006 = vunpack.c.l.b16 %v4341
  %v5007 = vunpack.c.h.b16 %v4341
  %v5008 = vunpack.c.l.b16 %v4342
  %v5009 = vunpack.c.h.b16 %v4342
  %v5010 = vunpack.c.l.b16 %v4343
  %v5011 = vunpack.c.h.b16 %v4343
  %v5012 = vunpack.c.l.b16 %v4344
  %v5013 = vunpack.c.h.b16 %v4344
  %v5014 = vunpack.c.l.b16 %v4345
  %v5015 = vunpack.c.h.b16 %v4345
  %v5016 = vunpack.c.l.b16 %v4346
  %v5017 = vunpack.c.h.b16 %v4346
  %v5018 = vunpack.c.l.b16 %v4347
  %v5019 = vunpack.c.h.b16 %v4347
  %v5020 = vunpack.c.l.b16 %v4348
  %v5021 = vunpack.c.h.b16 %v4348
  %v5022 = vunpack.c.l.b16 %v4349
  %v5023 = vunpack.c.h.b16 %v4349
  %v5024 = vunpack.c.l.b16 %v4350
  %v5025 = vunpack.c.h.b16 %v4350
  %v5026 = vunpack.c.l.b16 %v4351
  %v5027 = vunpack.c.h.b16 %v4351
  %v5028 = vunpack.c.l.b16 %v4352
  %v5029 = vunpack.c.h.b16 %v4352
  %v5030 = vunpack.c.l.b16 %v4353
  %v5031 = vunpack.c.h.b16 %v4353
  %v5032 = vunpack.c.l.b16 %v4354
  %v5033 = vunpack.c.h.b16 %v4354
  %v5034 = vunpack.c.l.b16 %v4355
  %v5035 = vunpack.c.h.b16 %v4355
  %v5036 = vunpack.c.l.b16 %v4356
  %v5037 = vunpack.c.h.b16 %v4356
  %v5038 = vunpack.c.l.b16 %v4357
  %v5039 = vunpack.c.h.b16 %v4357
  %v5040 = vunpack.c.l.b16 %v4358
  %v5041 = vunpack.c.h.b16 %v4358
  %v5042 = vunpack.c.l.b16 %v4359
  %v5043 = vunpack.c.h.b16 %v4359
  %v5044 = vunpack.c.l.b16 %v4360
  %v5045 = vunpack.c.h.b16 %v4360
  %v5046 = vunpack.c.l.b16 %v4361
  %v5047 = vunpack.c.h.b16 %v4361
  %v5048 = vunpack.c.l.b16 %v4362
  %v5049 = vunpack.c.h.b16 %v4362
  %v5050 = vunpack.c.l.b16 %v4363
  %v5051 = vunpack.c.h.b16 %v4363
  %v5052 = vunpack.c.l.b16 %v4364
  %v5053 = vunpack.c.h.b16 %v4364
  %v5054 = vunpack.c.l.b16 %v4365
  %v5055 = vunpack.c.h.b16 %v4365
  %v5056 = vunpack.c.l.b16 %v4366
  %v5057 = vunpack.c.h.b16 %v4366
  %v5058 = vunpack.c.l.b16 %v4367
  %v5059 = vunpack.c.h.b16 %v4367
  %v5060 = vunpack.c.l.b16 %v4368
  %v5061 = vunpack.c.h.b16 %v4368
  %v5062 = vunpack.c.l.b16 %v4369
  %v5063 = vunpack.c.h.b16 %v4369
  %v5064 = vunpack.c.l.b16 %v4370
  %v5065 = vunpack.c.h.b16 %v4370
  %v5066 = vunpack.c.l.b16 %v4371
  %v5067 = vunpack.c.h.b16 %v4371
  %v5068 = vunpack.c.l.b16 %v4372
  %v5069 = vunpack.c.h.b16 %v4372
  %v5070 = vunpack.c.l.b16 %v4373
  %v5071 = vunpack.c.h.b16 %v4373
  %v5072 = vunpack.c.l.b16 %v4374
  %v5073 = vunpack.c.h.b16 %v4374
  %v5074 = vunpack.c.l.b16 %v4375
  %v5075 = vunpack.c.h.b16 %v4375
  %v5076 = vunpack.c.l.b16 %v4376
  %v5077 = vunpack.c.h.b16 %v4376
  %v5078 = vunpack.c.l.b16 %v4377
  %v5079 = vunpack.c.h.b16 %v4377
  %v5080 = vunpack.c.l.b16 %v4378
  %v5081 = vunpack.c.h.b16 %v4378
  %v5082 = vunpack.c.l.b16 %v4379
  %v5083 = vunpack.c.h.b16 %v4379
  %v5084 = vunpack.c.l.b16 %v4380
  %v5085 = vunpack.c.h.b16 %v4380
  %v5086 = vunpack.c.l.b16 %v4381
  %v5087 = vunpack.c.h.b16 %v4381
  %v5088 = vunpack.c.l.b16 %v4382
  %v5089 = vunpack.c.h.b16 %v4382
  %v5090 = vunpack.c.l.b16 %v4383
  %v5091 = vunpack.c.h.b16 %v4383
  %v5092 = vunpack.c.l.b16 %v4384
  %v5093 = vunpack.c.h.b16 %v4384
  %v5094 = vunpack.c.l.b16 %v4385
  %v5095 = vunpack.c.h.b16 %v4385
  %v5096 = vunpack.c.l.b16 %v4386
  %v5097 = vunpack.c.h.b16 %v4386
  %v5098 = vunpack.c.l.b16 %v4387
  %v5099 = vunpack.c.h.b16 %v4387
  %v5100 = vunpack.c.l.b16 %v4388
  %v5101 = vunpack.c.h.b16 %v4388
  %v5102 = vunpack.c.l.b16 %v4389
  %v5103 = vunpack.c.h.b16 %v4389
  %v5104 = vunpack.c.l.b16 %v4390
  %v5105 = vunpack.c.h.b16 %v4390
  %v5106 = vunpack.c.l.b16 %v4391
  %v5107 = vunpack.c.h.b16 %v4391
  %v5108 = vunpack.c.l.b16 %v4392
  %v5109 = vunpack.c.h.b16 %v4392
  %v5110 = vunpack.c.l.b16 %v4393
  %v5111 = vunpack.c.h.b16 %v4393
  %v5112 = vunpack.c.l.b16 %v4394
  %v5113 = vunpack.c.h.b16 %v4394
  %v5114 = vunpack.c.l.b16 %v4395
  %v5115 = vunpack.c.h.b16 %v4395
  %v5116 = vunpack.c.l.b16 %v4396
  %v5117 = vunpack.c.h.b16 %v4396
  %v5118 = vunpack.c.l.b16 %v4397
  %v5119 = vunpack.c.h.b16 %v4397
  %v5120 = vunpack.c.l.b16 %v4398
  %v5121 = vunpack.c.h.b16 %v4398
  %v5122 = vunpack.c.l.b16 %v4399
  %v5123 = vunpack.c.h.b16 %v4399
  %v5124 = vunpack.c.l.b16 %v4400
  %v5125 = vunpack.c.h.b16 %v4400
  %v5126 = vunpack.c.l.b16 %v4401
  %v5127 = vunpack.c.h.b16 %v4401
  %v5128 = vunpack.c.l.b16 %v4402
  %v5129 = vunpack.c.h.b16 %v4402
  %v5130 = vunpack.c.l.b16 %v4403
  %v5131 = vunpack.c.h.b16 %v4403
  %v5132 = vunpack.c.l.b16 %v4404
  %v5133 = vunpack.c.h.b16 %v4404
  %v5134 = vunpack.c.l.b16 %v4405
  %v5135 = vunpack.c.h.b16 %v4405
  %v5136 = vunpack.c.l.b16 %v4406
  %v5137 = vunpack.c.h.b16 %v4406
  %v5138 = vunpack.c.l.b16 %v4407
  %v5139 = vunpack.c.h.b16 %v4407
  %v5140 = vunpack.c.l.b16 %v4408
  %v5141 = vunpack.c.h.b16 %v4408
  %v5142 = vunpack.c.l.b16 %v4409
  %v5143 = vunpack.c.h.b16 %v4409
  %v5144 = vunpack.c.l.b16 %v4410
  %v5145 = vunpack.c.h.b16 %v4410
  %v5146 = vunpack.c.l.b16 %v4411
  %v5147 = vunpack.c.h.b16 %v4411
  %v5148 = vunpack.c.l.b16 %v4412
  %v5149 = vunpack.c.h.b16 %v4412
  %v5150 = vunpack.c.l.b16 %v4413
  %v5151 = vunpack.c.h.b16 %v4413
  %v5152 = vunpack.c.l.b16 %v4414
  %v5153 = vunpack.c.h.b16 %v4414
  %v5154 = vunpack.c.l.b16 %v4415
  %v5155 = vunpack.c.h.b16 %v4415
  %v5156 = vunpack.c.l.b16 %v4416
  %v5157 = vunpack.c.h.b16 %v4416
  %v5158 = vunpack.c.l.b16 %v4417
  %v5159 = vunpack.c.h.b16 %v4417
  %v5160 = vunpack.c.l.b16 %v4418
  %v5161 = vunpack.c.h.b16 %v4418
  %v5162 = vunpack.c.l.b16 %v4419
  %v5163 = vunpack.c.h.b16 %v4419
  %v5164 = vunpack.c.l.b16 %v4420
  %v5165 = vunpack.c.h.b16 %v4420
  %v5166 = vunpack.c.l.b16 %v4421
  %v5167 = vunpack.c.h.b16 %v4421
  %v5168 = vunpack.c.l.b16 %v4422
  %v5169 = vunpack.c.h.b16 %v4422
  %v5170 = vunpack.c.l.b16 %v4423
  %v5171 = vunpack.c.h.b16 %v4423
  %v5172 = vunpack.c.l.b16 %v4424
  %v5173 = vunpack.c.h.b16 %v4424
  %v5174 = vunpack.c.l.b16 %v4425
  %v5175 = vunpack.c.h.b16 %v4425
  %v5176 = vunpack.c.l.b16 %v4426
  %v5177 = vunpack.c.h.b16 %v4426
  %v5178 = vunpack.c.l.b16 %v4427
  %v5179 = vunpack.c.h.b16 %v4427
  %v5180 = vunpack.c.l.b16 %v4428
  %v5181 = vunpack.c.h.b16 %v4428
  %v5182 = vunpack.c.l.b16 %v4429
  %v5183 = vunpack.c.h.b16 %v4429
  %v5184 = vunpack.c.l.b16 %v4430
  %v5185 = vunpack.c.h.b16 %v4430
  %v5186 = vunpack.c.l.b16 %v4431
  %v5187 = vunpack.c.h.b16 %v4431
  %v5188 = vunpack.c.l.b16 %v4432
  %v5189 = vunpack.c.h.b16 %v4432
  %v5190 = vunpack.c.l.b16 %v4433
  %v5191 = vunpack.c.h.b16 %v4433
  %v5192 = vunpack.c.l.b16 %v4434
  %v5193 = vunpack.c.h.b16 %v4434
  %v5194 = vunpack.c.l.b16 %v4435
  %v5195 = vunpack.c.h.b16 %v4435
  %v5196 = vunpack.c.l.b16 %v4436
  %v5197 = vunpack.c.h.b16 %v4436
  %v5198 = vunpack.c.l.b16 %v4437
  %v5199 = vunpack.c.h.b16 %v4437
  %v5200 = vunpack.c.l.b16 %v4438
  %v5201 = vunpack.c.h.b16 %v4438
  %v5202 = vunpack.c.l.b16 %v4439
  %v5203 = vunpack.c.h.b16 %v4439
  %v5204 = vunpack.c.l.b16 %v4440
  %v5205 = vunpack.c.h.b16 %v4440
  %v5206 = vunpack.c.l.b16 %v4441
  %v5207 = vunpack.c.h.b16 %v4441
  %v5208 = vunpack.c.l.b16 %v4442
  %v5209 = vunpack.c.h.b16 %v4442
  %v5210 = vunpack.c.l.b16 %v4443
  %v5211 = vunpack.c.h.b16 %v4443
  %v5212 = vunpack.c.l.b16 %v4444
  %v5213 = vunpack.c.h.b16 %v4444
  %v5214 = vunpack.c.l.b16 %v4445
  %v5215 = vunpack.c.h.b16 %v4445
  %v5216 = vunpack.c.l.b16 %v4446
  %v5217 = vunpack.c.h.b16 %v4446
  %v5218 = vunpack.c.l.b16 %v4447
  %v5219 = vunpack.c.h.b16 %v4447
  %v5220 = vunpack.c.l.b16 %v4448
  %v5221 = vunpack.c.h.b16 %v4448
  %v5222 = vunpack.c.l.b16 %v4449
  %v5223 = vunpack.c.h.b16 %v4449
  %v5224 = vunpack.c.l.b16 %v4450
  %v5225 = vunpack.c.h.b16 %v4450
  %v5226 = vunpack.c.l.b16 %v4451
  %v5227 = vunpack.c.h.b16 %v4451
  %v5228 = vunpack.c.l.b16 %v4452
  %v5229 = vunpack.c.h.b16 %v4452
  %v5230 = vunpack.c.l.b16 %v4453
  %v5231 = vunpack.c.h.b16 %v4453
  %v5232 = vunpack.c.l.b16 %v4454
  %v5233 = vunpack.c.h.b16 %v4454
  %v5234 = vunpack.c.l.b16 %v4455
  %v5235 = vunpack.c.h.b16 %v4455
  %v5236 = vunpack.c.l.b16 %v4456
  %v5237 = vunpack.c.h.b16 %v4456
  %v5238 = vunpack.c.l.b16 %v4457
  %v5239 = vunpack.c.h.b16 %v4457
  %v5240 = vunpack.c.l.b16 %v4458
  %v5241 = vunpack.c.h.b16 %v4458
  %v5242 = vunpack.c.l.b16 %v4459
  %v5243 = vunpack.c.h.b16 %v4459
  %v5244 = vunpack.c.l.b16 %v4460
  %v5245 = vunpack.c.h.b16 %v4460
  %v5246 = vunpack.c.l.b16 %v4461
  %v5247 = vunpack.c.h.b16 %v4461
  %v5248 = vunpack.c.l.b16 %v4462
  %v5249 = vunpack.c.h.b16 %v4462
  %v5250 = vunpack.c.l.b16 %v4463
  %v5251 = vunpack.c.h.b16 %v4463
  %v5252 = vunpack.c.l.b16 %v4464
  %v5253 = vunpack.c.h.b16 %v4464
  %v5254 = vunpack.c.l.b16 %v4465
  %v5255 = vunpack.c.h.b16 %v4465
  %v5256 = vpack.c.b16 %v4748, %v4744
  %v5257 = vpack.c.b16 %v4749, %v4745
  %v5258 = vpack.c.b16 %v4750, %v4746
  %v5259 = vpack.c.b16 %v4751, %v4747
  %v5260 = vpack.c.b16 %v4756, %v4752
  %v5261 = vpack.c.b16 %v4757, %v4753
  %v5262 = vpack.c.b16 %v4758, %v4754
  %v5263 = vpack.c.b16 %v4759, %v4755
  %v5264 = vpack.c.b16 %v4764, %v4760
  %v5265 = vpack.c.b16 %v4765, %v4761
  %v5266 = vpack.c.b16 %v4766, %v4762
  %v5267 = vpack.c.b16 %v4767, %v4763
  %v5268 = vpack.c.b16 %v4772, %v4768
  %v5269 = vpack.c.b16 %v4773, %v4769
  %v5270 = vpack.c.b16 %v4774, %v4770
  %v5271 = vpack.c.b16 %v4775, %v4771
  %v5272 = vpack.c.b16 %v4780, %v4776
  %v5273 = vpack.c.b16 %v4781, %v4777
  %v5274 = vpack.c.b16 %v4782, %v4778
  %v5275 = vpack.c.b16 %v4783, %v4779
  %v5276 = vpack.c.b16 %v4788, %v4784
  %v5277 = vpack.c.b16 %v4789, %v4785
  %v5278 = vpack.c.b16 %v4790, %v4786
  %v5279 = vpack.c.b16 %v4791, %v4787
  %v5280 = vpack.c.b16 %v4796, %v4792
  %v5281 = vpack.c.b16 %v4797, %v4793
  %v5282 = vpack.c.b16 %v4798, %v4794
  %v5283 = vpack.c.b16 %v4799, %v4795
  %v5284 = vpack.c.b16 %v4804, %v4800
  %v5285 = vpack.c.b16 %v4805, %v4801
  %v5286 = vpack.c.b16 %v4806, %v4802
  %v5287 = vpack.c.b16 %v4807, %v4803
  %v5288 = vpack.c.b16 %v4812, %v4808
  %v5289 = vpack.c.b16 %v4813, %v4809
  %v5290 = vpack.c.b16 %v4814, %v4810
  %v5291 = vpack.c.b16 %v4815, %v4811
  %v5292 = vpack.c.b16 %v4820, %v4816
  %v5293 = vpack.c.b16 %v4821, %v4817
  %v5294 = vpack.c.b16 %v4822, %v4818
  %v5295 = vpack.c.b16 %v4823, %v4819
  %v5296 = vpack.c.b16 %v4828, %v4824
  %v5297 = vpack.c.b16 %v4829, %v4825
  %v5298 = vpack.c.b16 %v4830, %v4826
  %v5299 = vpack.c.b16 %v4831, %v4827
  %v5300 = vpack.c.b16 %v4836, %v4832
  %v5301 = vpack.c.b16 %v4837, %v4833
  %v5302 = vpack.c.b16 %v4838, %v4834
  %v5303 = vpack.c.b16 %v4839, %v4835
  %v5304 = vpack.c.b16 %v4844, %v4840
  %v5305 = vpack.c.b16 %v4845, %v4841
  %v5306 = vpack.c.b16 %v4846, %v4842
  %v5307 = vpack.c.b16 %v4847, %v4843
  %v5308 = vpack.c.b16 %v4852, %v4848
  %v5309 = vpack.c.b16 %v4853, %v4849
  %v5310 = vpack.c.b16 %v4854, %v4850
  %v5311 = vpack.c.b16 %v4855, %v4851
  %v5312 = vpack.c.b16 %v4860, %v4856
  %v5313 = vpack.c.b16 %v4861, %v4857
  %v5314 = vpack.c.b16 %v4862, %v4858
  %v5315 = vpack.c.b16 %v4863, %v4859
  %v5316 = vpack.c.b16 %v4868, %v4864
  %v5317 = vpack.c.b16 %v4869, %v4865
  %v5318 = vpack.c.b16 %v4870, %v4866
  %v5319 = vpack.c.b16 %v4871, %v4867
  %v5320 = vpack.c.b16 %v4876, %v4872
  %v5321 = vpack.c.b16 %v4877, %v4873
  %v5322 = vpack.c.b16 %v4878, %v4874
  %v5323 = vpack.c.b16 %v4879, %v4875
  %v5324 = vpack.c.b16 %v4884, %v4880
  %v5325 = vpack.c.b16 %v4885, %v4881
  %v5326 = vpack.c.b16 %v4886, %v4882
  %v5327 = vpack.c.b16 %v4887, %v4883
  %v5328 = vpack.c.b16 %v4892, %v4888
  %v5329 = vpack.c.b16 %v4893, %v4889
  %v5330 = vpack.c.b16 %v4894, %v4890
  %v5331 = vpack.c.b16 %v4895, %v4891
  %v5332 = vpack.c.b16 %v4900, %v4896
  %v5333 = vpack.c.b16 %v4901, %v4897
  %v5334 = vpack.c.b16 %v4902, %v4898
  %v5335 = vpack.c.b16 %v4903, %v4899
  %v5336 = vpack.c.b16 %v4908, %v4904
  %v5337 = vpack.c.b16 %v4909, %v4905
  %v5338 = vpack.c.b16 %v4910, %v4906
  %v5339 = vpack.c.b16 %v4911, %v4907
  %v5340 = vpack.c.b16 %v4916, %v4912
  %v5341 = vpack.c.b16 %v4917, %v4913
  %v5342 = vpack.c.b16 %v4918, %v4914
  %v5343 = vpack.c.b16 %v4919, %v4915
  %v5344 = vpack.c.b16 %v4924, %v4920
  %v5345 = vpack.c.b16 %v4925, %v4921
  %v5346 = vpack.c.b16 %v4926, %v4922
  %v5347 = vpack.c.b16 %v4927, %v4923
  %v5348 = vpack.c.b16 %v4932, %v4928
  %v5349 = vpack.c.b16 %v4933, %v4929
  %v5350 = vpack.c.b16 %v4934, %v4930
  %v5351 = vpack.c.b16 %v4935, %v4931
  %v5352 = vpack.c.b16 %v4940, %v4936
  %v5353 = vpack.c.b16 %v4941, %v4937
  %v5354 = vpack.c.b16 %v4942, %v4938
  %v5355 = vpack.c.b16 %v4943, %v4939
  %v5356 = vpack.c.b16 %v4948, %v4944
  %v5357 = vpack.c.b16 %v4949, %v4945
  %v5358 = vpack.c.b16 %v4950, %v4946
  %v5359 = vpack.c.b16 %v4951, %v4947
  %v5360 = vpack.c.b16 %v4956, %v4952
  %v5361 = vpack.c.b16 %v4957, %v4953
  %v5362 = vpack.c.b16 %v4958, %v4954
  %v5363 = vpack.c.b16 %v4959, %v4955
  %v5364 = vpack.c.b16 %v4964, %v4960
  %v5365 = vpack.c.b16 %v4965, %v4961
  %v5366 = vpack.c.b16 %v4966, %v4962
  %v5367 = vpack.c.b16 %v4967, %v4963
  %v5368 = vpack.c.b16 %v4972, %v4968
  %v5369 = vpack.c.b16 %v4973, %v4969
  %v5370 = vpack.c.b16 %v4974, %v4970
  %v5371 = vpack.c.b16 %v4975, %v4971
  %v5372 = vpack.c.b16 %v4980, %v4976
  %v5373 = vpack.c.b16 %v4981, %v4977
  %v5374 = vpack.c.b16 %v4982, %v4978
  %v5375 = vpack.c.b16 %v4983, %v4979
  %v5376 = vpack.c.b16 %v4988, %v4984
  %v5377 = vpack.c.b16 %v4989, %v4985
  %v5378 = vpack.c.b16 %v4990, %v4986
  %v5379 = vpack.c.b16 %v4991, %v4987
  %v5380 = vpack.c.b16 %v4996, %v4992
  %v5381 = vpack.c.b16 %v4997, %v4993
  %v5382 = vpack.c.b16 %v4998, %v4994
  %v5383 = vpack.c.b16 %v4999, %v4995
  %v5384 = vpack.c.b16 %v5004, %v5000
  %v5385 = vpack.c.b16 %v5005, %v5001
  %v5386 = vpack.c.b16 %v5006, %v5002
  %v5387 = vpack.c.b16 %v5007, %v5003
  %v5388 = vpack.c.b16 %v5012, %v5008
  %v5389 = vpack.c.b16 %v5013, %v5009
  %v5390 = vpack.c.b16 %v5014, %v5010
  %v5391 = vpack.c.b16 %v5015, %v5011
  %v5392 = vpack.c.b16 %v5020, %v5016
  %v5393 = vpack.c.b16 %v5021, %v5017
  %v5394 = vpack.c.b16 %v5022, %v5018
  %v5395 = vpack.c.b16 %v5023, %v5019
  %v5396 = vpack.c.b16 %v5028, %v5024
  %v5397 = vpack.c.b16 %v5029, %v5025
  %v5398 = vpack.c.b16 %v5030, %v5026
  %v5399 = vpack.c.b16 %v5031, %v5027
  %v5400 = vpack.c.b16 %v5036, %v5032
  %v5401 = vpack.c.b16 %v5037, %v5033
  %v5402 = vpack.c.b16 %v5038, %v5034
  %v5403 = vpack.c.b16 %v5039, %v5035
  %v5404 = vpack.c.b16 %v5044, %v5040
  %v5405 = vpack.c.b16 %v5045, %v5041
  %v5406 = vpack.c.b16 %v5046, %v5042
  %v5407 = vpack.c.b16 %v5047, %v5043
  %v5408 = vpack.c.b16 %v5052, %v5048
  %v5409 = vpack.c.b16 %v5053, %v5049
  %v5410 = vpack.c.b16 %v5054, %v5050
  %v5411 = vpack.c.b16 %v5055, %v5051
  %v5412 = vpack.c.b16 %v5060, %v5056
  %v5413 = vpack.c.b16 %v5061, %v5057
  %v5414 = vpack.c.b16 %v5062, %v5058
  %v5415 = vpack.c.b16 %v5063, %v5059
  %v5416 = vpack.c.b16 %v5068, %v5064
  %v5417 = vpack.c.b16 %v5069, %v5065
  %v5418 = vpack.c.b16 %v5070, %v5066
  %v5419 = vpack.c.b16 %v5071, %v5067
  %v5420 = vpack.c.b16 %v5076, %v5072
  %v5421 = vpack.c.b16 %v5077, %v5073
  %v5422 = vpack.c.b16 %v5078, %v5074
  %v5423 = vpack.c.b16 %v5079, %v5075
  %v5424 = vpack.c.b16 %v5084, %v5080
  %v5425 = vpack.c.b16 %v5085, %v5081
  %v5426 = vpack.c.b16 %v5086, %v5082
  %v5427 = vpack.c.b16 %v5087, %v5083
  %v5428 = vpack.c.b16 %v5092, %v5088
  %v5429 = vpack.c.b16 %v5093, %v5089
  %v5430 = vpack.c.b16 %v5094, %v5090
  %v5431 = vpack.c.b16 %v5095, %v5091
  %v5432 = vpack.c.b16 %v5100, %v5096
  %v5433 = vpack.c.b16 %v5101, %v5097
  %v5434 = vpack.c.b16 %v5102, %v5098
  %v5435 = vpack.c.b16 %v5103, %v5099
  %v5436 = vpack.c.b16 %v5108, %v5104
  %v5437 = vpack.c.b16 %v5109, %v5105
  %v5438 = vpack.c.b16 %v5110, %v5106
  %v5439 = vpack.c.b16 %v5111, %v5107
  %v5440 = vpack.c.b16 %v5116, %v5112
  %v5441 = vpack.c.b16 %v5117, %v5113
  %v5442 = vpack.c.b16 %v5118, %v5114
  %v5443 = vpack.c.b16 %v5119, %v5115
  %v5444 = vpack.c.b16 %v5124, %v5120
  %v5445 = vpack.c.b16 %v5125, %v5121
  %v5446 = vpack.c.b16 %v5126, %v5122
  %v5447 = vpack.c.b16 %v5127, %v5123
  %v5448 = vpack.c.b16 %v5132, %v5128
  %v5449 = vpack.c.b16 %v5133, %v5129
  %v5450 = vpack.c.b16 %v5134, %v5130
  %v5451 = vpack.c.b16 %v5135, %v5131
  %v5452 = vpack.c.b16 %v5140, %v5136
  %v5453 = vpack.c.b16 %v5141, %v5137
  %v5454 = vpack.c.b16 %v5142, %v5138
  %v5455 = vpack.c.b16 %v5143, %v5139
  %v5456 = vpack.c.b16 %v5148, %v5144
  %v5457 = vpack.c.b16 %v5149, %v5145
  %v5458 = vpack.c.b16 %v5150, %v5146
  %v5459 = vpack.c.b16 %v5151, %v5147
  %v5460 = vpack.c.b16 %v5156, %v5152
  %v5461 = vpack.c.b16 %v5157, %v5153
  %v5462 = vpack.c.b16 %v5158, %v5154
  %v5463 = vpack.c.b16 %v5159, %v5155
  %v5464 = vpack.c.b16 %v5164, %v5160
  %v5465 = vpack.c.b16 %v5165, %v5161
  %v5466 = vpack.c.b16 %v5166, %v5162
  %v5467 = vpack.c.b16 %v5167, %v5163
  %v5468 = vpack.c.b16 %v5172, %v5168
  %v5469 = vpack.c.b16 %v5173, %v5169
  %v5470 = vpack.c.b16 %v5174, %v5170
  %v5471 = vpack.c.b16 %v5175, %v5171
  %v5472 = vpack.c.b16 %v5180, %v5176
  %v5473 = vpack.c.b16 %v5181, %v5177
  %v5474 = vpack.c.b16 %v5182, %v5178
  %v5475 = vpack.c.b16 %v5183, %v5179
  %v5476 = vpack.c.b16 %v5188, %v5184
  %v5477 = vpack.c.b16 %v5189, %v5185
  %v5478 = vpack.c.b16 %v5190, %v5186
  %v5479 = vpack.c.b16 %v5191, %v5187
  %v5480 = vpack.c.b16 %v5196, %v5192
  %v5481 = vpack.c.b16 %v5197, %v5193
  %v5482 = vpack.c.b16 %v5198, %v5194
  %v5483 = vpack.c.b16 %v5199, %v5195
  %v5484 = vpack.c.b16 %v5204, %v5200
  %v5485 = vpack.c.b16 %v5205, %v5201
  %v5486 = vpack.c.b16 %v5206, %v5202
  %v5487 = vpack.c.b16 %v5207, %v5203
  %v5488 = vpack.c.b16 %v5212, %v5208
  %v5489 = vpack.c.b16 %v5213, %v5209
  %v5490 = vpack.c.b16 %v5214, %v5210
  %v5491 = vpack.c.b16 %v5215, %v5211
  %v5492 = vpack.c.b16 %v5220, %v5216
  %v5493 = vpack.c.b16 %v5221, %v5217
  %v5494 = vpack.c.b16 %v5222, %v5218
  %v5495 = vpack.c.b16 %v5223, %v5219
  %v5496 = vpack.c.b16 %v5228, %v5224
  %v5497 = vpack.c.b16 %v5229, %v5225
  %v5498 = vpack.c.b16 %v5230, %v5226
  %v5499 = vpack.c.b16 %v5231, %v5227
  %v5500 = vpack.c.b16 %v5236, %v5232
  %v5501 = vpack.c.b16 %v5237, %v5233
  %v5502 = vpack.c.b16 %v5238, %v5234
  %v5503 = vpack.c.b16 %v5239, %v5235
  %v5504 = vpack.c.b16 %v5244, %v5240
  %v5505 = vpack.c.b16 %v5245, %v5241
  %v5506 = vpack.c.b16 %v5246, %v5242
  %v5507 = vpack.c.b16 %v5247, %v5243
  %v5508 = vpack.c.b16 %v5252, %v5248
  %v5509 = vpack.c.b16 %v5253, %v5249
  %v5510 = vpack.c.b16 %v5254, %v5250
  %v5511 = vpack.c.b16 %v5255, %v5251
  %5768 = vmatprep.subr.bf16.mxu0 %v5285
  %5769 = vmatpush1.bf16.msra.mxu0 %v5284
  %5770 = vmatprep.subr.bf16.mxu0 %v5281
  %5771 = vmatpush1.bf16.msra.mxu0 %v5280
  %5772 = vmatprep.subr.bf16.mxu0 %v5277
  %5773 = vmatpush1.bf16.msra.mxu0 %v5276
  %5774 = vmatprep.subr.bf16.mxu0 %v5273
  %5775 = vmatpush1.bf16.msra.mxu0 %v5272
  %5776 = vmatprep.subr.bf16.mxu0 %v5269
  %5777 = vmatpush1.bf16.msra.mxu0 %v5268
  %5778 = vmatprep.subr.bf16.mxu0 %v5265
  %5779 = vmatpush1.bf16.msra.mxu0 %v5264
  %5780 = vmatprep.subr.bf16.mxu0 %v5261
  %5781 = vmatpush1.bf16.msra.mxu0 %v5260
  %5782 = vmatprep.subr.bf16.mxu0 %v5257
  %5783 = vmatpush1.bf16.msra.mxu0 %v5256
  %5784 = vmatprep.subr.bf16.mxu0 %v5317
  %5785 = vmatpush2.bf16.msra.mxu0 %v5316
  %5786 = vmatprep.subr.bf16.mxu0 %v5313
  %5787 = vmatpush2.bf16.msra.mxu0 %v5312
  %5788 = vmatprep.subr.bf16.mxu0 %v5309
  %5789 = vmatpush2.bf16.msra.mxu0 %v5308
  %5790 = vmatprep.subr.bf16.mxu0 %v5305
  %5791 = vmatpush2.bf16.msra.mxu0 %v5304
  %5792 = vmatprep.subr.bf16.mxu0 %v5301
  %5793 = vmatpush2.bf16.msra.mxu0 %v5300
  %5794 = vmatprep.subr.bf16.mxu0 %v5297
  %5795 = vmatpush2.bf16.msra.mxu0 %v5296
  %5796 = vmatprep.subr.bf16.mxu0 %v5293
  %5797 = vmatpush2.bf16.msra.mxu0 %v5292
  %5798 = vmatprep.subr.bf16.mxu0 %v5289
  %5799 = vmatpush2.bf16.msra.mxu0 %v5288
  %5800 = vmatprep.mubr.bf16.mxu0 %v4203
  %5801 = vmatmul.mubr.bf16.gmra.mxu0 %v4202
  %v5802 = vpop.f32.mrf.mxu0
  %v5803 = vadd.f32 %v4471, %v5802
  %v5804 = vpop.f32.mrf.mxu0
  %v5805 = vadd.f32 %v4475, %v5804
  %v5806 = vpop.f32.mrf.mxu0
  %v5807 = vpop.f32.mrf.mxu0
  %5808 = vdwg.mxu0
  %5809 = vmatprep.subr.bf16.mxu0 %v5349
  %5810 = vmatpush1.bf16.msra.mxu0 %v5348
  %5811 = vmatprep.subr.bf16.mxu0 %v5345
  %5812 = vmatpush1.bf16.msra.mxu0 %v5344
  %5813 = vmatprep.subr.bf16.mxu0 %v5341
  %5814 = vmatpush1.bf16.msra.mxu0 %v5340
  %5815 = vmatprep.subr.bf16.mxu0 %v5337
  %5816 = vmatpush1.bf16.msra.mxu0 %v5336
  %5817 = vmatprep.subr.bf16.mxu0 %v5333
  %5818 = vmatpush1.bf16.msra.mxu0 %v5332
  %5819 = vmatprep.subr.bf16.mxu0 %v5329
  %5820 = vmatpush1.bf16.msra.mxu0 %v5328
  %5821 = vmatprep.subr.bf16.mxu0 %v5325
  %5822 = vmatpush1.bf16.msra.mxu0 %v5324
  %5823 = vmatprep.subr.bf16.mxu0 %v5321
  %5824 = vmatpush1.bf16.msra.mxu0 %v5320
  %5825 = vmatprep.subr.bf16.mxu0 %v5381
  %5826 = vmatpush2.bf16.msra.mxu0 %v5380
  %5827 = vmatprep.subr.bf16.mxu0 %v5377
  %5828 = vmatpush2.bf16.msra.mxu0 %v5376
  %5829 = vmatprep.subr.bf16.mxu0 %v5373
  %5830 = vmatpush2.bf16.msra.mxu0 %v5372
  %5831 = vmatprep.subr.bf16.mxu0 %v5369
  %5832 = vmatpush2.bf16.msra.mxu0 %v5368
  %5833 = vmatprep.subr.bf16.mxu0 %v5365
  %5834 = vmatpush2.bf16.msra.mxu0 %v5364
  %5835 = vmatprep.subr.bf16.mxu0 %v5361
  %5836 = vmatpush2.bf16.msra.mxu0 %v5360
  %5837 = vmatprep.subr.bf16.mxu0 %v5357
  %5838 = vmatpush2.bf16.msra.mxu0 %v5356
  %5839 = vmatprep.subr.bf16.mxu0 %v5353
  %5840 = vmatpush2.bf16.msra.mxu0 %v5352
  %5841 = vmatprep.mubr.bf16.mxu0 %v4205
  %5842 = vmatmul.mubr.bf16.gmra.mxu0 %v4204
  %v5843 = vpop.f32.mrf.mxu0
  %v5844 = vadd.f32 %v5803, %v5843
  %v5845 = vpop.f32.mrf.mxu0
  %v5846 = vadd.f32 %v5805, %v5845
  %v5847 = vpop.f32.mrf.mxu0
  %v5848 = vpop.f32.mrf.mxu0
  %5849 = vdwg.mxu0
  %5850 = vmatprep.subr.bf16.mxu0 %v5413
  %5851 = vmatpush1.bf16.msra.mxu0 %v5412
  %5852 = vmatprep.subr.bf16.mxu0 %v5409
  %5853 = vmatpush1.bf16.msra.mxu0 %v5408
  %5854 = vmatprep.subr.bf16.mxu0 %v5405
  %5855 = vmatpush1.bf16.msra.mxu0 %v5404
  %5856 = vmatprep.subr.bf16.mxu0 %v5401
  %5857 = vmatpush1.bf16.msra.mxu0 %v5400
  %5858 = vmatprep.subr.bf16.mxu0 %v5397
  %5859 = vmatpush1.bf16.msra.mxu0 %v5396
  %5860 = vmatprep.subr.bf16.mxu0 %v5393
  %5861 = vmatpush1.bf16.msra.mxu0 %v5392
  %5862 = vmatprep.subr.bf16.mxu0 %v5389
  %5863 = vmatpush1.bf16.msra.mxu0 %v5388
  %5864 = vmatprep.subr.bf16.mxu0 %v5385
  %5865 = vmatpush1.bf16.msra.mxu0 %v5384
  %5866 = vmatprep.subr.bf16.mxu0 %v5445
  %5867 = vmatpush2.bf16.msra.mxu0 %v5444
  %5868 = vmatprep.subr.bf16.mxu0 %v5441
  %5869 = vmatpush2.bf16.msra.mxu0 %v5440
  %5870 = vmatprep.subr.bf16.mxu0 %v5437
  %5871 = vmatpush2.bf16.msra.mxu0 %v5436
  %5872 = vmatprep.subr.bf16.mxu0 %v5433
  %5873 = vmatpush2.bf16.msra.mxu0 %v5432
  %5874 = vmatprep.subr.bf16.mxu0 %v5429
  %5875 = vmatpush2.bf16.msra.mxu0 %v5428
  %5876 = vmatprep.subr.bf16.mxu0 %v5425
  %5877 = vmatpush2.bf16.msra.mxu0 %v5424
  %5878 = vmatprep.subr.bf16.mxu0 %v5421
  %5879 = vmatpush2.bf16.msra.mxu0 %v5420
  %5880 = vmatprep.subr.bf16.mxu0 %v5417
  %5881 = vmatpush2.bf16.msra.mxu0 %v5416
  %5882 = vmatprep.mubr.bf16.mxu0 %v4207
  %5883 = vmatmul.mubr.bf16.gmra.mxu0 %v4206
  %v5884 = vpop.f32.mrf.mxu0
  %v5885 = vadd.f32 %v5844, %v5884
  %v5886 = vpop.f32.mrf.mxu0
  %v5887 = vadd.f32 %v5846, %v5886
  %v5888 = vpop.f32.mrf.mxu0
  %v5889 = vpop.f32.mrf.mxu0
  %5890 = vdwg.mxu0
  %5891 = vmatprep.subr.bf16.mxu0 %v5477
  %5892 = vmatpush1.bf16.msra.mxu0 %v5476
  %5893 = vmatprep.subr.bf16.mxu0 %v5473
  %5894 = vmatpush1.bf16.msra.mxu0 %v5472
  %5895 = vmatprep.subr.bf16.mxu0 %v5469
  %5896 = vmatpush1.bf16.msra.mxu0 %v5468
  %5897 = vmatprep.subr.bf16.mxu0 %v5465
  %5898 = vmatpush1.bf16.msra.mxu0 %v5464
  %5899 = vmatprep.subr.bf16.mxu0 %v5461
  %5900 = vmatpush1.bf16.msra.mxu0 %v5460
  %5901 = vmatprep.subr.bf16.mxu0 %v5457
  %5902 = vmatpush1.bf16.msra.mxu0 %v5456
  %5903 = vmatprep.subr.bf16.mxu0 %v5453
  %5904 = vmatpush1.bf16.msra.mxu0 %v5452
  %5905 = vmatprep.subr.bf16.mxu0 %v5449
  %5906 = vmatpush1.bf16.msra.mxu0 %v5448
  %5907 = vmatprep.subr.bf16.mxu0 %v5509
  %5908 = vmatpush2.bf16.msra.mxu0 %v5508
  %5909 = vmatprep.subr.bf16.mxu0 %v5505
  %5910 = vmatpush2.bf16.msra.mxu0 %v5504
  %5911 = vmatprep.subr.bf16.mxu0 %v5501
  %5912 = vmatpush2.bf16.msra.mxu0 %v5500
  %5913 = vmatprep.subr.bf16.mxu0 %v5497
  %5914 = vmatpush2.bf16.msra.mxu0 %v5496
  %5915 = vmatprep.subr.bf16.mxu0 %v5493
  %5916 = vmatpush2.bf16.msra.mxu0 %v5492
  %5917 = vmatprep.subr.bf16.mxu0 %v5489
  %5918 = vmatpush2.bf16.msra.mxu0 %v5488
  %5919 = vmatprep.subr.bf16.mxu0 %v5485
  %5920 = vmatpush2.bf16.msra.mxu0 %v5484
  %5921 = vmatprep.subr.bf16.mxu0 %v5481
  %5922 = vmatpush2.bf16.msra.mxu0 %v5480
  %5923 = vmatprep.mubr.bf16.mxu0 %v4209
  %5924 = vmatmul.mubr.bf16.gmra.mxu0 %v4208
  %v5925 = vpop.f32.mrf.mxu0
  %v5926 = vadd.f32 %v5885, %v5925
  %v5927 = vpop.f32.mrf.mxu0
  %v5928 = vadd.f32 %v5887, %v5927
  %v5929 = vpop.f32.mrf.mxu0
  %v5930 = vpop.f32.mrf.mxu0
  %5931 = vdwg.mxu0
  %5932 = vmatprep.subr.bf16.mxu0 %v5287
  %5933 = vmatpush1.bf16.msra.mxu0 %v5286
  %5934 = vmatprep.subr.bf16.mxu0 %v5283
  %5935 = vmatpush1.bf16.msra.mxu0 %v5282
  %5936 = vmatprep.subr.bf16.mxu0 %v5279
  %5937 = vmatpush1.bf16.msra.mxu0 %v5278
  %5938 = vmatprep.subr.bf16.mxu0 %v5275
  %5939 = vmatpush1.bf16.msra.mxu0 %v5274
  %5940 = vmatprep.subr.bf16.mxu0 %v5271
  %5941 = vmatpush1.bf16.msra.mxu0 %v5270
  %5942 = vmatprep.subr.bf16.mxu0 %v5267
  %5943 = vmatpush1.bf16.msra.mxu0 %v5266
  %5944 = vmatprep.subr.bf16.mxu0 %v5263
  %5945 = vmatpush1.bf16.msra.mxu0 %v5262
  %5946 = vmatprep.subr.bf16.mxu0 %v5259
  %5947 = vmatpush1.bf16.msra.mxu0 %v5258
  %5948 = vmatprep.subr.bf16.mxu0 %v5319
  %5949 = vmatpush2.bf16.msra.mxu0 %v5318
  %5950 = vmatprep.subr.bf16.mxu0 %v5315
  %5951 = vmatpush2.bf16.msra.mxu0 %v5314
  %5952 = vmatprep.subr.bf16.mxu0 %v5311
  %5953 = vmatpush2.bf16.msra.mxu0 %v5310
  %5954 = vmatprep.subr.bf16.mxu0 %v5307
  %5955 = vmatpush2.bf16.msra.mxu0 %v5306
  %5956 = vmatprep.subr.bf16.mxu0 %v5303
  %5957 = vmatpush2.bf16.msra.mxu0 %v5302
  %5958 = vmatprep.subr.bf16.mxu0 %v5299
  %5959 = vmatpush2.bf16.msra.mxu0 %v5298
  %5960 = vmatprep.subr.bf16.mxu0 %v5295
  %5961 = vmatpush2.bf16.msra.mxu0 %v5294
  %5962 = vmatprep.subr.bf16.mxu0 %v5291
  %5963 = vmatpush2.bf16.msra.mxu0 %v5290
  %5964 = vmatprep.mubr.bf16.mxu0 %v4203
  %5965 = vmatmul.mubr.bf16.gmra.mxu0 %v4202
  %v5966 = vpop.f32.mrf.mxu0
  %v5967 = vadd.f32 %v4479, %v5966
  %v5968 = vpop.f32.mrf.mxu0
  %v5969 = vadd.f32 %v4483, %v5968
  %v5970 = vpop.f32.mrf.mxu0
  %v5971 = vpop.f32.mrf.mxu0
  %5972 = vdwg.mxu0
  %5973 = vmatprep.subr.bf16.mxu0 %v5351
  %5974 = vmatpush1.bf16.msra.mxu0 %v5350
  %5975 = vmatprep.subr.bf16.mxu0 %v5347
  %5976 = vmatpush1.bf16.msra.mxu0 %v5346
  %5977 = vmatprep.subr.bf16.mxu0 %v5343
  %5978 = vmatpush1.bf16.msra.mxu0 %v5342
  %5979 = vmatprep.subr.bf16.mxu0 %v5339
  %5980 = vmatpush1.bf16.msra.mxu0 %v5338
  %5981 = vmatprep.subr.bf16.mxu0 %v5335
  %5982 = vmatpush1.bf16.msra.mxu0 %v5334
  %5983 = vmatprep.subr.bf16.mxu0 %v5331
  %5984 = vmatpush1.bf16.msra.mxu0 %v5330
  %5985 = vmatprep.subr.bf16.mxu0 %v5327
  %5986 = vmatpush1.bf16.msra.mxu0 %v5326
  %5987 = vmatprep.subr.bf16.mxu0 %v5323
  %5988 = vmatpush1.bf16.msra.mxu0 %v5322
  %5989 = vmatprep.subr.bf16.mxu0 %v5383
  %5990 = vmatpush2.bf16.msra.mxu0 %v5382
  %5991 = vmatprep.subr.bf16.mxu0 %v5379
  %5992 = vmatpush2.bf16.msra.mxu0 %v5378
  %5993 = vmatprep.subr.bf16.mxu0 %v5375
  %5994 = vmatpush2.bf16.msra.mxu0 %v5374
  %5995 = vmatprep.subr.bf16.mxu0 %v5371
  %5996 = vmatpush2.bf16.msra.mxu0 %v5370
  %5997 = vmatprep.subr.bf16.mxu0 %v5367
  %5998 = vmatpush2.bf16.msra.mxu0 %v5366
  %5999 = vmatprep.subr.bf16.mxu0 %v5363
  %6000 = vmatpush2.bf16.msra.mxu0 %v5362
  %6001 = vmatprep.subr.bf16.mxu0 %v5359
  %6002 = vmatpush2.bf16.msra.mxu0 %v5358
  %6003 = vmatprep.subr.bf16.mxu0 %v5355
  %6004 = vmatpush2.bf16.msra.mxu0 %v5354
  %6005 = vmatprep.mubr.bf16.mxu0 %v4205
  %6006 = vmatmul.mubr.bf16.gmra.mxu0 %v4204
  %v6007 = vpop.f32.mrf.mxu0
  %v6008 = vadd.f32 %v5967, %v6007
  %v6009 = vpop.f32.mrf.mxu0
  %v6010 = vadd.f32 %v5969, %v6009
  %v6011 = vpop.f32.mrf.mxu0
  %v6012 = vpop.f32.mrf.mxu0
  %6013 = vdwg.mxu0
  %6014 = vmatprep.subr.bf16.mxu0 %v5415
  %6015 = vmatpush1.bf16.msra.mxu0 %v5414
  %6016 = vmatprep.subr.bf16.mxu0 %v5411
  %6017 = vmatpush1.bf16.msra.mxu0 %v5410
  %6018 = vmatprep.subr.bf16.mxu0 %v5407
  %6019 = vmatpush1.bf16.msra.mxu0 %v5406
  %6020 = vmatprep.subr.bf16.mxu0 %v5403
  %6021 = vmatpush1.bf16.msra.mxu0 %v5402
  %6022 = vmatprep.subr.bf16.mxu0 %v5399
  %6023 = vmatpush1.bf16.msra.mxu0 %v5398
  %6024 = vmatprep.subr.bf16.mxu0 %v5395
  %6025 = vmatpush1.bf16.msra.mxu0 %v5394
  %6026 = vmatprep.subr.bf16.mxu0 %v5391
  %6027 = vmatpush1.bf16.msra.mxu0 %v5390
  %6028 = vmatprep.subr.bf16.mxu0 %v5387
  %6029 = vmatpush1.bf16.msra.mxu0 %v5386
  %6030 = vmatprep.subr.bf16.mxu0 %v5447
  %6031 = vmatpush2.bf16.msra.mxu0 %v5446
  %6032 = vmatprep.subr.bf16.mxu0 %v5443
  %6033 = vmatpush2.bf16.msra.mxu0 %v5442
  %6034 = vmatprep.subr.bf16.mxu0 %v5439
  %6035 = vmatpush2.bf16.msra.mxu0 %v5438
  %6036 = vmatprep.subr.bf16.mxu0 %v5435
  %6037 = vmatpush2.bf16.msra.mxu0 %v5434
  %6038 = vmatprep.subr.bf16.mxu0 %v5431
  %6039 = vmatpush2.bf16.msra.mxu0 %v5430
  %6040 = vmatprep.subr.bf16.mxu0 %v5427
  %6041 = vmatpush2.bf16.msra.mxu0 %v5426
  %6042 = vmatprep.subr.bf16.mxu0 %v5423
  %6043 = vmatpush2.bf16.msra.mxu0 %v5422
  %6044 = vmatprep.subr.bf16.mxu0 %v5419
  %6045 = vmatpush2.bf16.msra.mxu0 %v5418
  %6046 = vmatprep.mubr.bf16.mxu0 %v4207
  %6047 = vmatmul.mubr.bf16.gmra.mxu0 %v4206
  %v6048 = vpop.f32.mrf.mxu0
  %v6049 = vadd.f32 %v6008, %v6048
  %v6050 = vpop.f32.mrf.mxu0
  %v6051 = vadd.f32 %v6010, %v6050
  %v6052 = vpop.f32.mrf.mxu0
  %v6053 = vpop.f32.mrf.mxu0
  %6054 = vdwg.mxu0
  %6055 = vmatprep.subr.bf16.mxu0 %v5479
  %6056 = vmatpush1.bf16.msra.mxu0 %v5478
  %6057 = vmatprep.subr.bf16.mxu0 %v5475
  %6058 = vmatpush1.bf16.msra.mxu0 %v5474
  %6059 = vmatprep.subr.bf16.mxu0 %v5471
  %6060 = vmatpush1.bf16.msra.mxu0 %v5470
  %6061 = vmatprep.subr.bf16.mxu0 %v5467
  %6062 = vmatpush1.bf16.msra.mxu0 %v5466
  %6063 = vmatprep.subr.bf16.mxu0 %v5463
  %6064 = vmatpush1.bf16.msra.mxu0 %v5462
  %6065 = vmatprep.subr.bf16.mxu0 %v5459
  %6066 = vmatpush1.bf16.msra.mxu0 %v5458
  %6067 = vmatprep.subr.bf16.mxu0 %v5455
  %6068 = vmatpush1.bf16.msra.mxu0 %v5454
  %6069 = vmatprep.subr.bf16.mxu0 %v5451
  %6070 = vmatpush1.bf16.msra.mxu0 %v5450
  %6071 = vmatprep.subr.bf16.mxu0 %v5511
  %6072 = vmatpush2.bf16.msra.mxu0 %v5510
  %6073 = vmatprep.subr.bf16.mxu0 %v5507
  %6074 = vmatpush2.bf16.msra.mxu0 %v5506
  %6075 = vmatprep.subr.bf16.mxu0 %v5503
  %6076 = vmatpush2.bf16.msra.mxu0 %v5502
  %6077 = vmatprep.subr.bf16.mxu0 %v5499
  %6078 = vmatpush2.bf16.msra.mxu0 %v5498
  %6079 = vmatprep.subr.bf16.mxu0 %v5495
  %6080 = vmatpush2.bf16.msra.mxu0 %v5494
  %6081 = vmatprep.subr.bf16.mxu0 %v5491
  %6082 = vmatpush2.bf16.msra.mxu0 %v5490
  %6083 = vmatprep.subr.bf16.mxu0 %v5487
  %6084 = vmatpush2.bf16.msra.mxu0 %v5486
  %6085 = vmatprep.subr.bf16.mxu0 %v5483
  %6086 = vmatpush2.bf16.msra.mxu0 %v5482
  %6087 = vmatprep.mubr.bf16.mxu0 %v4209
  %6088 = vmatmul.mubr.bf16.gmra.mxu0 %v4208
  %v6089 = vpop.f32.mrf.mxu0
  %v6090 = vadd.f32 %v6049, %v6089
  %v6091 = vpop.f32.mrf.mxu0
  %v6092 = vadd.f32 %v6051, %v6091
  %v6093 = vpop.f32.mrf.mxu0
  %v6094 = vpop.f32.mrf.mxu0
  %6095 = vdwg.mxu0
  %v6096 = vld [vmem:[%s13] sm:$0xf]
  %v6097 = vld [vmem:[%s14] sm:$0xf]
  %v6098 = vadd.f32 %v5926, %v5928
  %v6099 = vadd.f32 %v6098, %v6090
  %v6100 = vadd.f32 %v6099, %v6092
  %6101 = vadd.xlane.f32.xlu0 %v6100
  %v6102 = vpop.xlane.xlu0 %6101
  %v6103 = vmul.f32 %v6102, %v103
  %v6104 = vsub.f32 %v5926, %v6103
  %v6105 = vsub.f32 %v5928, %v6103
  %v6106 = vsub.f32 %v6090, %v6103
  %v6107 = vsub.f32 %v6092, %v6103
  %v6108 = vmul.f32 %v6104, %v6104
  %v6109 = vmul.f32 %v6105, %v6105
  %v6110 = vmul.f32 %v6106, %v6106
  %v6111 = vmul.f32 %v6107, %v6107
  %v6112 = vadd.f32 %v6108, %v6109
  %v6113 = vadd.f32 %v6112, %v6110
  %v6114 = vadd.f32 %v6113, %v6111
  %6115 = vadd.xlane.f32.xlu0 %v6114
  %v6116 = vpop.xlane.xlu0 %6115
  %v6117 = vmul.f32 %v6116, %v103
  %v6118 = vadd.f32 %v6117, 1e-05
  %v6119 = vrsqrt.pop %v6118
  %v6120 = vmul.f32 %v6104, %v6119
  %v6121 = vmul.f32 %v6105, %v6119
  %v6122 = vmul.f32 %v6106, %v6119
  %v6123 = vmul.f32 %v6107, %v6119
  %v6125 = vlaneseq
  %v6126 = vshrl.u32 %v6125, 7
  %v6127 = vsub.s32 0, %v6126
  %v6128 = vrot.slane %v6096, %v6127
  %v6129 = vlaneseq
  %v6130 = vshrl.u32 %v6129, 7
  %v6131 = vsub.s32 1, %v6130
  %v6132 = vrot.slane %v6096, %v6131
  %v6133 = vlaneseq
  %v6134 = vshrl.u32 %v6133, 7
  %v6135 = vsub.s32 2, %v6134
  %v6136 = vrot.slane %v6096, %v6135
  %v6137 = vlaneseq
  %v6138 = vshrl.u32 %v6137, 7
  %v6139 = vsub.s32 3, %v6138
  %v6140 = vrot.slane %v6096, %v6139
  %v6145 = vmul.f32 %v6120, %v6128
  %v6146 = vmul.f32 %v6121, %v6132
  %v6147 = vmul.f32 %v6122, %v6136
  %v6148 = vmul.f32 %v6123, %v6140
  %v6150 = vlaneseq
  %v6151 = vshrl.u32 %v6150, 7
  %v6152 = vsub.s32 0, %v6151
  %v6153 = vrot.slane %v6097, %v6152
  %v6154 = vlaneseq
  %v6155 = vshrl.u32 %v6154, 7
  %v6156 = vsub.s32 1, %v6155
  %v6157 = vrot.slane %v6097, %v6156
  %v6158 = vlaneseq
  %v6159 = vshrl.u32 %v6158, 7
  %v6160 = vsub.s32 2, %v6159
  %v6161 = vrot.slane %v6097, %v6160
  %v6162 = vlaneseq
  %v6163 = vshrl.u32 %v6162, 7
  %v6164 = vsub.s32 3, %v6163
  %v6165 = vrot.slane %v6097, %v6164
  %v6170 = vadd.f32 %v6145, %v6153
  %v6171 = vadd.f32 %v6146, %v6157
  %v6172 = vadd.f32 %v6147, %v6161
  %v6173 = vadd.f32 %v6148, %v6165
  %v6174 = vmax.f32 %v6170, 0.0
  %v6175 = vmax.f32 %v6171, 0.0
  %v6176 = vmax.f32 %v6172, 0.0
  %v6177 = vmax.f32 %v6173, 0.0
  %v6178 = vpack.c.bf16 %v6174, %v6174
  %v6179 = vpack.c.bf16 %v6175, %v6175
  %v6180 = vpack.c.bf16 %v6176, %v6176
  %v6181 = vpack.c.bf16 %v6177, %v6177
  %v6182 = vld [vmem:[%s15] sm:$0xf]
  %v6183 = vld [vmem:[%s15 + $0x4] sm:$0xf]
  %v6184 = vld [vmem:[%s15 + $0x8] sm:$0xf]
  %v6185 = vld [vmem:[%s15 + $0xc] sm:$0xf]
  %v6186 = vld [vmem:[%s15 + $0x10] sm:$0xf]
  %v6187 = vld [vmem:[%s15 + $0x14] sm:$0xf]
  %v6188 = vld [vmem:[%s15 + $0x18] sm:$0xf]
  %v6189 = vld [vmem:[%s15 + $0x1c] sm:$0xf]
  %v6190 = vld [vmem:[%s15 + $0x20] sm:$0xf]
  %v6191 = vld [vmem:[%s15 + $0x24] sm:$0xf]
  %v6192 = vld [vmem:[%s15 + $0x28] sm:$0xf]
  %v6193 = vld [vmem:[%s15 + $0x2c] sm:$0xf]
  %v6194 = vld [vmem:[%s15 + $0x30] sm:$0xf]
  %v6195 = vld [vmem:[%s15 + $0x34] sm:$0xf]
  %v6196 = vld [vmem:[%s15 + $0x38] sm:$0xf]
  %v6197 = vld [vmem:[%s15 + $0x3c] sm:$0xf]
  %v6198 = vld [vmem:[%s15 + $0x40] sm:$0xf]
  %v6199 = vld [vmem:[%s15 + $0x44] sm:$0xf]
  %v6200 = vld [vmem:[%s15 + $0x48] sm:$0xf]
  %v6201 = vld [vmem:[%s15 + $0x4c] sm:$0xf]
  %v6202 = vld [vmem:[%s15 + $0x50] sm:$0xf]
  %v6203 = vld [vmem:[%s15 + $0x54] sm:$0xf]
  %v6204 = vld [vmem:[%s15 + $0x58] sm:$0xf]
  %v6205 = vld [vmem:[%s15 + $0x5c] sm:$0xf]
  %v6206 = vld [vmem:[%s15 + $0x60] sm:$0xf]
  %v6207 = vld [vmem:[%s15 + $0x64] sm:$0xf]
  %v6208 = vld [vmem:[%s15 + $0x68] sm:$0xf]
  %v6209 = vld [vmem:[%s15 + $0x6c] sm:$0xf]
  %v6210 = vld [vmem:[%s15 + $0x70] sm:$0xf]
  %v6211 = vld [vmem:[%s15 + $0x74] sm:$0xf]
  %v6212 = vld [vmem:[%s15 + $0x78] sm:$0xf]
  %v6213 = vld [vmem:[%s15 + $0x7c] sm:$0xf]
  %v6214 = vld [vmem:[%s15 + $0x80] sm:$0xf]
  %v6215 = vld [vmem:[%s15 + $0x84] sm:$0xf]
  %v6216 = vld [vmem:[%s15 + $0x88] sm:$0xf]
  %v6217 = vld [vmem:[%s15 + $0x8c] sm:$0xf]
  %v6218 = vld [vmem:[%s15 + $0x90] sm:$0xf]
  %v6219 = vld [vmem:[%s15 + $0x94] sm:$0xf]
  %v6220 = vld [vmem:[%s15 + $0x98] sm:$0xf]
  %v6221 = vld [vmem:[%s15 + $0x9c] sm:$0xf]
  %v6222 = vld [vmem:[%s15 + $0xa0] sm:$0xf]
  %v6223 = vld [vmem:[%s15 + $0xa4] sm:$0xf]
  %v6224 = vld [vmem:[%s15 + $0xa8] sm:$0xf]
  %v6225 = vld [vmem:[%s15 + $0xac] sm:$0xf]
  %v6226 = vld [vmem:[%s15 + $0xb0] sm:$0xf]
  %v6227 = vld [vmem:[%s15 + $0xb4] sm:$0xf]
  %v6228 = vld [vmem:[%s15 + $0xb8] sm:$0xf]
  %v6229 = vld [vmem:[%s15 + $0xbc] sm:$0xf]
  %v6230 = vld [vmem:[%s15 + $0xc0] sm:$0xf]
  %v6231 = vld [vmem:[%s15 + $0xc4] sm:$0xf]
  %v6232 = vld [vmem:[%s15 + $0xc8] sm:$0xf]
  %v6233 = vld [vmem:[%s15 + $0xcc] sm:$0xf]
  %v6234 = vld [vmem:[%s15 + $0xd0] sm:$0xf]
  %v6235 = vld [vmem:[%s15 + $0xd4] sm:$0xf]
  %v6236 = vld [vmem:[%s15 + $0xd8] sm:$0xf]
  %v6237 = vld [vmem:[%s15 + $0xdc] sm:$0xf]
  %v6238 = vld [vmem:[%s15 + $0xe0] sm:$0xf]
  %v6239 = vld [vmem:[%s15 + $0xe4] sm:$0xf]
  %v6240 = vld [vmem:[%s15 + $0xe8] sm:$0xf]
  %v6241 = vld [vmem:[%s15 + $0xec] sm:$0xf]
  %v6242 = vld [vmem:[%s15 + $0xf0] sm:$0xf]
  %v6243 = vld [vmem:[%s15 + $0xf4] sm:$0xf]
  %v6244 = vld [vmem:[%s15 + $0xf8] sm:$0xf]
  %v6245 = vld [vmem:[%s15 + $0xfc] sm:$0xf]
  %v6246 = vld [vmem:[%s15 + $0x100] sm:$0xf]
  %v6247 = vld [vmem:[%s15 + $0x104] sm:$0xf]
  %v6248 = vld [vmem:[%s15 + $0x108] sm:$0xf]
  %v6249 = vld [vmem:[%s15 + $0x10c] sm:$0xf]
  %v6250 = vld [vmem:[%s15 + $0x110] sm:$0xf]
  %v6251 = vld [vmem:[%s15 + $0x114] sm:$0xf]
  %v6252 = vld [vmem:[%s15 + $0x118] sm:$0xf]
  %v6253 = vld [vmem:[%s15 + $0x11c] sm:$0xf]
  %v6254 = vld [vmem:[%s15 + $0x120] sm:$0xf]
  %v6255 = vld [vmem:[%s15 + $0x124] sm:$0xf]
  %v6256 = vld [vmem:[%s15 + $0x128] sm:$0xf]
  %v6257 = vld [vmem:[%s15 + $0x12c] sm:$0xf]
  %v6258 = vld [vmem:[%s15 + $0x130] sm:$0xf]
  %v6259 = vld [vmem:[%s15 + $0x134] sm:$0xf]
  %v6260 = vld [vmem:[%s15 + $0x138] sm:$0xf]
  %v6261 = vld [vmem:[%s15 + $0x13c] sm:$0xf]
  %v6262 = vld [vmem:[%s15 + $0x140] sm:$0xf]
  %v6263 = vld [vmem:[%s15 + $0x144] sm:$0xf]
  %v6264 = vld [vmem:[%s15 + $0x148] sm:$0xf]
  %v6265 = vld [vmem:[%s15 + $0x14c] sm:$0xf]
  %v6266 = vld [vmem:[%s15 + $0x150] sm:$0xf]
  %v6267 = vld [vmem:[%s15 + $0x154] sm:$0xf]
  %v6268 = vld [vmem:[%s15 + $0x158] sm:$0xf]
  %v6269 = vld [vmem:[%s15 + $0x15c] sm:$0xf]
  %v6270 = vld [vmem:[%s15 + $0x160] sm:$0xf]
  %v6271 = vld [vmem:[%s15 + $0x164] sm:$0xf]
  %v6272 = vld [vmem:[%s15 + $0x168] sm:$0xf]
  %v6273 = vld [vmem:[%s15 + $0x16c] sm:$0xf]
  %v6274 = vld [vmem:[%s15 + $0x170] sm:$0xf]
  %v6275 = vld [vmem:[%s15 + $0x174] sm:$0xf]
  %v6276 = vld [vmem:[%s15 + $0x178] sm:$0xf]
  %v6277 = vld [vmem:[%s15 + $0x17c] sm:$0xf]
  %v6278 = vld [vmem:[%s15 + $0x180] sm:$0xf]
  %v6279 = vld [vmem:[%s15 + $0x184] sm:$0xf]
  %v6280 = vld [vmem:[%s15 + $0x188] sm:$0xf]
  %v6281 = vld [vmem:[%s15 + $0x18c] sm:$0xf]
  %v6282 = vld [vmem:[%s15 + $0x190] sm:$0xf]
  %v6283 = vld [vmem:[%s15 + $0x194] sm:$0xf]
  %v6284 = vld [vmem:[%s15 + $0x198] sm:$0xf]
  %v6285 = vld [vmem:[%s15 + $0x19c] sm:$0xf]
  %v6286 = vld [vmem:[%s15 + $0x1a0] sm:$0xf]
  %v6287 = vld [vmem:[%s15 + $0x1a4] sm:$0xf]
  %v6288 = vld [vmem:[%s15 + $0x1a8] sm:$0xf]
  %v6289 = vld [vmem:[%s15 + $0x1ac] sm:$0xf]
  %v6290 = vld [vmem:[%s15 + $0x1b0] sm:$0xf]
  %v6291 = vld [vmem:[%s15 + $0x1b4] sm:$0xf]
  %v6292 = vld [vmem:[%s15 + $0x1b8] sm:$0xf]
  %v6293 = vld [vmem:[%s15 + $0x1bc] sm:$0xf]
  %v6294 = vld [vmem:[%s15 + $0x1c0] sm:$0xf]
  %v6295 = vld [vmem:[%s15 + $0x1c4] sm:$0xf]
  %v6296 = vld [vmem:[%s15 + $0x1c8] sm:$0xf]
  %v6297 = vld [vmem:[%s15 + $0x1cc] sm:$0xf]
  %v6298 = vld [vmem:[%s15 + $0x1d0] sm:$0xf]
  %v6299 = vld [vmem:[%s15 + $0x1d4] sm:$0xf]
  %v6300 = vld [vmem:[%s15 + $0x1d8] sm:$0xf]
  %v6301 = vld [vmem:[%s15 + $0x1dc] sm:$0xf]
  %v6302 = vld [vmem:[%s15 + $0x1e0] sm:$0xf]
  %v6303 = vld [vmem:[%s15 + $0x1e4] sm:$0xf]
  %v6304 = vld [vmem:[%s15 + $0x1e8] sm:$0xf]
  %v6305 = vld [vmem:[%s15 + $0x1ec] sm:$0xf]
  %v6306 = vld [vmem:[%s15 + $0x1f0] sm:$0xf]
  %v6307 = vld [vmem:[%s15 + $0x1f4] sm:$0xf]
  %v6308 = vld [vmem:[%s15 + $0x1f8] sm:$0xf]
  %v6309 = vld [vmem:[%s15 + $0x1fc] sm:$0xf]
  %v6310 = vld [vmem:[%s15 + $0x200] sm:$0xf]
  %v6311 = vld [vmem:[%s15 + $0x204] sm:$0xf]
  %v6312 = vld [vmem:[%s15 + $0x208] sm:$0xf]
  %v6313 = vld [vmem:[%s15 + $0x20c] sm:$0xf]
  %v6314 = vld [vmem:[%s15 + $0x210] sm:$0xf]
  %v6315 = vld [vmem:[%s15 + $0x214] sm:$0xf]
  %v6316 = vld [vmem:[%s15 + $0x218] sm:$0xf]
  %v6317 = vld [vmem:[%s15 + $0x21c] sm:$0xf]
  %v6318 = vld [vmem:[%s15 + $0x220] sm:$0xf]
  %v6319 = vld [vmem:[%s15 + $0x224] sm:$0xf]
  %v6320 = vld [vmem:[%s15 + $0x228] sm:$0xf]
  %v6321 = vld [vmem:[%s15 + $0x22c] sm:$0xf]
  %v6322 = vld [vmem:[%s15 + $0x230] sm:$0xf]
  %v6323 = vld [vmem:[%s15 + $0x234] sm:$0xf]
  %v6324 = vld [vmem:[%s15 + $0x238] sm:$0xf]
  %v6325 = vld [vmem:[%s15 + $0x23c] sm:$0xf]
  %v6326 = vld [vmem:[%s15 + $0x240] sm:$0xf]
  %v6327 = vld [vmem:[%s15 + $0x244] sm:$0xf]
  %v6328 = vld [vmem:[%s15 + $0x248] sm:$0xf]
  %v6329 = vld [vmem:[%s15 + $0x24c] sm:$0xf]
  %v6330 = vld [vmem:[%s15 + $0x250] sm:$0xf]
  %v6331 = vld [vmem:[%s15 + $0x254] sm:$0xf]
  %v6332 = vld [vmem:[%s15 + $0x258] sm:$0xf]
  %v6333 = vld [vmem:[%s15 + $0x25c] sm:$0xf]
  %v6334 = vld [vmem:[%s15 + $0x260] sm:$0xf]
  %v6335 = vld [vmem:[%s15 + $0x264] sm:$0xf]
  %v6336 = vld [vmem:[%s15 + $0x268] sm:$0xf]
  %v6337 = vld [vmem:[%s15 + $0x26c] sm:$0xf]
  %v6338 = vld [vmem:[%s15 + $0x270] sm:$0xf]
  %v6339 = vld [vmem:[%s15 + $0x274] sm:$0xf]
  %v6340 = vld [vmem:[%s15 + $0x278] sm:$0xf]
  %v6341 = vld [vmem:[%s15 + $0x27c] sm:$0xf]
  %v6342 = vld [vmem:[%s15 + $0x280] sm:$0xf]
  %v6343 = vld [vmem:[%s15 + $0x284] sm:$0xf]
  %v6344 = vld [vmem:[%s15 + $0x288] sm:$0xf]
  %v6345 = vld [vmem:[%s15 + $0x28c] sm:$0xf]
  %v6346 = vld [vmem:[%s15 + $0x290] sm:$0xf]
  %v6347 = vld [vmem:[%s15 + $0x294] sm:$0xf]
  %v6348 = vld [vmem:[%s15 + $0x298] sm:$0xf]
  %v6349 = vld [vmem:[%s15 + $0x29c] sm:$0xf]
  %v6350 = vld [vmem:[%s15 + $0x2a0] sm:$0xf]
  %v6351 = vld [vmem:[%s15 + $0x2a4] sm:$0xf]
  %v6352 = vld [vmem:[%s15 + $0x2a8] sm:$0xf]
  %v6353 = vld [vmem:[%s15 + $0x2ac] sm:$0xf]
  %v6354 = vld [vmem:[%s15 + $0x2b0] sm:$0xf]
  %v6355 = vld [vmem:[%s15 + $0x2b4] sm:$0xf]
  %v6356 = vld [vmem:[%s15 + $0x2b8] sm:$0xf]
  %v6357 = vld [vmem:[%s15 + $0x2bc] sm:$0xf]
  %v6358 = vld [vmem:[%s15 + $0x2c0] sm:$0xf]
  %v6359 = vld [vmem:[%s15 + $0x2c4] sm:$0xf]
  %v6360 = vld [vmem:[%s15 + $0x2c8] sm:$0xf]
  %v6361 = vld [vmem:[%s15 + $0x2cc] sm:$0xf]
  %v6362 = vld [vmem:[%s15 + $0x2d0] sm:$0xf]
  %v6363 = vld [vmem:[%s15 + $0x2d4] sm:$0xf]
  %v6364 = vld [vmem:[%s15 + $0x2d8] sm:$0xf]
  %v6365 = vld [vmem:[%s15 + $0x2dc] sm:$0xf]
  %v6366 = vld [vmem:[%s15 + $0x2e0] sm:$0xf]
  %v6367 = vld [vmem:[%s15 + $0x2e4] sm:$0xf]
  %v6368 = vld [vmem:[%s15 + $0x2e8] sm:$0xf]
  %v6369 = vld [vmem:[%s15 + $0x2ec] sm:$0xf]
  %v6370 = vld [vmem:[%s15 + $0x2f0] sm:$0xf]
  %v6371 = vld [vmem:[%s15 + $0x2f4] sm:$0xf]
  %v6372 = vld [vmem:[%s15 + $0x2f8] sm:$0xf]
  %v6373 = vld [vmem:[%s15 + $0x2fc] sm:$0xf]
  %v6374 = vld [vmem:[%s16] sm:$0x1]
  %v6376 = vlaneseq
  %v6377 = vshrl.u32 %v6376, 7
  %v6378 = vsub.s32 0, %v6377
  %v6379 = vrot.slane %v6374, %v6378
  %v6573 = vunpack.c.l.b16 %v6182
  %v6574 = vunpack.c.l.b16 %v6183
  %v6575 = vunpack.c.l.b16 %v6184
  %v6576 = vunpack.c.l.b16 %v6185
  %v6577 = vunpack.c.l.b16 %v6186
  %v6578 = vunpack.c.l.b16 %v6187
  %v6579 = vunpack.c.l.b16 %v6188
  %v6580 = vunpack.c.l.b16 %v6189
  %v6581 = vunpack.c.l.b16 %v6190
  %v6582 = vunpack.c.l.b16 %v6191
  %v6583 = vunpack.c.l.b16 %v6192
  %v6584 = vunpack.c.l.b16 %v6193
  %v6585 = vunpack.c.l.b16 %v6194
  %v6586 = vunpack.c.l.b16 %v6195
  %v6587 = vunpack.c.l.b16 %v6196
  %v6588 = vunpack.c.l.b16 %v6197
  %v6589 = vunpack.c.l.b16 %v6198
  %v6590 = vunpack.c.l.b16 %v6199
  %v6591 = vunpack.c.l.b16 %v6200
  %v6592 = vunpack.c.l.b16 %v6201
  %v6593 = vunpack.c.l.b16 %v6202
  %v6594 = vunpack.c.l.b16 %v6203
  %v6595 = vunpack.c.l.b16 %v6204
  %v6596 = vunpack.c.l.b16 %v6205
  %v6597 = vunpack.c.l.b16 %v6206
  %v6598 = vunpack.c.l.b16 %v6207
  %v6599 = vunpack.c.l.b16 %v6208
  %v6600 = vunpack.c.l.b16 %v6209
  %v6601 = vunpack.c.l.b16 %v6210
  %v6602 = vunpack.c.l.b16 %v6211
  %v6603 = vunpack.c.l.b16 %v6212
  %v6604 = vunpack.c.l.b16 %v6213
  %v6605 = vunpack.c.l.b16 %v6214
  %v6606 = vunpack.c.l.b16 %v6215
  %v6607 = vunpack.c.l.b16 %v6216
  %v6608 = vunpack.c.l.b16 %v6217
  %v6609 = vunpack.c.l.b16 %v6218
  %v6610 = vunpack.c.l.b16 %v6219
  %v6611 = vunpack.c.l.b16 %v6220
  %v6612 = vunpack.c.l.b16 %v6221
  %v6613 = vunpack.c.l.b16 %v6222
  %v6614 = vunpack.c.l.b16 %v6223
  %v6615 = vunpack.c.l.b16 %v6224
  %v6616 = vunpack.c.l.b16 %v6225
  %v6617 = vunpack.c.l.b16 %v6226
  %v6618 = vunpack.c.l.b16 %v6227
  %v6619 = vunpack.c.l.b16 %v6228
  %v6620 = vunpack.c.l.b16 %v6229
  %v6621 = vunpack.c.l.b16 %v6230
  %v6622 = vunpack.c.l.b16 %v6231
  %v6623 = vunpack.c.l.b16 %v6232
  %v6624 = vunpack.c.l.b16 %v6233
  %v6625 = vunpack.c.l.b16 %v6234
  %v6626 = vunpack.c.l.b16 %v6235
  %v6627 = vunpack.c.l.b16 %v6236
  %v6628 = vunpack.c.l.b16 %v6237
  %v6629 = vunpack.c.l.b16 %v6238
  %v6630 = vunpack.c.l.b16 %v6239
  %v6631 = vunpack.c.l.b16 %v6240
  %v6632 = vunpack.c.l.b16 %v6241
  %v6633 = vunpack.c.l.b16 %v6242
  %v6634 = vunpack.c.l.b16 %v6243
  %v6635 = vunpack.c.l.b16 %v6244
  %v6636 = vunpack.c.l.b16 %v6245
  %v6637 = vunpack.c.l.b16 %v6246
  %v6638 = vunpack.c.l.b16 %v6247
  %v6639 = vunpack.c.l.b16 %v6248
  %v6640 = vunpack.c.l.b16 %v6249
  %v6641 = vunpack.c.l.b16 %v6250
  %v6642 = vunpack.c.l.b16 %v6251
  %v6643 = vunpack.c.l.b16 %v6252
  %v6644 = vunpack.c.l.b16 %v6253
  %v6645 = vunpack.c.l.b16 %v6254
  %v6646 = vunpack.c.l.b16 %v6255
  %v6647 = vunpack.c.l.b16 %v6256
  %v6648 = vunpack.c.l.b16 %v6257
  %v6649 = vunpack.c.l.b16 %v6258
  %v6650 = vunpack.c.l.b16 %v6259
  %v6651 = vunpack.c.l.b16 %v6260
  %v6652 = vunpack.c.l.b16 %v6261
  %v6653 = vunpack.c.l.b16 %v6262
  %v6654 = vunpack.c.l.b16 %v6263
  %v6655 = vunpack.c.l.b16 %v6264
  %v6656 = vunpack.c.l.b16 %v6265
  %v6657 = vunpack.c.l.b16 %v6266
  %v6658 = vunpack.c.l.b16 %v6267
  %v6659 = vunpack.c.l.b16 %v6268
  %v6660 = vunpack.c.l.b16 %v6269
  %v6661 = vunpack.c.l.b16 %v6270
  %v6662 = vunpack.c.l.b16 %v6271
  %v6663 = vunpack.c.l.b16 %v6272
  %v6664 = vunpack.c.l.b16 %v6273
  %v6665 = vunpack.c.l.b16 %v6274
  %v6666 = vunpack.c.l.b16 %v6275
  %v6667 = vunpack.c.l.b16 %v6276
  %v6668 = vunpack.c.l.b16 %v6277
  %v6669 = vunpack.c.l.b16 %v6278
  %v6670 = vunpack.c.l.b16 %v6279
  %v6671 = vunpack.c.l.b16 %v6280
  %v6672 = vunpack.c.l.b16 %v6281
  %v6673 = vunpack.c.l.b16 %v6282
  %v6674 = vunpack.c.l.b16 %v6283
  %v6675 = vunpack.c.l.b16 %v6284
  %v6676 = vunpack.c.l.b16 %v6285
  %v6677 = vunpack.c.l.b16 %v6286
  %v6678 = vunpack.c.l.b16 %v6287
  %v6679 = vunpack.c.l.b16 %v6288
  %v6680 = vunpack.c.l.b16 %v6289
  %v6681 = vunpack.c.l.b16 %v6290
  %v6682 = vunpack.c.l.b16 %v6291
  %v6683 = vunpack.c.l.b16 %v6292
  %v6684 = vunpack.c.l.b16 %v6293
  %v6685 = vunpack.c.l.b16 %v6294
  %v6686 = vunpack.c.l.b16 %v6295
  %v6687 = vunpack.c.l.b16 %v6296
  %v6688 = vunpack.c.l.b16 %v6297
  %v6689 = vunpack.c.l.b16 %v6298
  %v6690 = vunpack.c.l.b16 %v6299
  %v6691 = vunpack.c.l.b16 %v6300
  %v6692 = vunpack.c.l.b16 %v6301
  %v6693 = vunpack.c.l.b16 %v6302
  %v6694 = vunpack.c.l.b16 %v6303
  %v6695 = vunpack.c.l.b16 %v6304
  %v6696 = vunpack.c.l.b16 %v6305
  %v6697 = vunpack.c.l.b16 %v6306
  %v6698 = vunpack.c.l.b16 %v6307
  %v6699 = vunpack.c.l.b16 %v6308
  %v6700 = vunpack.c.l.b16 %v6309
  %v6701 = vunpack.c.l.b16 %v6310
  %v6702 = vunpack.c.l.b16 %v6311
  %v6703 = vunpack.c.l.b16 %v6312
  %v6704 = vunpack.c.l.b16 %v6313
  %v6705 = vunpack.c.l.b16 %v6314
  %v6706 = vunpack.c.l.b16 %v6315
  %v6707 = vunpack.c.l.b16 %v6316
  %v6708 = vunpack.c.l.b16 %v6317
  %v6709 = vunpack.c.l.b16 %v6318
  %v6710 = vunpack.c.l.b16 %v6319
  %v6711 = vunpack.c.l.b16 %v6320
  %v6712 = vunpack.c.l.b16 %v6321
  %v6713 = vunpack.c.l.b16 %v6322
  %v6714 = vunpack.c.l.b16 %v6323
  %v6715 = vunpack.c.l.b16 %v6324
  %v6716 = vunpack.c.l.b16 %v6325
  %v6717 = vunpack.c.l.b16 %v6326
  %v6718 = vunpack.c.l.b16 %v6327
  %v6719 = vunpack.c.l.b16 %v6328
  %v6720 = vunpack.c.l.b16 %v6329
  %v6721 = vunpack.c.l.b16 %v6330
  %v6722 = vunpack.c.l.b16 %v6331
  %v6723 = vunpack.c.l.b16 %v6332
  %v6724 = vunpack.c.l.b16 %v6333
  %v6725 = vunpack.c.l.b16 %v6334
  %v6726 = vunpack.c.l.b16 %v6335
  %v6727 = vunpack.c.l.b16 %v6336
  %v6728 = vunpack.c.l.b16 %v6337
  %v6729 = vunpack.c.l.b16 %v6338
  %v6730 = vunpack.c.l.b16 %v6339
  %v6731 = vunpack.c.l.b16 %v6340
  %v6732 = vunpack.c.l.b16 %v6341
  %v6733 = vunpack.c.l.b16 %v6342
  %v6734 = vunpack.c.l.b16 %v6343
  %v6735 = vunpack.c.l.b16 %v6344
  %v6736 = vunpack.c.l.b16 %v6345
  %v6737 = vunpack.c.l.b16 %v6346
  %v6738 = vunpack.c.l.b16 %v6347
  %v6739 = vunpack.c.l.b16 %v6348
  %v6740 = vunpack.c.l.b16 %v6349
  %v6741 = vunpack.c.l.b16 %v6350
  %v6742 = vunpack.c.l.b16 %v6351
  %v6743 = vunpack.c.l.b16 %v6352
  %v6744 = vunpack.c.l.b16 %v6353
  %v6745 = vunpack.c.l.b16 %v6354
  %v6746 = vunpack.c.l.b16 %v6355
  %v6747 = vunpack.c.l.b16 %v6356
  %v6748 = vunpack.c.l.b16 %v6357
  %v6749 = vunpack.c.l.b16 %v6358
  %v6750 = vunpack.c.l.b16 %v6359
  %v6751 = vunpack.c.l.b16 %v6360
  %v6752 = vunpack.c.l.b16 %v6361
  %v6753 = vunpack.c.l.b16 %v6362
  %v6754 = vunpack.c.l.b16 %v6363
  %v6755 = vunpack.c.l.b16 %v6364
  %v6756 = vunpack.c.l.b16 %v6365
  %v6757 = vunpack.c.l.b16 %v6366
  %v6758 = vunpack.c.l.b16 %v6367
  %v6759 = vunpack.c.l.b16 %v6368
  %v6760 = vunpack.c.l.b16 %v6369
  %v6761 = vunpack.c.l.b16 %v6370
  %v6762 = vunpack.c.l.b16 %v6371
  %v6763 = vunpack.c.l.b16 %v6372
  %v6764 = vunpack.c.l.b16 %v6373
  %v6765 = vpack.c.b16 %v6574, %v6573
  %v6766 = vpack.c.b16 %v6576, %v6575
  %v6767 = vpack.c.b16 %v6578, %v6577
  %v6768 = vpack.c.b16 %v6580, %v6579
  %v6769 = vpack.c.b16 %v6582, %v6581
  %v6770 = vpack.c.b16 %v6584, %v6583
  %v6771 = vpack.c.b16 %v6586, %v6585
  %v6772 = vpack.c.b16 %v6588, %v6587
  %v6773 = vpack.c.b16 %v6590, %v6589
  %v6774 = vpack.c.b16 %v6592, %v6591
  %v6775 = vpack.c.b16 %v6594, %v6593
  %v6776 = vpack.c.b16 %v6596, %v6595
  %v6777 = vpack.c.b16 %v6598, %v6597
  %v6778 = vpack.c.b16 %v6600, %v6599
  %v6779 = vpack.c.b16 %v6602, %v6601
  %v6780 = vpack.c.b16 %v6604, %v6603
  %v6781 = vpack.c.b16 %v6606, %v6605
  %v6782 = vpack.c.b16 %v6608, %v6607
  %v6783 = vpack.c.b16 %v6610, %v6609
  %v6784 = vpack.c.b16 %v6612, %v6611
  %v6785 = vpack.c.b16 %v6614, %v6613
  %v6786 = vpack.c.b16 %v6616, %v6615
  %v6787 = vpack.c.b16 %v6618, %v6617
  %v6788 = vpack.c.b16 %v6620, %v6619
  %v6789 = vpack.c.b16 %v6622, %v6621
  %v6790 = vpack.c.b16 %v6624, %v6623
  %v6791 = vpack.c.b16 %v6626, %v6625
  %v6792 = vpack.c.b16 %v6628, %v6627
  %v6793 = vpack.c.b16 %v6630, %v6629
  %v6794 = vpack.c.b16 %v6632, %v6631
  %v6795 = vpack.c.b16 %v6634, %v6633
  %v6796 = vpack.c.b16 %v6636, %v6635
  %v6797 = vpack.c.b16 %v6638, %v6637
  %v6798 = vpack.c.b16 %v6640, %v6639
  %v6799 = vpack.c.b16 %v6642, %v6641
  %v6800 = vpack.c.b16 %v6644, %v6643
  %v6801 = vpack.c.b16 %v6646, %v6645
  %v6802 = vpack.c.b16 %v6648, %v6647
  %v6803 = vpack.c.b16 %v6650, %v6649
  %v6804 = vpack.c.b16 %v6652, %v6651
  %v6805 = vpack.c.b16 %v6654, %v6653
  %v6806 = vpack.c.b16 %v6656, %v6655
  %v6807 = vpack.c.b16 %v6658, %v6657
  %v6808 = vpack.c.b16 %v6660, %v6659
  %v6809 = vpack.c.b16 %v6662, %v6661
  %v6810 = vpack.c.b16 %v6664, %v6663
  %v6811 = vpack.c.b16 %v6666, %v6665
  %v6812 = vpack.c.b16 %v6668, %v6667
  %v6813 = vpack.c.b16 %v6670, %v6669
  %v6814 = vpack.c.b16 %v6672, %v6671
  %v6815 = vpack.c.b16 %v6674, %v6673
  %v6816 = vpack.c.b16 %v6676, %v6675
  %v6817 = vpack.c.b16 %v6678, %v6677
  %v6818 = vpack.c.b16 %v6680, %v6679
  %v6819 = vpack.c.b16 %v6682, %v6681
  %v6820 = vpack.c.b16 %v6684, %v6683
  %v6821 = vpack.c.b16 %v6686, %v6685
  %v6822 = vpack.c.b16 %v6688, %v6687
  %v6823 = vpack.c.b16 %v6690, %v6689
  %v6824 = vpack.c.b16 %v6692, %v6691
  %v6825 = vpack.c.b16 %v6694, %v6693
  %v6826 = vpack.c.b16 %v6696, %v6695
  %v6827 = vpack.c.b16 %v6698, %v6697
  %v6828 = vpack.c.b16 %v6700, %v6699
  %v6829 = vpack.c.b16 %v6702, %v6701
  %v6830 = vpack.c.b16 %v6704, %v6703
  %v6831 = vpack.c.b16 %v6706, %v6705
  %v6832 = vpack.c.b16 %v6708, %v6707
  %v6833 = vpack.c.b16 %v6710, %v6709
  %v6834 = vpack.c.b16 %v6712, %v6711
  %v6835 = vpack.c.b16 %v6714, %v6713
  %v6836 = vpack.c.b16 %v6716, %v6715
  %v6837 = vpack.c.b16 %v6718, %v6717
  %v6838 = vpack.c.b16 %v6720, %v6719
  %v6839 = vpack.c.b16 %v6722, %v6721
  %v6840 = vpack.c.b16 %v6724, %v6723
  %v6841 = vpack.c.b16 %v6726, %v6725
  %v6842 = vpack.c.b16 %v6728, %v6727
  %v6843 = vpack.c.b16 %v6730, %v6729
  %v6844 = vpack.c.b16 %v6732, %v6731
  %v6845 = vpack.c.b16 %v6734, %v6733
  %v6846 = vpack.c.b16 %v6736, %v6735
  %v6847 = vpack.c.b16 %v6738, %v6737
  %v6848 = vpack.c.b16 %v6740, %v6739
  %v6849 = vpack.c.b16 %v6742, %v6741
  %v6850 = vpack.c.b16 %v6744, %v6743
  %v6851 = vpack.c.b16 %v6746, %v6745
  %v6852 = vpack.c.b16 %v6748, %v6747
  %v6853 = vpack.c.b16 %v6750, %v6749
  %v6854 = vpack.c.b16 %v6752, %v6751
  %v6855 = vpack.c.b16 %v6754, %v6753
  %v6856 = vpack.c.b16 %v6756, %v6755
  %v6857 = vpack.c.b16 %v6758, %v6757
  %v6858 = vpack.c.b16 %v6760, %v6759
  %v6859 = vpack.c.b16 %v6762, %v6761
  %v6860 = vpack.c.b16 %v6764, %v6763
  %6957 = vmatprep.subr.bf16.mxu0 0
  %6958 = vmatpush1.bf16.msra.mxu0 %v6772
  %6959 = vmatprep.subr.bf16.mxu0 0
  %6960 = vmatpush1.bf16.msra.mxu0 %v6771
  %6961 = vmatprep.subr.bf16.mxu0 0
  %6962 = vmatpush1.bf16.msra.mxu0 %v6770
  %6963 = vmatprep.subr.bf16.mxu0 0
  %6964 = vmatpush1.bf16.msra.mxu0 %v6769
  %6965 = vmatprep.subr.bf16.mxu0 0
  %6966 = vmatpush1.bf16.msra.mxu0 %v6768
  %6967 = vmatprep.subr.bf16.mxu0 0
  %6968 = vmatpush1.bf16.msra.mxu0 %v6767
  %6969 = vmatprep.subr.bf16.mxu0 0
  %6970 = vmatpush1.bf16.msra.mxu0 %v6766
  %6971 = vmatprep.subr.bf16.mxu0 0
  %6972 = vmatpush1.bf16.msra.mxu0 %v6765
  %6973 = vmatprep.subr.bf16.mxu0 0
  %6974 = vmatpush2.bf16.msra.mxu0 %v6780
  %6975 = vmatprep.subr.bf16.mxu0 0
  %6976 = vmatpush2.bf16.msra.mxu0 %v6779
  %6977 = vmatprep.subr.bf16.mxu0 0
  %6978 = vmatpush2.bf16.msra.mxu0 %v6778
  %6979 = vmatprep.subr.bf16.mxu0 0
  %6980 = vmatpush2.bf16.msra.mxu0 %v6777
  %6981 = vmatprep.subr.bf16.mxu0 0
  %6982 = vmatpush2.bf16.msra.mxu0 %v6776
  %6983 = vmatprep.subr.bf16.mxu0 0
  %6984 = vmatpush2.bf16.msra.mxu0 %v6775
  %6985 = vmatprep.subr.bf16.mxu0 0
  %6986 = vmatpush2.bf16.msra.mxu0 %v6774
  %6987 = vmatprep.subr.bf16.mxu0 0
  %6988 = vmatpush2.bf16.msra.mxu0 %v6773
  %6989 = vmatprep.mubr.bf16.mxu0 %v6179
  %6990 = vmatmul.mubr.bf16.gmra.mxu0 %v6178
  %v6991 = vpop.f32.mrf.mxu0
  %v6992 = vadd.f32 %v6379, %v6991
  %v6993 = vpop.f32.mrf.mxu0
  %v6994 = vpop.f32.mrf.mxu0
  %v6995 = vpop.f32.mrf.mxu0
  %6996 = vdwg.mxu0
  %6997 = vmatprep.subr.bf16.mxu0 0
  %6998 = vmatpush1.bf16.msra.mxu0 %v6788
  %6999 = vmatprep.subr.bf16.mxu0 0
  %7000 = vmatpush1.bf16.msra.mxu0 %v6787
  %7001 = vmatprep.subr.bf16.mxu0 0
  %7002 = vmatpush1.bf16.msra.mxu0 %v6786
  %7003 = vmatprep.subr.bf16.mxu0 0
  %7004 = vmatpush1.bf16.msra.mxu0 %v6785
  %7005 = vmatprep.subr.bf16.mxu0 0
  %7006 = vmatpush1.bf16.msra.mxu0 %v6784
  %7007 = vmatprep.subr.bf16.mxu0 0
  %7008 = vmatpush1.bf16.msra.mxu0 %v6783
  %7009 = vmatprep.subr.bf16.mxu0 0
  %7010 = vmatpush1.bf16.msra.mxu0 %v6782
  %7011 = vmatprep.subr.bf16.mxu0 0
  %7012 = vmatpush1.bf16.msra.mxu0 %v6781
  %7013 = vmatprep.subr.bf16.mxu0 0
  %7014 = vmatpush2.bf16.msra.mxu0 %v6796
  %7015 = vmatprep.subr.bf16.mxu0 0
  %7016 = vmatpush2.bf16.msra.mxu0 %v6795
  %7017 = vmatprep.subr.bf16.mxu0 0
  %7018 = vmatpush2.bf16.msra.mxu0 %v6794
  %7019 = vmatprep.subr.bf16.mxu0 0
  %7020 = vmatpush2.bf16.msra.mxu0 %v6793
  %7021 = vmatprep.subr.bf16.mxu0 0
  %7022 = vmatpush2.bf16.msra.mxu0 %v6792
  %7023 = vmatprep.subr.bf16.mxu0 0
  %7024 = vmatpush2.bf16.msra.mxu0 %v6791
  %7025 = vmatprep.subr.bf16.mxu0 0
  %7026 = vmatpush2.bf16.msra.mxu0 %v6790
  %7027 = vmatprep.subr.bf16.mxu0 0
  %7028 = vmatpush2.bf16.msra.mxu0 %v6789
  %7029 = vmatprep.mubr.bf16.mxu0 %v6181
  %7030 = vmatmul.mubr.bf16.gmra.mxu0 %v6180
  %v7031 = vpop.f32.mrf.mxu0
  %v7032 = vadd.f32 %v6992, %v7031
  %v7033 = vpop.f32.mrf.mxu0
  %v7034 = vpop.f32.mrf.mxu0
  %v7035 = vpop.f32.mrf.mxu0
  %7036 = vdwg.mxu0
  %7037 = vmatprep.subr.bf16.mxu0 0
  %7038 = vmatpush1.bf16.msra.mxu0 %v6804
  %7039 = vmatprep.subr.bf16.mxu0 0
  %7040 = vmatpush1.bf16.msra.mxu0 %v6803
  %7041 = vmatprep.subr.bf16.mxu0 0
  %7042 = vmatpush1.bf16.msra.mxu0 %v6802
  %7043 = vmatprep.subr.bf16.mxu0 0
  %7044 = vmatpush1.bf16.msra.mxu0 %v6801
  %7045 = vmatprep.subr.bf16.mxu0 0
  %7046 = vmatpush1.bf16.msra.mxu0 %v6800
  %7047 = vmatprep.subr.bf16.mxu0 0
  %7048 = vmatpush1.bf16.msra.mxu0 %v6799
  %7049 = vmatprep.subr.bf16.mxu0 0
  %7050 = vmatpush1.bf16.msra.mxu0 %v6798
  %7051 = vmatprep.subr.bf16.mxu0 0
  %7052 = vmatpush1.bf16.msra.mxu0 %v6797
  %7053 = vmatprep.subr.bf16.mxu0 0
  %7054 = vmatpush2.bf16.msra.mxu0 %v6812
  %7055 = vmatprep.subr.bf16.mxu0 0
  %7056 = vmatpush2.bf16.msra.mxu0 %v6811
  %7057 = vmatprep.subr.bf16.mxu0 0
  %7058 = vmatpush2.bf16.msra.mxu0 %v6810
  %7059 = vmatprep.subr.bf16.mxu0 0
  %7060 = vmatpush2.bf16.msra.mxu0 %v6809
  %7061 = vmatprep.subr.bf16.mxu0 0
  %7062 = vmatpush2.bf16.msra.mxu0 %v6808
  %7063 = vmatprep.subr.bf16.mxu0 0
  %7064 = vmatpush2.bf16.msra.mxu0 %v6807
  %7065 = vmatprep.subr.bf16.mxu0 0
  %7066 = vmatpush2.bf16.msra.mxu0 %v6806
  %7067 = vmatprep.subr.bf16.mxu0 0
  %7068 = vmatpush2.bf16.msra.mxu0 %v6805
  %7069 = vmatprep.mubr.bf16.mxu0 %v262
  %7070 = vmatmul.mubr.bf16.gmra.mxu0 %v261
  %v7071 = vpop.f32.mrf.mxu0
  %v7072 = vadd.f32 %v7032, %v7071
  %v7073 = vpop.f32.mrf.mxu0
  %v7074 = vpop.f32.mrf.mxu0
  %v7075 = vpop.f32.mrf.mxu0
  %7076 = vdwg.mxu0
  %7077 = vmatprep.subr.bf16.mxu0 0
  %7078 = vmatpush1.bf16.msra.mxu0 %v6820
  %7079 = vmatprep.subr.bf16.mxu0 0
  %7080 = vmatpush1.bf16.msra.mxu0 %v6819
  %7081 = vmatprep.subr.bf16.mxu0 0
  %7082 = vmatpush1.bf16.msra.mxu0 %v6818
  %7083 = vmatprep.subr.bf16.mxu0 0
  %7084 = vmatpush1.bf16.msra.mxu0 %v6817
  %7085 = vmatprep.subr.bf16.mxu0 0
  %7086 = vmatpush1.bf16.msra.mxu0 %v6816
  %7087 = vmatprep.subr.bf16.mxu0 0
  %7088 = vmatpush1.bf16.msra.mxu0 %v6815
  %7089 = vmatprep.subr.bf16.mxu0 0
  %7090 = vmatpush1.bf16.msra.mxu0 %v6814
  %7091 = vmatprep.subr.bf16.mxu0 0
  %7092 = vmatpush1.bf16.msra.mxu0 %v6813
  %7093 = vmatprep.subr.bf16.mxu0 0
  %7094 = vmatpush2.bf16.msra.mxu0 %v6828
  %7095 = vmatprep.subr.bf16.mxu0 0
  %7096 = vmatpush2.bf16.msra.mxu0 %v6827
  %7097 = vmatprep.subr.bf16.mxu0 0
  %7098 = vmatpush2.bf16.msra.mxu0 %v6826
  %7099 = vmatprep.subr.bf16.mxu0 0
  %7100 = vmatpush2.bf16.msra.mxu0 %v6825
  %7101 = vmatprep.subr.bf16.mxu0 0
  %7102 = vmatpush2.bf16.msra.mxu0 %v6824
  %7103 = vmatprep.subr.bf16.mxu0 0
  %7104 = vmatpush2.bf16.msra.mxu0 %v6823
  %7105 = vmatprep.subr.bf16.mxu0 0
  %7106 = vmatpush2.bf16.msra.mxu0 %v6822
  %7107 = vmatprep.subr.bf16.mxu0 0
  %7108 = vmatpush2.bf16.msra.mxu0 %v6821
  %7109 = vmatprep.mubr.bf16.mxu0 %v264
  %7110 = vmatmul.mubr.bf16.gmra.mxu0 %v263
  %v7111 = vpop.f32.mrf.mxu0
  %v7112 = vadd.f32 %v7072, %v7111
  %v7113 = vpop.f32.mrf.mxu0
  %v7114 = vpop.f32.mrf.mxu0
  %v7115 = vpop.f32.mrf.mxu0
  %7116 = vdwg.mxu0
  %7117 = vmatprep.subr.bf16.mxu0 0
  %7118 = vmatpush1.bf16.msra.mxu0 %v6836
  %7119 = vmatprep.subr.bf16.mxu0 0
  %7120 = vmatpush1.bf16.msra.mxu0 %v6835
  %7121 = vmatprep.subr.bf16.mxu0 0
  %7122 = vmatpush1.bf16.msra.mxu0 %v6834
  %7123 = vmatprep.subr.bf16.mxu0 0
  %7124 = vmatpush1.bf16.msra.mxu0 %v6833
  %7125 = vmatprep.subr.bf16.mxu0 0
  %7126 = vmatpush1.bf16.msra.mxu0 %v6832
  %7127 = vmatprep.subr.bf16.mxu0 0
  %7128 = vmatpush1.bf16.msra.mxu0 %v6831
  %7129 = vmatprep.subr.bf16.mxu0 0
  %7130 = vmatpush1.bf16.msra.mxu0 %v6830
  %7131 = vmatprep.subr.bf16.mxu0 0
  %7132 = vmatpush1.bf16.msra.mxu0 %v6829
  %7133 = vmatprep.subr.bf16.mxu0 0
  %7134 = vmatpush2.bf16.msra.mxu0 %v6844
  %7135 = vmatprep.subr.bf16.mxu0 0
  %7136 = vmatpush2.bf16.msra.mxu0 %v6843
  %7137 = vmatprep.subr.bf16.mxu0 0
  %7138 = vmatpush2.bf16.msra.mxu0 %v6842
  %7139 = vmatprep.subr.bf16.mxu0 0
  %7140 = vmatpush2.bf16.msra.mxu0 %v6841
  %7141 = vmatprep.subr.bf16.mxu0 0
  %7142 = vmatpush2.bf16.msra.mxu0 %v6840
  %7143 = vmatprep.subr.bf16.mxu0 0
  %7144 = vmatpush2.bf16.msra.mxu0 %v6839
  %7145 = vmatprep.subr.bf16.mxu0 0
  %7146 = vmatpush2.bf16.msra.mxu0 %v6838
  %7147 = vmatprep.subr.bf16.mxu0 0
  %7148 = vmatpush2.bf16.msra.mxu0 %v6837
  %7149 = vmatprep.mubr.bf16.mxu0 %v266
  %7150 = vmatmul.mubr.bf16.gmra.mxu0 %v265
  %v7151 = vpop.f32.mrf.mxu0
  %v7152 = vadd.f32 %v7112, %v7151
  %v7153 = vpop.f32.mrf.mxu0
  %v7154 = vpop.f32.mrf.mxu0
  %v7155 = vpop.f32.mrf.mxu0
  %7156 = vdwg.mxu0
  %7157 = vmatprep.subr.bf16.mxu0 0
  %7158 = vmatpush1.bf16.msra.mxu0 %v6852
  %7159 = vmatprep.subr.bf16.mxu0 0
  %7160 = vmatpush1.bf16.msra.mxu0 %v6851
  %7161 = vmatprep.subr.bf16.mxu0 0
  %7162 = vmatpush1.bf16.msra.mxu0 %v6850
  %7163 = vmatprep.subr.bf16.mxu0 0
  %7164 = vmatpush1.bf16.msra.mxu0 %v6849
  %7165 = vmatprep.subr.bf16.mxu0 0
  %7166 = vmatpush1.bf16.msra.mxu0 %v6848
  %7167 = vmatprep.subr.bf16.mxu0 0
  %7168 = vmatpush1.bf16.msra.mxu0 %v6847
  %7169 = vmatprep.subr.bf16.mxu0 0
  %7170 = vmatpush1.bf16.msra.mxu0 %v6846
  %7171 = vmatprep.subr.bf16.mxu0 0
  %7172 = vmatpush1.bf16.msra.mxu0 %v6845
  %7173 = vmatprep.subr.bf16.mxu0 0
  %7174 = vmatpush2.bf16.msra.mxu0 %v6860
  %7175 = vmatprep.subr.bf16.mxu0 0
  %7176 = vmatpush2.bf16.msra.mxu0 %v6859
  %7177 = vmatprep.subr.bf16.mxu0 0
  %7178 = vmatpush2.bf16.msra.mxu0 %v6858
  %7179 = vmatprep.subr.bf16.mxu0 0
  %7180 = vmatpush2.bf16.msra.mxu0 %v6857
  %7181 = vmatprep.subr.bf16.mxu0 0
  %7182 = vmatpush2.bf16.msra.mxu0 %v6856
  %7183 = vmatprep.subr.bf16.mxu0 0
  %7184 = vmatpush2.bf16.msra.mxu0 %v6855
  %7185 = vmatprep.subr.bf16.mxu0 0
  %7186 = vmatpush2.bf16.msra.mxu0 %v6854
  %7187 = vmatprep.subr.bf16.mxu0 0
  %7188 = vmatpush2.bf16.msra.mxu0 %v6853
  %7189 = vmatprep.mubr.bf16.mxu0 %v268
  %7190 = vmatmul.mubr.bf16.gmra.mxu0 %v267
  %v7191 = vpop.f32.mrf.mxu0
  %v7192 = vadd.f32 %v7152, %v7191
  %v7193 = vpop.f32.mrf.mxu0
  %v7194 = vpop.f32.mrf.mxu0
  %v7195 = vpop.f32.mrf.mxu0
  %7196 = vdwg.mxu0
  %7197 = vst [vmem:[%s19] sm:$0xff] %v7192
  // Predicated region
  $region70: #{clip_finetuner_head.1} parent=0 // pred_check
    _
  $region71: #{clip_finetuner_head.1} parent=0 // pred_check_branch
    %7199 = sbr.rel (0) target = $region73
  $region72: #{clip_finetuner_head.1} parent=0 // pred_region
    _
  $region73: #{clip_finetuner_head.1} parent=0 // pred_fallthru
    _
  // Predicated region
  $region74: #{clip_finetuner_head.1} parent=0 // pred_check
    _
  $region75: #{clip_finetuner_head.1} parent=0 // pred_check_branch
    %7201 = sbr.rel (0) target = $region77
  $region76: #{clip_finetuner_head.1} parent=0 // pred_region
    _
  $region77: #{clip_finetuner_head.1} parent=0 // pred_fallthru
    _
  // Predicated region
  $region78: #{clip_finetuner_head.1} parent=0 // pred_check
    _
  $region79: #{clip_finetuner_head.1} parent=0 // pred_check_branch
    %7203 = sbr.rel (0) target = $region81
  $region80: #{clip_finetuner_head.1} parent=0 // pred_region
    _
  $region81: #{clip_finetuner_head.1} parent=0 // pred_fallthru
    _
  // Predicated region
  $region82: #{clip_finetuner_head.1} parent=0 // pred_check
    _
  $region83: #{clip_finetuner_head.1} parent=0 // pred_check_branch
    %7205 = sbr.rel (0) target = $region85
  $region84: #{clip_finetuner_head.1} parent=0 // pred_region
    _
  $region85: #{clip_finetuner_head.1} parent=0 // pred_fallthru
    _
  // Predicated region
  $region86: #{clip_finetuner_head.1} parent=0 // pred_check
    _
  $region87: #{clip_finetuner_head.1} parent=0 // pred_check_branch
    %7207 = sbr.rel (0) target = $region89
  $region88: #{clip_finetuner_head.1} parent=0 // pred_region
    _
  $region89: #{clip_finetuner_head.1} parent=0 // pred_fallthru
    _
  // Predicated region
  $region90: #{clip_finetuner_head.1} parent=0 // pred_check
    _
  $region91: #{clip_finetuner_head.1} parent=0 // pred_check_branch
    %7209 = sbr.rel (0) target = $region93
  $region92: #{clip_finetuner_head.1} parent=0 // pred_region
    _
  $region93: #{clip_finetuner_head.1} parent=0 // pred_fallthru
    _

</llo_original>
